<compile_context>
chip_gen: v7x
topology: tpu7x:2x2x1
jax: 0.10.0
libtpu: 0.0.40
codegen_flags: <defaults>
</compile_context>

<pallas_src>
import functools

import jax
import jax.numpy as jnp
from jax.experimental import pallas as pl
from jax.experimental.pallas import tpu as pltpu


_OUT_W = 8         # output slab width: rgb = cols 0..2, sigma = col 3
_LANE_MIN = 8      # pad tiny feature dims (xyz / dirs) up to this many lanes


def _round_up(x, m):
    return ((x + m - 1) // m) * m


def _num_tensorcores():
    """Best-effort TensorCore-per-chip count (megacore detection)."""
    try:
        kind = jax.devices()[0].device_kind.lower()
    except Exception:
        return 1
    if "lite" in kind or "v5e" in kind or "v6" in kind or "v2" in kind or "v3" in kind:
        return 1
    if "v4" in kind or "v5p" in kind or "v7" in kind:
        return 2
    return 1


# ----------------------------------------------------------------------------
# Fused kernel: full NeRF MLP for one tile of rays.
# ----------------------------------------------------------------------------
def _nerf_fused_kernel(*refs, num_layers, skips, use_dirs, compute_dtype):
    out_ref = refs[-1]
    ins = refs[:-1]
    pos = 0

    def nxt():
        nonlocal pos
        v = ins[pos][...]
        pos += 1
        return v

    def cdt(x):
        return x.astype(compute_dtype)

    # Fused, padded [xyz | dirs] input tile (already in compute_dtype).
    x_in = nxt()                              # (tm, in_width)

    h = x_in
    for idx in range(num_layers):
        if idx in skips and idx > 0:
            # Split matmul instead of concatenate([h, xyz]) @ W; the bottom
            # weight is zero-embedded to the fused input width.
            w_top, w_bot, b = nxt(), nxt(), nxt()
            y = (jnp.dot(cdt(h), w_top, preferred_element_type=jnp.float32)
                 + jnp.dot(x_in, w_bot, preferred_element_type=jnp.float32)
                 + b)
        else:
            w, b = nxt(), nxt()
            y = jnp.dot(cdt(h), w, preferred_element_type=jnp.float32) + b
        h = jnp.maximum(y, 0.0)               # ReLU in f32 (v5e-safe)

    if use_dirs:
        # fc_feat ++ fc_sigma fused into one matmul; output padded to a
        # multiple of 128 lanes so the sigma slice stays tile-aligned.
        w_sf, b_sf = nxt(), nxt()             # (w_dim, sf_pad)
        sf = jnp.dot(cdt(h), w_sf, preferred_element_type=jnp.float32) + b_sf
        w_dim = w_sf.shape[0]
        feature = sf[:, :w_dim]
        sigma = sf[:, w_dim:w_dim + 1]

        # fc_dirs: split matmul instead of concatenate([feature, dirs]) @ W.
        wd_top, wd_bot, bd = nxt(), nxt(), nxt()
        hd = (jnp.dot(cdt(feature), wd_top, preferred_element_type=jnp.float32)
              + jnp.dot(x_in, wd_bot, preferred_element_type=jnp.float32)
              + bd)
        hd = jnp.maximum(hd, 0.0)

        # fc_rgb (sigmoid head), weights pre-padded to the slab width: the
        # matmul result already sits in cols 0..2; merge sigma into lane 3
        # with a select (no zero-fill / concat temporaries).
        wr, br = nxt(), nxt()                 # (w_dim // 2, _OUT_W)
        rgb = jax.nn.sigmoid(
            jnp.dot(cdt(hd), wr, preferred_element_type=jnp.float32) + br)
        lane = jax.lax.broadcasted_iota(jnp.int32, rgb.shape, 1)
        out_ref[...] = jnp.where(lane == 3, sigma, rgb).astype(out_ref.dtype)
    else:
        # fc_out, pre-padded to the slab width in the wrapper.
        wo, bo = nxt(), nxt()
        out = jnp.dot(cdt(h), wo, preferred_element_type=jnp.float32) + bo
        out_ref[...] = out.astype(out_ref.dtype)


# ----------------------------------------------------------------------------
# Deterministic parameter construction (mirrors NeRF.__init__ shapes).
# PyTorch nn.Linear stores weight as (out, in); we store (in, out) so the
# kernel computes x @ W directly (== x @ weight.T in the torch convention).
# ----------------------------------------------------------------------------
def _init_linear(key, in_feat, out_feat):
    kw, kb = jax.random.split(key)
    bound = float(1.0 / (in_feat ** 0.5))
    w = jax.random.uniform(kw, (in_feat, out_feat), jnp.float32, -bound, bound)
    b = jax.random.uniform(kb, (out_feat,), jnp.float32, -bound, bound)
    return w, b


def init_nerf_params(key, x_dim, d_dim, w_dim, num_layers, skips=(4,),
                     use_dirs=False):
    skips = tuple(int(s) for s in skips)
    feature_list = [x_dim] + [
        w_dim if i not in skips else w_dim + x_dim
        for i in range(1, num_layers + 1)]
    params = {"x_dim": x_dim, "d_dim": d_dim, "w_dim": w_dim,
              "num_layers": num_layers, "skips": skips, "use_dirs": use_dirs,
              "feature_list": feature_list}
    keys = jax.random.split(key, num_layers + 4)
    for idx in range(num_layers):
        in_feat = feature_list[idx]
        out_feat = feature_list[idx + 1]
        if idx + 1 in skips:
            out_feat = w_dim
        params[f"fc_{idx}"] = _init_linear(keys[idx], in_feat, out_feat)
    if use_dirs:
        params["fc_sigma"] = _init_linear(keys[num_layers + 0], w_dim, 1)
        params["fc_feat"] = _init_linear(keys[num_layers + 1], w_dim, w_dim)
        params["fc_dirs"] = _init_linear(keys[num_layers + 2],
                                         w_dim + d_dim, w_dim // 2)
        params["fc_rgb"] = _init_linear(keys[num_layers + 3], w_dim // 2, 3)
    else:
        params["fc_out"] = _init_linear(keys[num_layers + 0], w_dim, 4)
    return params


# ----------------------------------------------------------------------------
# NeRF forward (fused Pallas kernel) — matches NeRF.forward semantics.
# ----------------------------------------------------------------------------
def nerf_forward(params, xyz, dirs, *, block_rows=1024,
                 compute_dtype=jnp.bfloat16):
    num_layers = params["num_layers"]
    skips = tuple(params["skips"])
    use_dirs = params["use_dirs"]
    x_dim = params["x_dim"]
    d_dim = params["d_dim"]
    w_dim = params["w_dim"]
    assert num_layers not in skips, "skip after the last layer not supported"

    f32 = jnp.float32
    n = xyz.shape[0]
    xp = _round_up(x_dim, _LANE_MIN)
    dp = _round_up(d_dim, _LANE_MIN)
    in_width = xp + (dp if use_dirs else 0)
    comp_size = jnp.dtype(compute_dtype).itemsize

    # --- weight / bias preparation (pad + fuse + cast once, wrapper-side) ---
    def w2(w):
        return w.astype(compute_dtype)

    def b2(b, width=None):
        b = b.astype(f32)
        if width is not None and b.shape[0] < width:
            b = jnp.pad(b, (0, width - b.shape[0]))
        return b.reshape(1, -1)

    def embed_rows(w, row_off):
        # Place w's rows at [row_off, row_off + rows) of an (in_width, out)
        # zero matrix so the fused [xyz | dirs] input multiplies it directly.
        wp = jnp.zeros((in_width, w.shape[1]), f32)
        return wp.at[row_off:row_off + w.shape[0]].set(w.astype(f32))

    weights = []
    mms = []                                   # (K, M) per matmul, for costs

    for idx in range(num_layers):
        w, b = params[f"fc_{idx}"]
        if idx in skips and idx > 0:
            split = w.shape[0] - x_dim         # hidden part of the concat
            w_top, w_bot = w[:split], w[split:]
            weights += [w2(w_top), w2(embed_rows(w_bot, 0)), b2(b)]
            mms += [(split, w.shape[1]), (in_width, w.shape[1])]
        elif idx == 0:
            weights += [w2(embed_rows(w, 0)), b2(b)]
            mms += [(in_width, w.shape[1])]
        else:
            weights += [w2(w), b2(b)]
            mms += [(w.shape[0], w.shape[1])]

    if use_dirs:
        wf, bf = params["fc_feat"]
        ws, bs = params["fc_sigma"]
        sf_pad = _round_up(w_dim + 1, 128)     # lane-aligned fused head output
        w_sf = jnp.concatenate([wf, ws], axis=1).astype(f32)
        w_sf = jnp.pad(w_sf, ((0, 0), (0, sf_pad - (w_dim + 1))))
        b_sf = jnp.concatenate([bf, bs])
        weights += [w2(w_sf), b2(b_sf, sf_pad)]
        mms += [(w_dim, sf_pad)]

        wd, bd = params["fc_dirs"]             # (w_dim + d_dim, w_dim // 2)
        wd_top, wd_bot = wd[:w_dim], wd[w_dim:]
        weights += [w2(wd_top), w2(embed_rows(wd_bot, xp)), b2(bd)]
        mms += [(w_dim, wd.shape[1]), (in_width, wd.shape[1])]

        wr, br = params["fc_rgb"]              # (w_dim // 2, 3)
        wr = jnp.pad(wr.astype(f32), ((0, 0), (0, _OUT_W - wr.shape[1])))
        weights += [w2(wr), b2(br, _OUT_W)]
        mms += [(wr.shape[0], _OUT_W)]
        transcendental_width = _OUT_W
    else:
        wo, bo = params["fc_out"]              # (w_dim, 4)
        wo = jnp.pad(wo.astype(f32), ((0, 0), (0, _OUT_W - wo.shape[1])))
        weights += [w2(wo), b2(bo, _OUT_W)]
        mms += [(w_dim, _OUT_W)]
        transcendental_width = 0

    w_bytes = sum(int(a.size) * a.dtype.itemsize for a in weights)
    w_max = max(128, max(int(a.shape[-1]) for a in weights))

    # --- row tiling: VMEM-budgeted and generation-aware ----------------------
    n8 = _round_up(max(n, 1), 8)
    tm = min(_round_up(block_rows, 8), n8)

    def vmem_est(tm_):
        inp = 2 * tm_ * in_width * comp_size       # double-buffered input
        outp = 2 * tm_ * _OUT_W * 4                # double-buffered output
        temps = 6 * tm_ * w_max * 4                # live f32 activations
        return inp + outp + 2 * w_bytes + temps

    budget = 40 << 20                              # safe on v5e/v6e/v7x
    while tm > 64 and vmem_est(tm) > budget:
        tm = max(64, _round_up(tm // 2, 8))

    num_tc = _num_tensorcores()
    if num_tc > 1 and n8 > 8:
        # Even grid-step count, >= 2 steps per TensorCore: keeps both v7x
        # cores busy and the input/output DMA pipeline primed.
        steps = max(2 * num_tc, _round_up(pl.cdiv(n8, tm), num_tc))
        tm = _round_up(pl.cdiv(n8, steps), 8)
        n_pad = tm * steps
    else:
        n_pad = _round_up(n8, tm)
    grid = (n_pad // tm,)

    flops = sum(2 * n_pad * k * m for k, m in mms)
    transcendentals = n_pad * transcendental_width

    # --- fused, padded [xyz | dirs] input slab --------------------------------
    buf = jnp.zeros((n_pad, in_width), f32)
    buf = buf.at[:n, :x_dim].set(xyz.astype(f32))
    if use_dirs:
        buf = buf.at[:n, xp:xp + d_dim].set(dirs.astype(f32))
    x_in = buf.astype(compute_dtype)

    all_inputs = [x_in] + weights

    out_spec = pl.BlockSpec((tm, _OUT_W), lambda i: (i, 0))
    out_shape = jax.ShapeDtypeStruct((n_pad, _OUT_W), f32)

    bytes_accessed = sum(int(a.size) * a.dtype.itemsize for a in all_inputs)
    bytes_accessed += n_pad * _OUT_W * 4

    kernel = functools.partial(
        _nerf_fused_kernel,
        num_layers=num_layers, skips=skips, use_dirs=use_dirs,
        compute_dtype=compute_dtype)

    vmem_limit = int(min(max(vmem_est(tm) * 3 // 2, 32 << 20), 64 << 20))

    def build(single_buffer_weights):
        in_specs = [pl.BlockSpec((tm, in_width), lambda i: (i, 0))]
        for a in weights:
            if single_buffer_weights:
                # Constant-index weight blocks: one resident VMEM copy.
                in_specs.append(pl.BlockSpec(a.shape, lambda i: (0, 0),
                                             pipeline_mode=pl.Buffered(1)))
            else:
                in_specs.append(pl.BlockSpec(a.shape, lambda i: (0, 0)))
        return pl.pallas_call(
            kernel,
            out_shape=out_shape,
            grid_spec=pltpu.PrefetchScalarGridSpec(
                num_scalar_prefetch=0,
                grid=grid,
                in_specs=in_specs,
                out_specs=out_spec,
            ),
            compiler_params=pltpu.CompilerParams(
                dimension_semantics=("parallel",),
                vmem_limit_bytes=vmem_limit),
            cost_estimate=pl.CostEstimate(
                flops=int(flops),
                transcendentals=int(transcendentals),
                bytes_accessed=int(bytes_accessed)),
        )

    try:
        out = build(single_buffer_weights=True)(*all_inputs)
    except Exception:
        # Single-buffered resident weights unsupported on this jax version /
        # config: fall back to default double buffering (correctness first).
        out = build(single_buffer_weights=False)(*all_inputs)

    rgb = out[:n, :3]
    if use_dirs:
        sigma = out[:n, 3:4]          # (N, 1) — matches torch fc_sigma output
    else:
        sigma = out[:n, 3]            # (N,)   — matches out[..., -1]
    return {"rgb": rgb, "sigma": sigma}


# ----------------------------------------------------------------------------
# Pure-JAX reference for verification.
# ----------------------------------------------------------------------------
def nerf_forward_ref(params, xyz, dirs):
    def lin(x, wb, act="none"):
        w, b = wb
        y = x @ w + b
        if act == "relu":
            return jnp.maximum(y, 0.0)
        if act == "sigmoid":
            return jax.nn.sigmoid(y)
        return y

    skips = params["skips"]
    out = xyz
    for idx in range(params["num_layers"]):
        out = lin(out, params[f"fc_{idx}"], "relu")
        if idx + 1 in skips:
            out = jnp.concatenate([out, xyz], axis=-1)
    if params["use_dirs"]:
        sigma = lin(out, params["fc_sigma"])
        feature = lin(out, params["fc_feat"])
        out = jnp.concatenate([feature, dirs], axis=-1)
        out = lin(out, params["fc_dirs"], "relu")
        rgb = lin(out, params["fc_rgb"], "sigmoid")
    else:
        out = lin(out, params["fc_out"])
        rgb, sigma = out[..., :3], out[..., -1]
    return {"rgb": rgb, "sigma": sigma}


if __name__ == "__main__":
    key = jax.random.PRNGKey(0)
    k_in, k_d, k_p1, k_p2 = jax.random.split(key, 4)

    # Small NeRF config; N deliberately NOT a multiple of the row tile (or
    # even of 8) to exercise the padded-tail path.
    N, x_dim, d_dim, w_dim, num_layers = 100, 3, 3, 32, 6
    xyz = jax.random.normal(k_in, (N, x_dim), jnp.float32)
    dirs = jax.random.normal(k_d, (N, d_dim), jnp.float32)

    ok = True
    for use_dirs, k_p in ((True, k_p1), (False, k_p2)):
        params = init_nerf_params(k_p, x_dim, d_dim, w_dim, num_layers,
                                  skips=(4,), use_dirs=use_dirs)
        ref = nerf_forward_ref(params, xyz, dirs)

        # Explicit f32 compute path: tight tolerance.
        out_f32 = nerf_forward(params, xyz, dirs, compute_dtype=jnp.float32)
        jax.block_until_ready(out_f32)
        ok &= out_f32["rgb"].shape == ref["rgb"].shape
        ok &= out_f32["sigma"].shape == ref["sigma"].shape
        ok &= bool(jnp.allclose(out_f32["rgb"], ref["rgb"],
                                atol=1e-5, rtol=1e-5))
        ok &= bool(jnp.allclose(out_f32["sigma"], ref["sigma"],
                                atol=1e-5, rtol=1e-5))

        # Default bf16 compute path (f32 accumulation + activations): loose.
        out_bf = nerf_forward(params, xyz, dirs)
        jax.block_until_ready(out_bf)
        ok &= out_bf["rgb"].shape == ref["rgb"].shape
        ok &= out_bf["sigma"].shape == ref["sigma"].shape
        ok &= bool(jnp.allclose(out_bf["rgb"], ref["rgb"],
                                atol=2e-1, rtol=1e-1))
        ok &= bool(jnp.allclose(out_bf["sigma"], ref["sigma"],
                                atol=3e-1, rtol=1e-1))

    print("KERNEL_OK" if ok else "MISMATCH")
</pallas_src>

<mosaic_0001>
module attributes {stable_mosaic.version = 11 : i64} {
  func.func @_nerf_fused_kernel(%arg0: i32, %arg1: memref<104x16xf32, #tpu.memory_space<vmem>>, %arg2: memref<16x32xf32, #tpu.memory_space<vmem>>, %arg3: memref<1x32xf32, #tpu.memory_space<vmem>>, %arg4: memref<32x32xf32, #tpu.memory_space<vmem>>, %arg5: memref<1x32xf32, #tpu.memory_space<vmem>>, %arg6: memref<32x32xf32, #tpu.memory_space<vmem>>, %arg7: memref<1x32xf32, #tpu.memory_space<vmem>>, %arg8: memref<32x32xf32, #tpu.memory_space<vmem>>, %arg9: memref<1x32xf32, #tpu.memory_space<vmem>>, %arg10: memref<32x32xf32, #tpu.memory_space<vmem>>, %arg11: memref<16x32xf32, #tpu.memory_space<vmem>>, %arg12: memref<1x32xf32, #tpu.memory_space<vmem>>, %arg13: memref<32x32xf32, #tpu.memory_space<vmem>>, %arg14: memref<1x32xf32, #tpu.memory_space<vmem>>, %arg15: memref<32x128xf32, #tpu.memory_space<vmem>>, %arg16: memref<1x128xf32, #tpu.memory_space<vmem>>, %arg17: memref<32x16xf32, #tpu.memory_space<vmem>>, %arg18: memref<16x16xf32, #tpu.memory_space<vmem>>, %arg19: memref<1x16xf32, #tpu.memory_space<vmem>>, %arg20: memref<16x8xf32, #tpu.memory_space<vmem>>, %arg21: memref<1x8xf32, #tpu.memory_space<vmem>>, %arg22: memref<104x8xf32, #tpu.memory_space<vmem>>) attributes {dimension_semantics = [#tpu.dimension_semantics<parallel>], iteration_bounds = array<i64: 1>, scalar_prefetch = 0 : i64, scratch_operands = 0 : i64, tpu.core_type = #tpu.core_type<tc>, window_params = [{transform_indices = @transform_0, window_bounds = array<i64: 104, 16>}, {pipeline_mode = #tpu.pipeline_mode<synchronous>, transform_indices = @transform_1, window_bounds = array<i64: 16, 32>}, {pipeline_mode = #tpu.pipeline_mode<synchronous>, transform_indices = @transform_2, window_bounds = array<i64: 1, 32>}, {pipeline_mode = #tpu.pipeline_mode<synchronous>, transform_indices = @transform_3, window_bounds = array<i64: 32, 32>}, {pipeline_mode = #tpu.pipeline_mode<synchronous>, transform_indices = @transform_4, window_bounds = array<i64: 1, 32>}, {pipeline_mode = #tpu.pipeline_mode<synchronous>, transform_indices = @transform_5, window_bounds = array<i64: 32, 32>}, {pipeline_mode = #tpu.pipeline_mode<synchronous>, transform_indices = @transform_6, window_bounds = array<i64: 1, 32>}, {pipeline_mode = #tpu.pipeline_mode<synchronous>, transform_indices = @transform_7, window_bounds = array<i64: 32, 32>}, {pipeline_mode = #tpu.pipeline_mode<synchronous>, transform_indices = @transform_8, window_bounds = array<i64: 1, 32>}, {pipeline_mode = #tpu.pipeline_mode<synchronous>, transform_indices = @transform_9, window_bounds = array<i64: 32, 32>}, {pipeline_mode = #tpu.pipeline_mode<synchronous>, transform_indices = @transform_10, window_bounds = array<i64: 16, 32>}, {pipeline_mode = #tpu.pipeline_mode<synchronous>, transform_indices = @transform_11, window_bounds = array<i64: 1, 32>}, {pipeline_mode = #tpu.pipeline_mode<synchronous>, transform_indices = @transform_12, window_bounds = array<i64: 32, 32>}, {pipeline_mode = #tpu.pipeline_mode<synchronous>, transform_indices = @transform_13, window_bounds = array<i64: 1, 32>}, {pipeline_mode = #tpu.pipeline_mode<synchronous>, transform_indices = @transform_14, window_bounds = array<i64: 32, 128>}, {pipeline_mode = #tpu.pipeline_mode<synchronous>, transform_indices = @transform_15, window_bounds = array<i64: 1, 128>}, {pipeline_mode = #tpu.pipeline_mode<synchronous>, transform_indices = @transform_16, window_bounds = array<i64: 32, 16>}, {pipeline_mode = #tpu.pipeline_mode<synchronous>, transform_indices = @transform_17, window_bounds = array<i64: 16, 16>}, {pipeline_mode = #tpu.pipeline_mode<synchronous>, transform_indices = @transform_18, window_bounds = array<i64: 1, 16>}, {pipeline_mode = #tpu.pipeline_mode<synchronous>, transform_indices = @transform_19, window_bounds = array<i64: 16, 8>}, {pipeline_mode = #tpu.pipeline_mode<synchronous>, transform_indices = @transform_20, window_bounds = array<i64: 1, 8>}, {transform_indices = @transform_21, window_bounds = array<i64: 104, 8>}]} {
    %c0 = arith.constant 0 : index
    %c0_0 = arith.constant 0 : index
    %0 = vector.load %arg1[%c0, %c0_0] : memref<104x16xf32, #tpu.memory_space<vmem>>, vector<104x16xf32>
    %c0_1 = arith.constant 0 : index
    %c0_2 = arith.constant 0 : index
    %1 = vector.load %arg2[%c0_1, %c0_2] : memref<16x32xf32, #tpu.memory_space<vmem>>, vector<16x32xf32>
    %c0_3 = arith.constant 0 : index
    %c0_4 = arith.constant 0 : index
    %2 = vector.load %arg3[%c0_3, %c0_4] : memref<1x32xf32, #tpu.memory_space<vmem>>, vector<1x32xf32>
    %cst = arith.constant dense<0.000000e+00> : vector<104x32xf32>
    %3 = tpu.matmul %0, %1, %cst {dimension_numbers = #tpu.dot_dimension_numbers<[1], [0], [0], [1], [0, 0, 1, 1], [], []>} : vector<104x16xf32>, vector<16x32xf32>, vector<104x32xf32> -> vector<104x32xf32>
    %4 = vector.broadcast %2 : vector<1x32xf32> to vector<104x32xf32>
    %5 = arith.addf %3, %4 : vector<104x32xf32>
    %cst_5 = arith.constant 0.000000e+00 : f32
    %6 = vector.broadcast %cst_5 : f32 to vector<104x32xf32>
    %7 = arith.maximumf %5, %6 : vector<104x32xf32>
    %c0_6 = arith.constant 0 : index
    %c0_7 = arith.constant 0 : index
    %8 = vector.load %arg4[%c0_6, %c0_7] : memref<32x32xf32, #tpu.memory_space<vmem>>, vector<32x32xf32>
    %c0_8 = arith.constant 0 : index
    %c0_9 = arith.constant 0 : index
    %9 = vector.load %arg5[%c0_8, %c0_9] : memref<1x32xf32, #tpu.memory_space<vmem>>, vector<1x32xf32>
    %cst_10 = arith.constant dense<0.000000e+00> : vector<104x32xf32>
    %10 = tpu.matmul %7, %8, %cst_10 {dimension_numbers = #tpu.dot_dimension_numbers<[1], [0], [0], [1], [0, 0, 1, 1], [], []>} : vector<104x32xf32>, vector<32x32xf32>, vector<104x32xf32> -> vector<104x32xf32>
    %11 = vector.broadcast %9 : vector<1x32xf32> to vector<104x32xf32>
    %12 = arith.addf %10, %11 : vector<104x32xf32>
    %cst_11 = arith.constant 0.000000e+00 : f32
    %13 = vector.broadcast %cst_11 : f32 to vector<104x32xf32>
    %14 = arith.maximumf %12, %13 : vector<104x32xf32>
    %c0_12 = arith.constant 0 : index
    %c0_13 = arith.constant 0 : index
    %15 = vector.load %arg6[%c0_12, %c0_13] : memref<32x32xf32, #tpu.memory_space<vmem>>, vector<32x32xf32>
    %c0_14 = arith.constant 0 : index
    %c0_15 = arith.constant 0 : index
    %16 = vector.load %arg7[%c0_14, %c0_15] : memref<1x32xf32, #tpu.memory_space<vmem>>, vector<1x32xf32>
    %cst_16 = arith.constant dense<0.000000e+00> : vector<104x32xf32>
    %17 = tpu.matmul %14, %15, %cst_16 {dimension_numbers = #tpu.dot_dimension_numbers<[1], [0], [0], [1], [0, 0, 1, 1], [], []>} : vector<104x32xf32>, vector<32x32xf32>, vector<104x32xf32> -> vector<104x32xf32>
    %18 = vector.broadcast %16 : vector<1x32xf32> to vector<104x32xf32>
    %19 = arith.addf %17, %18 : vector<104x32xf32>
    %cst_17 = arith.constant 0.000000e+00 : f32
    %20 = vector.broadcast %cst_17 : f32 to vector<104x32xf32>
    %21 = arith.maximumf %19, %20 : vector<104x32xf32>
    %c0_18 = arith.constant 0 : index
    %c0_19 = arith.constant 0 : index
    %22 = vector.load %arg8[%c0_18, %c0_19] : memref<32x32xf32, #tpu.memory_space<vmem>>, vector<32x32xf32>
    %c0_20 = arith.constant 0 : index
    %c0_21 = arith.constant 0 : index
    %23 = vector.load %arg9[%c0_20, %c0_21] : memref<1x32xf32, #tpu.memory_space<vmem>>, vector<1x32xf32>
    %cst_22 = arith.constant dense<0.000000e+00> : vector<104x32xf32>
    %24 = tpu.matmul %21, %22, %cst_22 {dimension_numbers = #tpu.dot_dimension_numbers<[1], [0], [0], [1], [0, 0, 1, 1], [], []>} : vector<104x32xf32>, vector<32x32xf32>, vector<104x32xf32> -> vector<104x32xf32>
    %25 = vector.broadcast %23 : vector<1x32xf32> to vector<104x32xf32>
    %26 = arith.addf %24, %25 : vector<104x32xf32>
    %cst_23 = arith.constant 0.000000e+00 : f32
    %27 = vector.broadcast %cst_23 : f32 to vector<104x32xf32>
    %28 = arith.maximumf %26, %27 : vector<104x32xf32>
    %c0_24 = arith.constant 0 : index
    %c0_25 = arith.constant 0 : index
    %29 = vector.load %arg10[%c0_24, %c0_25] : memref<32x32xf32, #tpu.memory_space<vmem>>, vector<32x32xf32>
    %c0_26 = arith.constant 0 : index
    %c0_27 = arith.constant 0 : index
    %30 = vector.load %arg11[%c0_26, %c0_27] : memref<16x32xf32, #tpu.memory_space<vmem>>, vector<16x32xf32>
    %c0_28 = arith.constant 0 : index
    %c0_29 = arith.constant 0 : index
    %31 = vector.load %arg12[%c0_28, %c0_29] : memref<1x32xf32, #tpu.memory_space<vmem>>, vector<1x32xf32>
    %cst_30 = arith.constant dense<0.000000e+00> : vector<104x32xf32>
    %32 = tpu.matmul %28, %29, %cst_30 {dimension_numbers = #tpu.dot_dimension_numbers<[1], [0], [0], [1], [0, 0, 1, 1], [], []>} : vector<104x32xf32>, vector<32x32xf32>, vector<104x32xf32> -> vector<104x32xf32>
    %cst_31 = arith.constant dense<0.000000e+00> : vector<104x32xf32>
    %33 = tpu.matmul %0, %30, %cst_31 {dimension_numbers = #tpu.dot_dimension_numbers<[1], [0], [0], [1], [0, 0, 1, 1], [], []>} : vector<104x16xf32>, vector<16x32xf32>, vector<104x32xf32> -> vector<104x32xf32>
    %34 = arith.addf %32, %33 : vector<104x32xf32>
    %35 = vector.broadcast %31 : vector<1x32xf32> to vector<104x32xf32>
    %36 = arith.addf %34, %35 : vector<104x32xf32>
    %cst_32 = arith.constant 0.000000e+00 : f32
    %37 = vector.broadcast %cst_32 : f32 to vector<104x32xf32>
    %38 = arith.maximumf %36, %37 : vector<104x32xf32>
    %c0_33 = arith.constant 0 : index
    %c0_34 = arith.constant 0 : index
    %39 = vector.load %arg13[%c0_33, %c0_34] : memref<32x32xf32, #tpu.memory_space<vmem>>, vector<32x32xf32>
    %c0_35 = arith.constant 0 : index
    %c0_36 = arith.constant 0 : index
    %40 = vector.load %arg14[%c0_35, %c0_36] : memref<1x32xf32, #tpu.memory_space<vmem>>, vector<1x32xf32>
    %cst_37 = arith.constant dense<0.000000e+00> : vector<104x32xf32>
    %41 = tpu.matmul %38, %39, %cst_37 {dimension_numbers = #tpu.dot_dimension_numbers<[1], [0], [0], [1], [0, 0, 1, 1], [], []>} : vector<104x32xf32>, vector<32x32xf32>, vector<104x32xf32> -> vector<104x32xf32>
    %42 = vector.broadcast %40 : vector<1x32xf32> to vector<104x32xf32>
    %43 = arith.addf %41, %42 : vector<104x32xf32>
    %cst_38 = arith.constant 0.000000e+00 : f32
    %44 = vector.broadcast %cst_38 : f32 to vector<104x32xf32>
    %45 = arith.maximumf %43, %44 : vector<104x32xf32>
    %c0_39 = arith.constant 0 : index
    %c0_40 = arith.constant 0 : index
    %46 = vector.load %arg15[%c0_39, %c0_40] : memref<32x128xf32, #tpu.memory_space<vmem>>, vector<32x128xf32>
    %c0_41 = arith.constant 0 : index
    %c0_42 = arith.constant 0 : index
    %47 = vector.load %arg16[%c0_41, %c0_42] : memref<1x128xf32, #tpu.memory_space<vmem>>, vector<1x128xf32>
    %cst_43 = arith.constant dense<0.000000e+00> : vector<104x128xf32>
    %48 = tpu.matmul %45, %46, %cst_43 {dimension_numbers = #tpu.dot_dimension_numbers<[1], [0], [0], [1], [0, 0, 1, 1], [], []>} : vector<104x32xf32>, vector<32x128xf32>, vector<104x128xf32> -> vector<104x128xf32>
    %49 = vector.broadcast %47 : vector<1x128xf32> to vector<104x128xf32>
    %50 = arith.addf %48, %49 : vector<104x128xf32>
    %51 = vector.extract_strided_slice %50 {offsets = [0, 0], sizes = [104, 32], strides = [1, 1]} : vector<104x128xf32> to vector<104x32xf32>
    %52 = vector.extract_strided_slice %50 {offsets = [0, 32], sizes = [104, 1], strides = [1, 1]} : vector<104x128xf32> to vector<104x1xf32>
    %c0_44 = arith.constant 0 : index
    %c0_45 = arith.constant 0 : index
    %53 = vector.load %arg17[%c0_44, %c0_45] : memref<32x16xf32, #tpu.memory_space<vmem>>, vector<32x16xf32>
    %c0_46 = arith.constant 0 : index
    %c0_47 = arith.constant 0 : index
    %54 = vector.load %arg18[%c0_46, %c0_47] : memref<16x16xf32, #tpu.memory_space<vmem>>, vector<16x16xf32>
    %c0_48 = arith.constant 0 : index
    %c0_49 = arith.constant 0 : index
    %55 = vector.load %arg19[%c0_48, %c0_49] : memref<1x16xf32, #tpu.memory_space<vmem>>, vector<1x16xf32>
    %cst_50 = arith.constant dense<0.000000e+00> : vector<104x16xf32>
    %56 = tpu.matmul %51, %53, %cst_50 {dimension_numbers = #tpu.dot_dimension_numbers<[1], [0], [0], [1], [0, 0, 1, 1], [], []>} : vector<104x32xf32>, vector<32x16xf32>, vector<104x16xf32> -> vector<104x16xf32>
    %cst_51 = arith.constant dense<0.000000e+00> : vector<104x16xf32>
    %57 = tpu.matmul %0, %54, %cst_51 {dimension_numbers = #tpu.dot_dimension_numbers<[1], [0], [0], [1], [0, 0, 1, 1], [], []>} : vector<104x16xf32>, vector<16x16xf32>, vector<104x16xf32> -> vector<104x16xf32>
    %58 = arith.addf %56, %57 : vector<104x16xf32>
    %59 = vector.broadcast %55 : vector<1x16xf32> to vector<104x16xf32>
    %60 = arith.addf %58, %59 : vector<104x16xf32>
    %cst_52 = arith.constant 0.000000e+00 : f32
    %61 = vector.broadcast %cst_52 : f32 to vector<104x16xf32>
    %62 = arith.maximumf %60, %61 : vector<104x16xf32>
    %c0_53 = arith.constant 0 : index
    %c0_54 = arith.constant 0 : index
    %63 = vector.load %arg20[%c0_53, %c0_54] : memref<16x8xf32, #tpu.memory_space<vmem>>, vector<16x8xf32>
    %c0_55 = arith.constant 0 : index
    %c0_56 = arith.constant 0 : index
    %64 = vector.load %arg21[%c0_55, %c0_56] : memref<1x8xf32, #tpu.memory_space<vmem>>, vector<1x8xf32>
    %cst_57 = arith.constant dense<0.000000e+00> : vector<104x8xf32>
    %65 = tpu.matmul %62, %63, %cst_57 {dimension_numbers = #tpu.dot_dimension_numbers<[1], [0], [0], [1], [0, 0, 1, 1], [], []>} : vector<104x16xf32>, vector<16x8xf32>, vector<104x8xf32> -> vector<104x8xf32>
    %66 = vector.broadcast %64 : vector<1x8xf32> to vector<104x8xf32>
    %67 = arith.addf %65, %66 : vector<104x8xf32>
    %68 = arith.negf %67 : vector<104x8xf32>
    %69 = math.exp %68 : vector<104x8xf32>
    %cst_58 = arith.constant 1.000000e+00 : f32
    %70 = vector.broadcast %cst_58 : f32 to vector<104x8xf32>
    %71 = arith.addf %70, %69 : vector<104x8xf32>
    %72 = arith.divf %70, %71 : vector<104x8xf32>
    %73 = tpu.iota {dimensions = array<i32: 1>} : vector<104x8xi32>
    %c3_i32 = arith.constant 3 : i32
    %74 = vector.broadcast %c3_i32 : i32 to vector<104x8xi32>
    %75 = arith.cmpi eq, %73, %74 : vector<104x8xi32>
    %76 = vector.shape_cast %52 : vector<104x1xf32> to vector<104x1xf32>
    %77 = vector.broadcast %76 : vector<104x1xf32> to vector<104x8xf32>
    %78 = arith.select %75, %77, %72 : vector<104x8xi1>, vector<104x8xf32>
    %c0_59 = arith.constant 0 : index
    %c0_60 = arith.constant 0 : index
    %79 = vector.load %arg22[%c0_59, %c0_60] : memref<104x8xf32, #tpu.memory_space<vmem>>, vector<104x8xf32>
    tpu.vector_store %arg22[%c0_59, %c0_60], %78 {strides = array<i32>} : memref<104x8xf32, #tpu.memory_space<vmem>>, vector<104x8xf32>,
    return
  }
  func.func @transform_0(%arg0: i32) -> (i32, i32) {
    %c0_i32 = arith.constant 0 : i32
    %c0_i32_0 = arith.constant 0 : i32
    return %arg0, %c0_i32 : i32, i32
  }
  func.func @transform_1(%arg0: i32) -> (i32, i32) {
    %c0_i32 = arith.constant 0 : i32
    %c0_i32_0 = arith.constant 0 : i32
    %c0_i32_1 = arith.constant 0 : i32
    return %c0_i32, %c0_i32_0 : i32, i32
  }
  func.func @transform_2(%arg0: i32) -> (i32, i32) {
    %c0_i32 = arith.constant 0 : i32
    %c0_i32_0 = arith.constant 0 : i32
    %c0_i32_1 = arith.constant 0 : i32
    return %c0_i32, %c0_i32_0 : i32, i32
  }
  func.func @transform_3(%arg0: i32) -> (i32, i32) {
    %c0_i32 = arith.constant 0 : i32
    %c0_i32_0 = arith.constant 0 : i32
    %c0_i32_1 = arith.constant 0 : i32
    return %c0_i32, %c0_i32_0 : i32, i32
  }
  func.func @transform_4(%arg0: i32) -> (i32, i32) {
    %c0_i32 = arith.constant 0 : i32
    %c0_i32_0 = arith.constant 0 : i32
    %c0_i32_1 = arith.constant 0 : i32
    return %c0_i32, %c0_i32_0 : i32, i32
  }
  func.func @transform_5(%arg0: i32) -> (i32, i32) {
    %c0_i32 = arith.constant 0 : i32
    %c0_i32_0 = arith.constant 0 : i32
    %c0_i32_1 = arith.constant 0 : i32
    return %c0_i32, %c0_i32_0 : i32, i32
  }
  func.func @transform_6(%arg0: i32) -> (i32, i32) {
    %c0_i32 = arith.constant 0 : i32
    %c0_i32_0 = arith.constant 0 : i32
    %c0_i32_1 = arith.constant 0 : i32
    return %c0_i32, %c0_i32_0 : i32, i32
  }
  func.func @transform_7(%arg0: i32) -> (i32, i32) {
    %c0_i32 = arith.constant 0 : i32
    %c0_i32_0 = arith.constant 0 : i32
    %c0_i32_1 = arith.constant 0 : i32
    return %c0_i32, %c0_i32_0 : i32, i32
  }
  func.func @transform_8(%arg0: i32) -> (i32, i32) {
    %c0_i32 = arith.constant 0 : i32
    %c0_i32_0 = arith.constant 0 : i32
    %c0_i32_1 = arith.constant 0 : i32
    return %c0_i32, %c0_i32_0 : i32, i32
  }
  func.func @transform_9(%arg0: i32) -> (i32, i32) {
    %c0_i32 = arith.constant 0 : i32
    %c0_i32_0 = arith.constant 0 : i32
    %c0_i32_1 = arith.constant 0 : i32
    return %c0_i32, %c0_i32_0 : i32, i32
  }
  func.func @transform_10(%arg0: i32) -> (i32, i32) {
    %c0_i32 = arith.constant 0 : i32
    %c0_i32_0 = arith.constant 0 : i32
    %c0_i32_1 = arith.constant 0 : i32
    return %c0_i32, %c0_i32_0 : i32, i32
  }
  func.func @transform_11(%arg0: i32) -> (i32, i32) {
    %c0_i32 = arith.constant 0 : i32
    %c0_i32_0 = arith.constant 0 : i32
    %c0_i32_1 = arith.constant 0 : i32
    return %c0_i32, %c0_i32_0 : i32, i32
  }
  func.func @transform_12(%arg0: i32) -> (i32, i32) {
    %c0_i32 = arith.constant 0 : i32
    %c0_i32_0 = arith.constant 0 : i32
    %c0_i32_1 = arith.constant 0 : i32
    return %c0_i32, %c0_i32_0 : i32, i32
  }
  func.func @transform_13(%arg0: i32) -> (i32, i32) {
    %c0_i32 = arith.constant 0 : i32
    %c0_i32_0 = arith.constant 0 : i32
    %c0_i32_1 = arith.constant 0 : i32
    return %c0_i32, %c0_i32_0 : i32, i32
  }
  func.func @transform_14(%arg0: i32) -> (i32, i32) {
    %c0_i32 = arith.constant 0 : i32
    %c0_i32_0 = arith.constant 0 : i32
    %c0_i32_1 = arith.constant 0 : i32
    return %c0_i32, %c0_i32_0 : i32, i32
  }
  func.func @transform_15(%arg0: i32) -> (i32, i32) {
    %c0_i32 = arith.constant 0 : i32
    %c0_i32_0 = arith.constant 0 : i32
    %c0_i32_1 = arith.constant 0 : i32
    return %c0_i32, %c0_i32_0 : i32, i32
  }
  func.func @transform_16(%arg0: i32) -> (i32, i32) {
    %c0_i32 = arith.constant 0 : i32
    %c0_i32_0 = arith.constant 0 : i32
    %c0_i32_1 = arith.constant 0 : i32
    return %c0_i32, %c0_i32_0 : i32, i32
  }
  func.func @transform_17(%arg0: i32) -> (i32, i32) {
    %c0_i32 = arith.constant 0 : i32
    %c0_i32_0 = arith.constant 0 : i32
    %c0_i32_1 = arith.constant 0 : i32
    return %c0_i32, %c0_i32_0 : i32, i32
  }
  func.func @transform_18(%arg0: i32) -> (i32, i32) {
    %c0_i32 = arith.constant 0 : i32
    %c0_i32_0 = arith.constant 0 : i32
    %c0_i32_1 = arith.constant 0 : i32
    return %c0_i32, %c0_i32_0 : i32, i32
  }
  func.func @transform_19(%arg0: i32) -> (i32, i32) {
    %c0_i32 = arith.constant 0 : i32
    %c0_i32_0 = arith.constant 0 : i32
    %c0_i32_1 = arith.constant 0 : i32
    return %c0_i32, %c0_i32_0 : i32, i32
  }
  func.func @transform_20(%arg0: i32) -> (i32, i32) {
    %c0_i32 = arith.constant 0 : i32
    %c0_i32_0 = arith.constant 0 : i32
    %c0_i32_1 = arith.constant 0 : i32
    return %c0_i32, %c0_i32_0 : i32, i32
  }
  func.func @transform_21(%arg0: i32) -> (i32, i32) {
    %c0_i32 = arith.constant 0 : i32
    %c0_i32_0 = arith.constant 0 : i32
    return %arg0, %c0_i32 : i32, i32
  }
}

module attributes {stable_mosaic.version = 11 : i64} {
  func.func @_nerf_fused_kernel(%arg0: i32, %arg1: memref<104x16xf32, #tpu.memory_space<vmem>>, %arg2: memref<16x32xf32, #tpu.memory_space<vmem>>, %arg3: memref<1x32xf32, #tpu.memory_space<vmem>>, %arg4: memref<32x32xf32, #tpu.memory_space<vmem>>, %arg5: memref<1x32xf32, #tpu.memory_space<vmem>>, %arg6: memref<32x32xf32, #tpu.memory_space<vmem>>, %arg7: memref<1x32xf32, #tpu.memory_space<vmem>>, %arg8: memref<32x32xf32, #tpu.memory_space<vmem>>, %arg9: memref<1x32xf32, #tpu.memory_space<vmem>>, %arg10: memref<32x32xf32, #tpu.memory_space<vmem>>, %arg11: memref<16x32xf32, #tpu.memory_space<vmem>>, %arg12: memref<1x32xf32, #tpu.memory_space<vmem>>, %arg13: memref<32x32xf32, #tpu.memory_space<vmem>>, %arg14: memref<1x32xf32, #tpu.memory_space<vmem>>, %arg15: memref<32x128xf32, #tpu.memory_space<vmem>>, %arg16: memref<1x128xf32, #tpu.memory_space<vmem>>, %arg17: memref<32x16xf32, #tpu.memory_space<vmem>>, %arg18: memref<16x16xf32, #tpu.memory_space<vmem>>, %arg19: memref<1x16xf32, #tpu.memory_space<vmem>>, %arg20: memref<16x8xf32, #tpu.memory_space<vmem>>, %arg21: memref<1x8xf32, #tpu.memory_space<vmem>>, %arg22: memref<104x8xf32, #tpu.memory_space<vmem>>) attributes {dimension_semantics = [#tpu.dimension_semantics<parallel>], iteration_bounds = array<i64: 1>, scalar_prefetch = 0 : i64, scratch_operands = 0 : i64, tpu.core_type = #tpu.core_type<tc>, window_params = [{transform_indices = @transform_0, window_bounds = array<i64: 104, 16>}, {pipeline_mode = #tpu.pipeline_mode<synchronous>, transform_indices = @transform_1, window_bounds = array<i64: 16, 32>}, {pipeline_mode = #tpu.pipeline_mode<synchronous>, transform_indices = @transform_2, window_bounds = array<i64: 1, 32>}, {pipeline_mode = #tpu.pipeline_mode<synchronous>, transform_indices = @transform_3, window_bounds = array<i64: 32, 32>}, {pipeline_mode = #tpu.pipeline_mode<synchronous>, transform_indices = @transform_4, window_bounds = array<i64: 1, 32>}, {pipeline_mode = #tpu.pipeline_mode<synchronous>, transform_indices = @transform_5, window_bounds = array<i64: 32, 32>}, {pipeline_mode = #tpu.pipeline_mode<synchronous>, transform_indices = @transform_6, window_bounds = array<i64: 1, 32>}, {pipeline_mode = #tpu.pipeline_mode<synchronous>, transform_indices = @transform_7, window_bounds = array<i64: 32, 32>}, {pipeline_mode = #tpu.pipeline_mode<synchronous>, transform_indices = @transform_8, window_bounds = array<i64: 1, 32>}, {pipeline_mode = #tpu.pipeline_mode<synchronous>, transform_indices = @transform_9, window_bounds = array<i64: 32, 32>}, {pipeline_mode = #tpu.pipeline_mode<synchronous>, transform_indices = @transform_10, window_bounds = array<i64: 16, 32>}, {pipeline_mode = #tpu.pipeline_mode<synchronous>, transform_indices = @transform_11, window_bounds = array<i64: 1, 32>}, {pipeline_mode = #tpu.pipeline_mode<synchronous>, transform_indices = @transform_12, window_bounds = array<i64: 32, 32>}, {pipeline_mode = #tpu.pipeline_mode<synchronous>, transform_indices = @transform_13, window_bounds = array<i64: 1, 32>}, {pipeline_mode = #tpu.pipeline_mode<synchronous>, transform_indices = @transform_14, window_bounds = array<i64: 32, 128>}, {pipeline_mode = #tpu.pipeline_mode<synchronous>, transform_indices = @transform_15, window_bounds = array<i64: 1, 128>}, {pipeline_mode = #tpu.pipeline_mode<synchronous>, transform_indices = @transform_16, window_bounds = array<i64: 32, 16>}, {pipeline_mode = #tpu.pipeline_mode<synchronous>, transform_indices = @transform_17, window_bounds = array<i64: 16, 16>}, {pipeline_mode = #tpu.pipeline_mode<synchronous>, transform_indices = @transform_18, window_bounds = array<i64: 1, 16>}, {pipeline_mode = #tpu.pipeline_mode<synchronous>, transform_indices = @transform_19, window_bounds = array<i64: 16, 8>}, {pipeline_mode = #tpu.pipeline_mode<synchronous>, transform_indices = @transform_20, window_bounds = array<i64: 1, 8>}, {transform_indices = @transform_21, window_bounds = array<i64: 104, 8>}]} {
    %c0 = arith.constant 0 : index
    %c0_0 = arith.constant 0 : index
    %0 = vector.load %arg1[%c0, %c0_0] : memref<104x16xf32, #tpu.memory_space<vmem>>, vector<104x16xf32>
    %c0_1 = arith.constant 0 : index
    %c0_2 = arith.constant 0 : index
    %1 = vector.load %arg2[%c0_1, %c0_2] : memref<16x32xf32, #tpu.memory_space<vmem>>, vector<16x32xf32>
    %c0_3 = arith.constant 0 : index
    %c0_4 = arith.constant 0 : index
    %2 = vector.load %arg3[%c0_3, %c0_4] : memref<1x32xf32, #tpu.memory_space<vmem>>, vector<1x32xf32>
    %cst = arith.constant dense<0.000000e+00> : vector<104x32xf32>
    %3 = tpu.matmul %0, %1, %cst {dimension_numbers = #tpu.dot_dimension_numbers<[1], [0], [0], [1], [0, 0, 1, 1], [], []>} : vector<104x16xf32>, vector<16x32xf32>, vector<104x32xf32> -> vector<104x32xf32>
    %4 = vector.broadcast %2 : vector<1x32xf32> to vector<104x32xf32>
    %5 = arith.addf %3, %4 : vector<104x32xf32>
    %cst_5 = arith.constant 0.000000e+00 : f32
    %6 = vector.broadcast %cst_5 : f32 to vector<104x32xf32>
    %7 = arith.maximumf %5, %6 : vector<104x32xf32>
    %c0_6 = arith.constant 0 : index
    %c0_7 = arith.constant 0 : index
    %8 = vector.load %arg4[%c0_6, %c0_7] : memref<32x32xf32, #tpu.memory_space<vmem>>, vector<32x32xf32>
    %c0_8 = arith.constant 0 : index
    %c0_9 = arith.constant 0 : index
    %9 = vector.load %arg5[%c0_8, %c0_9] : memref<1x32xf32, #tpu.memory_space<vmem>>, vector<1x32xf32>
    %cst_10 = arith.constant dense<0.000000e+00> : vector<104x32xf32>
    %10 = tpu.matmul %7, %8, %cst_10 {dimension_numbers = #tpu.dot_dimension_numbers<[1], [0], [0], [1], [0, 0, 1, 1], [], []>} : vector<104x32xf32>, vector<32x32xf32>, vector<104x32xf32> -> vector<104x32xf32>
    %11 = vector.broadcast %9 : vector<1x32xf32> to vector<104x32xf32>
    %12 = arith.addf %10, %11 : vector<104x32xf32>
    %cst_11 = arith.constant 0.000000e+00 : f32
    %13 = vector.broadcast %cst_11 : f32 to vector<104x32xf32>
    %14 = arith.maximumf %12, %13 : vector<104x32xf32>
    %c0_12 = arith.constant 0 : index
    %c0_13 = arith.constant 0 : index
    %15 = vector.load %arg6[%c0_12, %c0_13] : memref<32x32xf32, #tpu.memory_space<vmem>>, vector<32x32xf32>
    %c0_14 = arith.constant 0 : index
    %c0_15 = arith.constant 0 : index
    %16 = vector.load %arg7[%c0_14, %c0_15] : memref<1x32xf32, #tpu.memory_space<vmem>>, vector<1x32xf32>
    %cst_16 = arith.constant dense<0.000000e+00> : vector<104x32xf32>
    %17 = tpu.matmul %14, %15, %cst_16 {dimension_numbers = #tpu.dot_dimension_numbers<[1], [0], [0], [1], [0, 0, 1, 1], [], []>} : vector<104x32xf32>, vector<32x32xf32>, vector<104x32xf32> -> vector<104x32xf32>
    %18 = vector.broadcast %16 : vector<1x32xf32> to vector<104x32xf32>
    %19 = arith.addf %17, %18 : vector<104x32xf32>
    %cst_17 = arith.constant 0.000000e+00 : f32
    %20 = vector.broadcast %cst_17 : f32 to vector<104x32xf32>
    %21 = arith.maximumf %19, %20 : vector<104x32xf32>
    %c0_18 = arith.constant 0 : index
    %c0_19 = arith.constant 0 : index
    %22 = vector.load %arg8[%c0_18, %c0_19] : memref<32x32xf32, #tpu.memory_space<vmem>>, vector<32x32xf32>
    %c0_20 = arith.constant 0 : index
    %c0_21 = arith.constant 0 : index
    %23 = vector.load %arg9[%c0_20, %c0_21] : memref<1x32xf32, #tpu.memory_space<vmem>>, vector<1x32xf32>
    %cst_22 = arith.constant dense<0.000000e+00> : vector<104x32xf32>
    %24 = tpu.matmul %21, %22, %cst_22 {dimension_numbers = #tpu.dot_dimension_numbers<[1], [0], [0], [1], [0, 0, 1, 1], [], []>} : vector<104x32xf32>, vector<32x32xf32>, vector<104x32xf32> -> vector<104x32xf32>
    %25 = vector.broadcast %23 : vector<1x32xf32> to vector<104x32xf32>
    %26 = arith.addf %24, %25 : vector<104x32xf32>
    %cst_23 = arith.constant 0.000000e+00 : f32
    %27 = vector.broadcast %cst_23 : f32 to vector<104x32xf32>
    %28 = arith.maximumf %26, %27 : vector<104x32xf32>
    %c0_24 = arith.constant 0 : index
    %c0_25 = arith.constant 0 : index
    %29 = vector.load %arg10[%c0_24, %c0_25] : memref<32x32xf32, #tpu.memory_space<vmem>>, vector<32x32xf32>
    %c0_26 = arith.constant 0 : index
    %c0_27 = arith.constant 0 : index
    %30 = vector.load %arg11[%c0_26, %c0_27] : memref<16x32xf32, #tpu.memory_space<vmem>>, vector<16x32xf32>
    %c0_28 = arith.constant 0 : index
    %c0_29 = arith.constant 0 : index
    %31 = vector.load %arg12[%c0_28, %c0_29] : memref<1x32xf32, #tpu.memory_space<vmem>>, vector<1x32xf32>
    %cst_30 = arith.constant dense<0.000000e+00> : vector<104x32xf32>
    %32 = tpu.matmul %28, %29, %cst_30 {dimension_numbers = #tpu.dot_dimension_numbers<[1], [0], [0], [1], [0, 0, 1, 1], [], []>} : vector<104x32xf32>, vector<32x32xf32>, vector<104x32xf32> -> vector<104x32xf32>
    %cst_31 = arith.constant dense<0.000000e+00> : vector<104x32xf32>
    %33 = tpu.matmul %0, %30, %cst_31 {dimension_numbers = #tpu.dot_dimension_numbers<[1], [0], [0], [1], [0, 0, 1, 1], [], []>} : vector<104x16xf32>, vector<16x32xf32>, vector<104x32xf32> -> vector<104x32xf32>
    %34 = arith.addf %32, %33 : vector<104x32xf32>
    %35 = vector.broadcast %31 : vector<1x32xf32> to vector<104x32xf32>
    %36 = arith.addf %34, %35 : vector<104x32xf32>
    %cst_32 = arith.constant 0.000000e+00 : f32
    %37 = vector.broadcast %cst_32 : f32 to vector<104x32xf32>
    %38 = arith.maximumf %36, %37 : vector<104x32xf32>
    %c0_33 = arith.constant 0 : index
    %c0_34 = arith.constant 0 : index
    %39 = vector.load %arg13[%c0_33, %c0_34] : memref<32x32xf32, #tpu.memory_space<vmem>>, vector<32x32xf32>
    %c0_35 = arith.constant 0 : index
    %c0_36 = arith.constant 0 : index
    %40 = vector.load %arg14[%c0_35, %c0_36] : memref<1x32xf32, #tpu.memory_space<vmem>>, vector<1x32xf32>
    %cst_37 = arith.constant dense<0.000000e+00> : vector<104x32xf32>
    %41 = tpu.matmul %38, %39, %cst_37 {dimension_numbers = #tpu.dot_dimension_numbers<[1], [0], [0], [1], [0, 0, 1, 1], [], []>} : vector<104x32xf32>, vector<32x32xf32>, vector<104x32xf32> -> vector<104x32xf32>
    %42 = vector.broadcast %40 : vector<1x32xf32> to vector<104x32xf32>
    %43 = arith.addf %41, %42 : vector<104x32xf32>
    %cst_38 = arith.constant 0.000000e+00 : f32
    %44 = vector.broadcast %cst_38 : f32 to vector<104x32xf32>
    %45 = arith.maximumf %43, %44 : vector<104x32xf32>
    %c0_39 = arith.constant 0 : index
    %c0_40 = arith.constant 0 : index
    %46 = vector.load %arg15[%c0_39, %c0_40] : memref<32x128xf32, #tpu.memory_space<vmem>>, vector<32x128xf32>
    %c0_41 = arith.constant 0 : index
    %c0_42 = arith.constant 0 : index
    %47 = vector.load %arg16[%c0_41, %c0_42] : memref<1x128xf32, #tpu.memory_space<vmem>>, vector<1x128xf32>
    %cst_43 = arith.constant dense<0.000000e+00> : vector<104x128xf32>
    %48 = tpu.matmul %45, %46, %cst_43 {dimension_numbers = #tpu.dot_dimension_numbers<[1], [0], [0], [1], [0, 0, 1, 1], [], []>} : vector<104x32xf32>, vector<32x128xf32>, vector<104x128xf32> -> vector<104x128xf32>
    %49 = vector.broadcast %47 : vector<1x128xf32> to vector<104x128xf32>
    %50 = arith.addf %48, %49 : vector<104x128xf32>
    %51 = vector.extract_strided_slice %50 {offsets = [0, 0], sizes = [104, 32], strides = [1, 1]} : vector<104x128xf32> to vector<104x32xf32>
    %52 = vector.extract_strided_slice %50 {offsets = [0, 32], sizes = [104, 1], strides = [1, 1]} : vector<104x128xf32> to vector<104x1xf32>
    %c0_44 = arith.constant 0 : index
    %c0_45 = arith.constant 0 : index
    %53 = vector.load %arg17[%c0_44, %c0_45] : memref<32x16xf32, #tpu.memory_space<vmem>>, vector<32x16xf32>
    %c0_46 = arith.constant 0 : index
    %c0_47 = arith.constant 0 : index
    %54 = vector.load %arg18[%c0_46, %c0_47] : memref<16x16xf32, #tpu.memory_space<vmem>>, vector<16x16xf32>
    %c0_48 = arith.constant 0 : index
    %c0_49 = arith.constant 0 : index
    %55 = vector.load %arg19[%c0_48, %c0_49] : memref<1x16xf32, #tpu.memory_space<vmem>>, vector<1x16xf32>
    %cst_50 = arith.constant dense<0.000000e+00> : vector<104x16xf32>
    %56 = tpu.matmul %51, %53, %cst_50 {dimension_numbers = #tpu.dot_dimension_numbers<[1], [0], [0], [1], [0, 0, 1, 1], [], []>} : vector<104x32xf32>, vector<32x16xf32>, vector<104x16xf32> -> vector<104x16xf32>
    %cst_51 = arith.constant dense<0.000000e+00> : vector<104x16xf32>
    %57 = tpu.matmul %0, %54, %cst_51 {dimension_numbers = #tpu.dot_dimension_numbers<[1], [0], [0], [1], [0, 0, 1, 1], [], []>} : vector<104x16xf32>, vector<16x16xf32>, vector<104x16xf32> -> vector<104x16xf32>
    %58 = arith.addf %56, %57 : vector<104x16xf32>
    %59 = vector.broadcast %55 : vector<1x16xf32> to vector<104x16xf32>
    %60 = arith.addf %58, %59 : vector<104x16xf32>
    %cst_52 = arith.constant 0.000000e+00 : f32
    %61 = vector.broadcast %cst_52 : f32 to vector<104x16xf32>
    %62 = arith.maximumf %60, %61 : vector<104x16xf32>
    %c0_53 = arith.constant 0 : index
    %c0_54 = arith.constant 0 : index
    %63 = vector.load %arg20[%c0_53, %c0_54] : memref<16x8xf32, #tpu.memory_space<vmem>>, vector<16x8xf32>
    %c0_55 = arith.constant 0 : index
    %c0_56 = arith.constant 0 : index
    %64 = vector.load %arg21[%c0_55, %c0_56] : memref<1x8xf32, #tpu.memory_space<vmem>>, vector<1x8xf32>
    %cst_57 = arith.constant dense<0.000000e+00> : vector<104x8xf32>
    %65 = tpu.matmul %62, %63, %cst_57 {dimension_numbers = #tpu.dot_dimension_numbers<[1], [0], [0], [1], [0, 0, 1, 1], [], []>} : vector<104x16xf32>, vector<16x8xf32>, vector<104x8xf32> -> vector<104x8xf32>
    %66 = vector.broadcast %64 : vector<1x8xf32> to vector<104x8xf32>
    %67 = arith.addf %65, %66 : vector<104x8xf32>
    %68 = arith.negf %67 : vector<104x8xf32>
    %69 = math.exp %68 : vector<104x8xf32>
    %cst_58 = arith.constant 1.000000e+00 : f32
    %70 = vector.broadcast %cst_58 : f32 to vector<104x8xf32>
    %71 = arith.addf %70, %69 : vector<104x8xf32>
    %72 = arith.divf %70, %71 : vector<104x8xf32>
    %73 = tpu.iota {dimensions = array<i32: 1>} : vector<104x8xi32>
    %c3_i32 = arith.constant 3 : i32
    %74 = vector.broadcast %c3_i32 : i32 to vector<104x8xi32>
    %75 = arith.cmpi eq, %73, %74 : vector<104x8xi32>
    %76 = vector.shape_cast %52 : vector<104x1xf32> to vector<104x1xf32>
    %77 = vector.broadcast %76 : vector<104x1xf32> to vector<104x8xf32>
    %78 = arith.select %75, %77, %72 : vector<104x8xi1>, vector<104x8xf32>
    %c0_59 = arith.constant 0 : index
    %c0_60 = arith.constant 0 : index
    %79 = vector.load %arg22[%c0_59, %c0_60] : memref<104x8xf32, #tpu.memory_space<vmem>>, vector<104x8xf32>
    tpu.vector_store %arg22[%c0_59, %c0_60], %78 {strides = array<i32>} : memref<104x8xf32, #tpu.memory_space<vmem>>, vector<104x8xf32>,
    return
  }
  func.func @transform_0(%arg0: i32) -> (i32, i32) {
    %c0_i32 = arith.constant 0 : i32
    %c0_i32_0 = arith.constant 0 : i32
    return %arg0, %c0_i32 : i32, i32
  }
  func.func @transform_1(%arg0: i32) -> (i32, i32) {
    %c0_i32 = arith.constant 0 : i32
    %c0_i32_0 = arith.constant 0 : i32
    %c0_i32_1 = arith.constant 0 : i32
    return %c0_i32, %c0_i32_0 : i32, i32
  }
  func.func @transform_2(%arg0: i32) -> (i32, i32) {
    %c0_i32 = arith.constant 0 : i32
    %c0_i32_0 = arith.constant 0 : i32
    %c0_i32_1 = arith.constant 0 : i32
    return %c0_i32, %c0_i32_0 : i32, i32
  }
  func.func @transform_3(%arg0: i32) -> (i32, i32) {
    %c0_i32 = arith.constant 0 : i32
    %c0_i32_0 = arith.constant 0 : i32
    %c0_i32_1 = arith.constant 0 : i32
    return %c0_i32, %c0_i32_0 : i32, i32
  }
  func.func @transform_4(%arg0: i32) -> (i32, i32) {
    %c0_i32 = arith.constant 0 : i32
    %c0_i32_0 = arith.constant 0 : i32
    %c0_i32_1 = arith.constant 0 : i32
    return %c0_i32, %c0_i32_0 : i32, i32
  }
  func.func @transform_5(%arg0: i32) -> (i32, i32) {
    %c0_i32 = arith.constant 0 : i32
    %c0_i32_0 = arith.constant 0 : i32
    %c0_i32_1 = arith.constant 0 : i32
    return %c0_i32, %c0_i32_0 : i32, i32
  }
  func.func @transform_6(%arg0: i32) -> (i32, i32) {
    %c0_i32 = arith.constant 0 : i32
    %c0_i32_0 = arith.constant 0 : i32
    %c0_i32_1 = arith.constant 0 : i32
    return %c0_i32, %c0_i32_0 : i32, i32
  }
  func.func @transform_7(%arg0: i32) -> (i32, i32) {
    %c0_i32 = arith.constant 0 : i32
    %c0_i32_0 = arith.constant 0 : i32
    %c0_i32_1 = arith.constant 0 : i32
    return %c0_i32, %c0_i32_0 : i32, i32
  }
  func.func @transform_8(%arg0: i32) -> (i32, i32) {
    %c0_i32 = arith.constant 0 : i32
    %c0_i32_0 = arith.constant 0 : i32
    %c0_i32_1 = arith.constant 0 : i32
    return %c0_i32, %c0_i32_0 : i32, i32
  }
  func.func @transform_9(%arg0: i32) -> (i32, i32) {
    %c0_i32 = arith.constant 0 : i32
    %c0_i32_0 = arith.constant 0 : i32
    %c0_i32_1 = arith.constant 0 : i32
    return %c0_i32, %c0_i32_0 : i32, i32
  }
  func.func @transform_10(%arg0: i32) -> (i32, i32) {
    %c0_i32 = arith.constant 0 : i32
    %c0_i32_0 = arith.constant 0 : i32
    %c0_i32_1 = arith.constant 0 : i32
    return %c0_i32, %c0_i32_0 : i32, i32
  }
  func.func @transform_11(%arg0: i32) -> (i32, i32) {
    %c0_i32 = arith.constant 0 : i32
    %c0_i32_0 = arith.constant 0 : i32
    %c0_i32_1 = arith.constant 0 : i32
    return %c0_i32, %c0_i32_0 : i32, i32
  }
  func.func @transform_12(%arg0: i32) -> (i32, i32) {
    %c0_i32 = arith.constant 0 : i32
    %c0_i32_0 = arith.constant 0 : i32
    %c0_i32_1 = arith.constant 0 : i32
    return %c0_i32, %c0_i32_0 : i32, i32
  }
  func.func @transform_13(%arg0: i32) -> (i32, i32) {
    %c0_i32 = arith.constant 0 : i32
    %c0_i32_0 = arith.constant 0 : i32
    %c0_i32_1 = arith.constant 0 : i32
    return %c0_i32, %c0_i32_0 : i32, i32
  }
  func.func @transform_14(%arg0: i32) -> (i32, i32) {
    %c0_i32 = arith.constant 0 : i32
    %c0_i32_0 = arith.constant 0 : i32
    %c0_i32_1 = arith.constant 0 : i32
    return %c0_i32, %c0_i32_0 : i32, i32
  }
  func.func @transform_15(%arg0: i32) -> (i32, i32) {
    %c0_i32 = arith.constant 0 : i32
    %c0_i32_0 = arith.constant 0 : i32
    %c0_i32_1 = arith.constant 0 : i32
    return %c0_i32, %c0_i32_0 : i32, i32
  }
  func.func @transform_16(%arg0: i32) -> (i32, i32) {
    %c0_i32 = arith.constant 0 : i32
    %c0_i32_0 = arith.constant 0 : i32
    %c0_i32_1 = arith.constant 0 : i32
    return %c0_i32, %c0_i32_0 : i32, i32
  }
  func.func @transform_17(%arg0: i32) -> (i32, i32) {
    %c0_i32 = arith.constant 0 : i32
    %c0_i32_0 = arith.constant 0 : i32
    %c0_i32_1 = arith.constant 0 : i32
    return %c0_i32, %c0_i32_0 : i32, i32
  }
  func.func @transform_18(%arg0: i32) -> (i32, i32) {
    %c0_i32 = arith.constant 0 : i32
    %c0_i32_0 = arith.constant 0 : i32
    %c0_i32_1 = arith.constant 0 : i32
    return %c0_i32, %c0_i32_0 : i32, i32
  }
  func.func @transform_19(%arg0: i32) -> (i32, i32) {
    %c0_i32 = arith.constant 0 : i32
    %c0_i32_0 = arith.constant 0 : i32
    %c0_i32_1 = arith.constant 0 : i32
    return %c0_i32, %c0_i32_0 : i32, i32
  }
  func.func @transform_20(%arg0: i32) -> (i32, i32) {
    %c0_i32 = arith.constant 0 : i32
    %c0_i32_0 = arith.constant 0 : i32
    %c0_i32_1 = arith.constant 0 : i32
    return %c0_i32, %c0_i32_0 : i32, i32
  }
  func.func @transform_21(%arg0: i32) -> (i32, i32) {
    %c0_i32 = arith.constant 0 : i32
    %c0_i32_0 = arith.constant 0 : i32
    return %arg0, %c0_i32 : i32, i32
  }
}

</mosaic_0001>

<llo_original>
// kernel: tpu_custom_call.1
$region0: #{tpu_custom_call.1}
  #allocation0 [shape = 'u32[]', space=smem, size = 0x4, offset = 0x4, fixed_abs, tag = 'smem constant byte address 0x4 - core index']
  #allocation1 [shape = 'u32[144,128]{1,0:T(1,128)}', space=vmem, size = 0x12000, scoped, tag = 'internal scratch']
  %s0 = inlined_call_operand.vmem [shape: f32[104,16], index: 0, kind: input, shape index: {}]
  %s1 = inlined_call_operand.hbm [shape: f32[16,32], index: 1, kind: input, shape index: {}]
  %s2 = inlined_call_operand.hbm [shape: f32[1,32], index: 2, kind: input, shape index: {}]
  %s3 = inlined_call_operand.vmem [shape: f32[32,32], index: 3, kind: input, shape index: {}]
  %s4 = inlined_call_operand.hbm [shape: f32[1,32], index: 4, kind: input, shape index: {}]
  %s5 = inlined_call_operand.vmem [shape: f32[32,32], index: 5, kind: input, shape index: {}]
  %s6 = inlined_call_operand.hbm [shape: f32[1,32], index: 6, kind: input, shape index: {}]
  %s7 = inlined_call_operand.vmem [shape: f32[32,32], index: 7, kind: input, shape index: {}]
  %s8 = inlined_call_operand.hbm [shape: f32[1,32], index: 8, kind: input, shape index: {}]
  %s9 = inlined_call_operand.vmem [shape: f32[32,32], index: 9, kind: input, shape index: {}]
  %s10 = inlined_call_operand.vmem [shape: f32[16,32], index: 10, kind: input, shape index: {}]
  %s11 = inlined_call_operand.hbm [shape: f32[1,32], index: 11, kind: input, shape index: {}]
  %s12 = inlined_call_operand.vmem [shape: f32[32,32], index: 12, kind: input, shape index: {}]
  %s13 = inlined_call_operand.hbm [shape: f32[1,32], index: 13, kind: input, shape index: {}]
  %s14 = inlined_call_operand.vmem [shape: f32[32,128], index: 14, kind: input, shape index: {}]
  %s15 = inlined_call_operand.hbm [shape: f32[1,128], index: 15, kind: input, shape index: {}]
  %s16 = inlined_call_operand.vmem [shape: f32[32,16], index: 16, kind: input, shape index: {}]
  %s17 = inlined_call_operand.vmem [shape: f32[16,16], index: 17, kind: input, shape index: {}]
  %s18 = inlined_call_operand.vmem [shape: f32[1,16], index: 18, kind: input, shape index: {}]
  %s19 = inlined_call_operand.vmem [shape: f32[16,8], index: 19, kind: input, shape index: {}]
  %s20 = inlined_call_operand.vmem [shape: f32[1,8], index: 20, kind: input, shape index: {}]
  %s21 = inlined_call_operand.vmem [shape: f32[104,8], index: 21, kind: output, shape index: {}]
  %s22 = sld [smem:[#allocation0]]
  $region126: #{tpu_custom_call.1} parent=0
    _
  %s24 = ssub.s32 1, %s22
  %s25 = scalar_select 0, %s24, %s22
  $region1: #{tpu_custom_call.1} parent=0
    #allocation2 [shape = 'u8[8192]{0}', space=vmem, size = 0x2000, scoped, tag = 'input window, operand 1, single buffered']
    #allocation3 [shape = 's32[1]{0}', space=sflag, size = 0x4, scoped, tag = 'scoped memory for tpu_custom_call.1']
    #allocation4 [shape = 'u8[512]{0}', space=vmem, size = 0x400, scoped, tag = 'input window, operand 2, single buffered']
    #allocation5 [shape = 's32[1]{0}', space=sflag, size = 0x4, scoped, tag = 'scoped memory for tpu_custom_call.1']
    #allocation6 [shape = 'u8[512]{0}', space=vmem, size = 0x400, scoped, tag = 'input window, operand 4, single buffered']
    #allocation7 [shape = 'u8[512]{0}', space=vmem, size = 0x400, scoped, tag = 'input window, operand 6, single buffered']
    #allocation8 [shape = 's32[1]{0}', space=sflag, size = 0x4, scoped, tag = 'scoped memory for tpu_custom_call.1']
    #allocation9 [shape = 'u8[512]{0}', space=vmem, size = 0x400, scoped, tag = 'input window, operand 8, single buffered']
    #allocation10 [shape = 'u8[512]{0}', space=vmem, size = 0x400, scoped, tag = 'input window, operand 11, single buffered']
    #allocation11 [shape = 's32[1]{0}', space=sflag, size = 0x4, scoped, tag = 'scoped memory for tpu_custom_call.1']
    #allocation12 [shape = 'u8[512]{0}', space=vmem, size = 0x400, scoped, tag = 'input window, operand 13, single buffered']
    #allocation13 [shape = 'u8[512]{0}', space=vmem, size = 0x400, scoped, tag = 'input window, operand 15, single buffered']
    #allocation14 [shape = 's32[1]{0}', space=sflag, size = 0x4, scoped, tag = 'scoped memory for tpu_custom_call.1']
    %26 = vsyncpa [#allocation3], 0
    %27 = vsyncpa [#allocation5], 0
    %28 = vsyncpa [#allocation8], 0
    %29 = vsyncpa [#allocation11], 0
    %30 = vsyncpa [#allocation14], 0
    // Predicated region
    $region2: #{tpu_custom_call.1} parent=1 // pred_check
      _
    $region3: #{tpu_custom_call.1} parent=1 // pred_check_branch
      %32 = sbr.rel (0) target = $region5
    $region4: #{tpu_custom_call.1} parent=1 // pred_region
      _
    $region5: #{tpu_custom_call.1} parent=1 // pred_fallthru
      _
    // Predicated region
    $region6: #{tpu_custom_call.1} parent=1 // pred_check
      _
    $region7: #{tpu_custom_call.1} parent=1 // pred_check_branch
      %34 = sbr.rel (0) target = $region9
    $region8: #{tpu_custom_call.1} parent=1 // pred_region
      %s36 = ssub.s32 256, 256
      %37 = vsyncadd [#allocation3], %s36
      %s38 = sshll.u32 [#allocation2], 4
      %s39 = int_to_ptr.vmem [resolvable:$true] %s38
      %44 = dma.hbm_to_vmem [thread:$0]  %s1, 256, %s39, [#allocation3], 128, 128, 8
    $region9: #{tpu_custom_call.1} parent=1 // pred_fallthru
      _
    // Predicated region
    $region10: #{tpu_custom_call.1} parent=1 // pred_check
      _
    $region11: #{tpu_custom_call.1} parent=1 // pred_check_branch
      %46 = sbr.rel (0) target = $region13
    $region12: #{tpu_custom_call.1} parent=1 // pred_region
      %s48 = ssub.s32 16, 16
      %49 = vsyncadd [#allocation5], %s48
      %s51 = sshll.u32 [#allocation4], 4
      %s52 = int_to_ptr.vmem [resolvable:$true] %s51
      %54 = dma.hbm_to_vmem [thread:$0]  %s2, 16, %s52, [#allocation5]
    $region13: #{tpu_custom_call.1} parent=1 // pred_fallthru
      _
    // Predicated region
    $region14: #{tpu_custom_call.1} parent=1 // pred_check
      _
    $region15: #{tpu_custom_call.1} parent=1 // pred_check_branch
      %56 = sbr.rel (0) target = $region17
    $region16: #{tpu_custom_call.1} parent=1 // pred_region
      _
    $region17: #{tpu_custom_call.1} parent=1 // pred_fallthru
      _
    // Predicated region
    $region18: #{tpu_custom_call.1} parent=1 // pred_check
      _
    $region19: #{tpu_custom_call.1} parent=1 // pred_check_branch
      %58 = sbr.rel (0) target = $region21
    $region20: #{tpu_custom_call.1} parent=1 // pred_region
      %s60 = ssub.s32 16, 16
      %61 = vsyncadd [#allocation5], %s60
      %s63 = sshll.u32 [#allocation6], 4
      %s64 = int_to_ptr.vmem [resolvable:$true] %s63
      %66 = dma.hbm_to_vmem [thread:$0]  %s4, 16, %s64, [#allocation5]
    $region21: #{tpu_custom_call.1} parent=1 // pred_fallthru
      _
    // Predicated region
    $region22: #{tpu_custom_call.1} parent=1 // pred_check
      _
    $region23: #{tpu_custom_call.1} parent=1 // pred_check_branch
      %68 = sbr.rel (0) target = $region25
    $region24: #{tpu_custom_call.1} parent=1 // pred_region
      _
    $region25: #{tpu_custom_call.1} parent=1 // pred_fallthru
      _
    // Predicated region
    $region26: #{tpu_custom_call.1} parent=1 // pred_check
      _
    $region27: #{tpu_custom_call.1} parent=1 // pred_check_branch
      %70 = sbr.rel (0) target = $region29
    $region28: #{tpu_custom_call.1} parent=1 // pred_region
      %s72 = ssub.s32 16, 16
      %73 = vsyncadd [#allocation8], %s72
      %s75 = sshll.u32 [#allocation7], 4
      %s76 = int_to_ptr.vmem [resolvable:$true] %s75
      %78 = dma.hbm_to_vmem [thread:$0]  %s6, 16, %s76, [#allocation8]
    $region29: #{tpu_custom_call.1} parent=1 // pred_fallthru
      _
    // Predicated region
    $region30: #{tpu_custom_call.1} parent=1 // pred_check
      _
    $region31: #{tpu_custom_call.1} parent=1 // pred_check_branch
      %80 = sbr.rel (0) target = $region33
    $region32: #{tpu_custom_call.1} parent=1 // pred_region
      _
    $region33: #{tpu_custom_call.1} parent=1 // pred_fallthru
      _
    // Predicated region
    $region34: #{tpu_custom_call.1} parent=1 // pred_check
      _
    $region35: #{tpu_custom_call.1} parent=1 // pred_check_branch
      %82 = sbr.rel (0) target = $region37
    $region36: #{tpu_custom_call.1} parent=1 // pred_region
      %s84 = ssub.s32 16, 16
      %85 = vsyncadd [#allocation8], %s84
      %s87 = sshll.u32 [#allocation9], 4
      %s88 = int_to_ptr.vmem [resolvable:$true] %s87
      %90 = dma.hbm_to_vmem [thread:$0]  %s8, 16, %s88, [#allocation8]
    $region37: #{tpu_custom_call.1} parent=1 // pred_fallthru
      _
    // Predicated region
    $region38: #{tpu_custom_call.1} parent=1 // pred_check
      _
    $region39: #{tpu_custom_call.1} parent=1 // pred_check_branch
      %92 = sbr.rel (0) target = $region41
    $region40: #{tpu_custom_call.1} parent=1 // pred_region
      _
    $region41: #{tpu_custom_call.1} parent=1 // pred_fallthru
      _
    // Predicated region
    $region42: #{tpu_custom_call.1} parent=1 // pred_check
      _
    $region43: #{tpu_custom_call.1} parent=1 // pred_check_branch
      %94 = sbr.rel (0) target = $region45
    $region44: #{tpu_custom_call.1} parent=1 // pred_region
      _
    $region45: #{tpu_custom_call.1} parent=1 // pred_fallthru
      _
    // Predicated region
    $region46: #{tpu_custom_call.1} parent=1 // pred_check
      _
    $region47: #{tpu_custom_call.1} parent=1 // pred_check_branch
      %96 = sbr.rel (0) target = $region49
    $region48: #{tpu_custom_call.1} parent=1 // pred_region
      %s98 = ssub.s32 16, 16
      %99 = vsyncadd [#allocation11], %s98
      %s101 = sshll.u32 [#allocation10], 4
      %s102 = int_to_ptr.vmem [resolvable:$true] %s101
      %104 = dma.hbm_to_vmem [thread:$0]  %s11, 16, %s102, [#allocation11]
    $region49: #{tpu_custom_call.1} parent=1 // pred_fallthru
      _
    // Predicated region
    $region50: #{tpu_custom_call.1} parent=1 // pred_check
      _
    $region51: #{tpu_custom_call.1} parent=1 // pred_check_branch
      %106 = sbr.rel (0) target = $region53
    $region52: #{tpu_custom_call.1} parent=1 // pred_region
      _
    $region53: #{tpu_custom_call.1} parent=1 // pred_fallthru
      _
    // Predicated region
    $region54: #{tpu_custom_call.1} parent=1 // pred_check
      _
    $region55: #{tpu_custom_call.1} parent=1 // pred_check_branch
      %108 = sbr.rel (0) target = $region57
    $region56: #{tpu_custom_call.1} parent=1 // pred_region
      %s110 = ssub.s32 16, 16
      %111 = vsyncadd [#allocation11], %s110
      %s113 = sshll.u32 [#allocation12], 4
      %s114 = int_to_ptr.vmem [resolvable:$true] %s113
      %116 = dma.hbm_to_vmem [thread:$0]  %s13, 16, %s114, [#allocation11]
    $region57: #{tpu_custom_call.1} parent=1 // pred_fallthru
      _
    // Predicated region
    $region58: #{tpu_custom_call.1} parent=1 // pred_check
      _
    $region59: #{tpu_custom_call.1} parent=1 // pred_check_branch
      %118 = sbr.rel (0) target = $region61
    $region60: #{tpu_custom_call.1} parent=1 // pred_region
      _
    $region61: #{tpu_custom_call.1} parent=1 // pred_fallthru
      _
    // Predicated region
    $region62: #{tpu_custom_call.1} parent=1 // pred_check
      _
    $region63: #{tpu_custom_call.1} parent=1 // pred_check_branch
      %120 = sbr.rel (0) target = $region65
    $region64: #{tpu_custom_call.1} parent=1 // pred_region
      %s122 = ssub.s32 16, 16
      %123 = vsyncadd [#allocation14], %s122
      %s125 = sshll.u32 [#allocation13], 4
      %s126 = int_to_ptr.vmem [resolvable:$true] %s125
      %128 = dma.hbm_to_vmem [thread:$0]  %s15, 16, %s126, [#allocation14]
    $region65: #{tpu_custom_call.1} parent=1 // pred_fallthru
      _
    // Predicated region
    $region66: #{tpu_custom_call.1} parent=1 // pred_check
      _
    $region67: #{tpu_custom_call.1} parent=1 // pred_check_branch
      %130 = sbr.rel (0) target = $region69
    $region68: #{tpu_custom_call.1} parent=1 // pred_region
      _
    $region69: #{tpu_custom_call.1} parent=1 // pred_fallthru
      _
    // Predicated region
    $region70: #{tpu_custom_call.1} parent=1 // pred_check
      _
    $region71: #{tpu_custom_call.1} parent=1 // pred_check_branch
      %132 = sbr.rel (0) target = $region73
    $region72: #{tpu_custom_call.1} parent=1 // pred_region
      _
    $region73: #{tpu_custom_call.1} parent=1 // pred_fallthru
      _
    // Predicated region
    $region74: #{tpu_custom_call.1} parent=1 // pred_check
      _
    $region75: #{tpu_custom_call.1} parent=1 // pred_check_branch
      %134 = sbr.rel (0) target = $region77
    $region76: #{tpu_custom_call.1} parent=1 // pred_region
      _
    $region77: #{tpu_custom_call.1} parent=1 // pred_fallthru
      _
    // Predicated region
    $region78: #{tpu_custom_call.1} parent=1 // pred_check
      _
    $region79: #{tpu_custom_call.1} parent=1 // pred_check_branch
      %136 = sbr.rel (0) target = $region81
    $region80: #{tpu_custom_call.1} parent=1 // pred_region
      _
    $region81: #{tpu_custom_call.1} parent=1 // pred_fallthru
      _
    // Predicated region
    $region82: #{tpu_custom_call.1} parent=1 // pred_check
      _
    $region83: #{tpu_custom_call.1} parent=1 // pred_check_branch
      %138 = sbr.rel (0) target = $region85
    $region84: #{tpu_custom_call.1} parent=1 // pred_region
      _
    $region85: #{tpu_custom_call.1} parent=1 // pred_fallthru
      _
    // Predicated region
    $region86: #{tpu_custom_call.1} parent=1 // pred_check
      _
    $region87: #{tpu_custom_call.1} parent=1 // pred_check_branch
      %140 = sbr.rel (0) target = $region89
    $region88: #{tpu_custom_call.1} parent=1 // pred_region
      %141 = dma.done [#allocation3], 256
    $region89: #{tpu_custom_call.1} parent=1 // pred_fallthru
      _
    // Predicated region
    $region90: #{tpu_custom_call.1} parent=1 // pred_check
      _
    $region91: #{tpu_custom_call.1} parent=1 // pred_check_branch
      %143 = sbr.rel (0) target = $region93
    $region92: #{tpu_custom_call.1} parent=1 // pred_region
      %144 = dma.done [#allocation5], 16
    $region93: #{tpu_custom_call.1} parent=1 // pred_fallthru
      _
    // Predicated region
    $region94: #{tpu_custom_call.1} parent=1 // pred_check
      _
    $region95: #{tpu_custom_call.1} parent=1 // pred_check_branch
      %146 = sbr.rel (0) target = $region97
    $region96: #{tpu_custom_call.1} parent=1 // pred_region
      %147 = dma.done [#allocation5], 16
    $region97: #{tpu_custom_call.1} parent=1 // pred_fallthru
      _
    // Predicated region
    $region98: #{tpu_custom_call.1} parent=1 // pred_check
      _
    $region99: #{tpu_custom_call.1} parent=1 // pred_check_branch
      %149 = sbr.rel (0) target = $region101
    $region100: #{tpu_custom_call.1} parent=1 // pred_region
      %150 = dma.done [#allocation8], 16
    $region101: #{tpu_custom_call.1} parent=1 // pred_fallthru
      _
    // Predicated region
    $region102: #{tpu_custom_call.1} parent=1 // pred_check
      _
    $region103: #{tpu_custom_call.1} parent=1 // pred_check_branch
      %152 = sbr.rel (0) target = $region105
    $region104: #{tpu_custom_call.1} parent=1 // pred_region
      %153 = dma.done [#allocation8], 16
    $region105: #{tpu_custom_call.1} parent=1 // pred_fallthru
      _
    // Predicated region
    $region106: #{tpu_custom_call.1} parent=1 // pred_check
      _
    $region107: #{tpu_custom_call.1} parent=1 // pred_check_branch
      %155 = sbr.rel (0) target = $region109
    $region108: #{tpu_custom_call.1} parent=1 // pred_region
      %156 = dma.done [#allocation11], 16
    $region109: #{tpu_custom_call.1} parent=1 // pred_fallthru
      _
    // Predicated region
    $region110: #{tpu_custom_call.1} parent=1 // pred_check
      _
    $region111: #{tpu_custom_call.1} parent=1 // pred_check_branch
      %158 = sbr.rel (0) target = $region113
    $region112: #{tpu_custom_call.1} parent=1 // pred_region
      %159 = dma.done [#allocation11], 16
    $region113: #{tpu_custom_call.1} parent=1 // pred_fallthru
      _
    // Predicated region
    $region114: #{tpu_custom_call.1} parent=1 // pred_check
      _
    $region115: #{tpu_custom_call.1} parent=1 // pred_check_branch
      %161 = sbr.rel (0) target = $region117
    $region116: #{tpu_custom_call.1} parent=1 // pred_region
      %162 = dma.done [#allocation14], 16
    $region117: #{tpu_custom_call.1} parent=1 // pred_fallthru
      _
    %v163 = vld [vmem:[%s0] sm:$0xff]
    %v164 = vld [vmem:[%s0 + $0x8] sm:$0xff]
    %v165 = vld [vmem:[%s0 + $0x10] sm:$0xff]
    %v166 = vld [vmem:[%s0 + $0x18] sm:$0xff]
    %v167 = vld [vmem:[%s0 + $0x20] sm:$0xff]
    %v168 = vld [vmem:[%s0 + $0x28] sm:$0xff]
    %v169 = vld [vmem:[%s0 + $0x30] sm:$0xff]
    %v170 = vld [vmem:[%s0 + $0x38] sm:$0xff]
    %v171 = vld [vmem:[%s0 + $0x40] sm:$0xff]
    %v172 = vld [vmem:[%s0 + $0x48] sm:$0xff]
    %v173 = vld [vmem:[%s0 + $0x50] sm:$0xff]
    %v174 = vld [vmem:[%s0 + $0x58] sm:$0xff]
    %v175 = vld [vmem:[%s0 + $0x60] sm:$0xff]
    %v176 = vld [vmem:[#allocation2] sm:$0xff]
    %v177 = vld [vmem:[#allocation2 + $0x8] sm:$0xff]
    %v178 = vld [vmem:[#allocation4] sm:$0x1]
    %v180 = vlaneseq
    %v181 = vshrl.u32 %v180, 7
    %v182 = vsub.s32 0, %v181
    %v183 = vrot.slane %v178, %v182
    %vm185 = vcmask 130048
    %v187 = vsel %vm185, %v163, 0
    %v190 = vsel %vm185, %v164, 0
    %v193 = vsel %vm185, %v165, 0
    %v196 = vsel %vm185, %v166, 0
    %v199 = vsel %vm185, %v167, 0
    %v202 = vsel %vm185, %v168, 0
    %v205 = vsel %vm185, %v169, 0
    %v208 = vsel %vm185, %v170, 0
    %v211 = vsel %vm185, %v171, 0
    %v214 = vsel %vm185, %v172, 0
    %v217 = vsel %vm185, %v173, 0
    %v220 = vsel %vm185, %v174, 0
    %v223 = vsel %vm185, %v175, 0
    %225 = vmatprep.subr.mxu0 0.0
    %226 = vmatpush1.msra.mxu0 %v176
    %227 = vmatprep.subr.mxu0 0.0
    %228 = vmatpush1.msra.mxu0 %v177
    %229 = vmatprep.subr.mxu0 0.0
    %230 = vmatpush1.msra.mxu0 0.0
    %231 = vmatprep.subr.mxu0 0.0
    %232 = vmatpush1.msra.mxu0 0.0
    %233 = vmatprep.subr.mxu0 0.0
    %234 = vmatpush1.msra.mxu0 0.0
    %235 = vmatprep.subr.mxu0 0.0
    %236 = vmatpush1.msra.mxu0 0.0
    %237 = vmatprep.subr.mxu0 0.0
    %238 = vmatpush1.msra.mxu0 0.0
    %239 = vmatprep.subr.mxu0 0.0
    %240 = vmatpush1.msra.mxu0 0.0
    %241 = vmatprep.subr.mxu0 0.0
    %242 = vmatpush1.msra.mxu0 0.0
    %243 = vmatprep.subr.mxu0 0.0
    %244 = vmatpush1.msra.mxu0 0.0
    %245 = vmatprep.subr.mxu0 0.0
    %246 = vmatpush1.msra.mxu0 0.0
    %247 = vmatprep.subr.mxu0 0.0
    %248 = vmatpush1.msra.mxu0 0.0
    %249 = vmatprep.subr.mxu0 0.0
    %250 = vmatpush1.msra.mxu0 0.0
    %251 = vmatprep.subr.mxu0 0.0
    %252 = vmatpush1.msra.mxu0 0.0
    %253 = vmatprep.subr.mxu0 0.0
    %254 = vmatpush1.msra.mxu0 0.0
    %255 = vmatprep.subr.mxu0 0.0
    %256 = vmatpush1.msra.mxu0 0.0
    %257 = vmatprep.subr.mxu0 0.0
    %258 = vmatpush1.msra.mxu0 0.0
    %259 = vmatprep.subr.mxu0 0.0
    %260 = vmatpush1.msra.mxu0 0.0
    %261 = vmatprep.subr.mxu0 0.0
    %262 = vmatpush1.msra.mxu0 0.0
    %263 = vmatprep.subr.mxu0 0.0
    %264 = vmatpush1.msra.mxu0 0.0
    %265 = vmatprep.subr.mxu0 0.0
    %266 = vmatpush1.msra.mxu0 0.0
    %267 = vmatprep.subr.mxu0 0.0
    %268 = vmatpush1.msra.mxu0 0.0
    %269 = vmatprep.subr.mxu0 0.0
    %270 = vmatpush1.msra.mxu0 0.0
    %271 = vmatprep.subr.mxu0 0.0
    %272 = vmatpush1.msra.mxu0 0.0
    %273 = vmatprep.subr.mxu0 0.0
    %274 = vmatpush1.msra.mxu0 0.0
    %275 = vmatprep.subr.mxu0 0.0
    %276 = vmatpush1.msra.mxu0 0.0
    %277 = vmatprep.subr.mxu0 0.0
    %278 = vmatpush1.msra.mxu0 0.0
    %279 = vmatprep.subr.mxu0 0.0
    %280 = vmatpush1.msra.mxu0 0.0
    %281 = vmatprep.subr.mxu0 0.0
    %282 = vmatpush1.msra.mxu0 0.0
    %283 = vmatprep.subr.mxu0 0.0
    %284 = vmatpush1.msra.mxu0 0.0
    %285 = vmatprep.subr.mxu0 0.0
    %286 = vmatpush1.msra.mxu0 0.0
    %287 = vmatprep.subr.mxu0 0.0
    %288 = vmatpush1.msra.mxu0 0.0
    %289 = vmatprep.mubr.f32.mxu0 0.0
    %290 = vmatmul.mubr.f32.gmra.mrb[0].mxu0 %v187
    %v291 = vpop.f32.mrb[0].mxu0
    %v292 = vadd.f32 %v183, %v291
    %v293 = vpop.f32.mrb[0].mxu0
    %294 = vmatprep.mubr.f32.mxu0 0.0
    %295 = vmatmul.mubr.f32.gmra.mrb[0].mxu0 %v190
    %v296 = vpop.f32.mrb[0].mxu0
    %v297 = vadd.f32 %v183, %v296
    %v298 = vpop.f32.mrb[0].mxu0
    %299 = vmatprep.mubr.f32.mxu0 0.0
    %300 = vmatmul.mubr.f32.gmra.mrb[0].mxu0 %v193
    %v301 = vpop.f32.mrb[0].mxu0
    %v302 = vadd.f32 %v183, %v301
    %v303 = vpop.f32.mrb[0].mxu0
    %304 = vmatprep.mubr.f32.mxu0 0.0
    %305 = vmatmul.mubr.f32.gmra.mrb[0].mxu0 %v196
    %v306 = vpop.f32.mrb[0].mxu0
    %v307 = vadd.f32 %v183, %v306
    %v308 = vpop.f32.mrb[0].mxu0
    %309 = vmatprep.mubr.f32.mxu0 0.0
    %310 = vmatmul.mubr.f32.gmra.mrb[0].mxu0 %v199
    %v311 = vpop.f32.mrb[0].mxu0
    %v312 = vadd.f32 %v183, %v311
    %v313 = vpop.f32.mrb[0].mxu0
    %314 = vmatprep.mubr.f32.mxu0 0.0
    %315 = vmatmul.mubr.f32.gmra.mrb[0].mxu0 %v202
    %v316 = vpop.f32.mrb[0].mxu0
    %v317 = vadd.f32 %v183, %v316
    %v318 = vpop.f32.mrb[0].mxu0
    %319 = vmatprep.mubr.f32.mxu0 0.0
    %320 = vmatmul.mubr.f32.gmra.mrb[0].mxu0 %v205
    %v321 = vpop.f32.mrb[0].mxu0
    %v322 = vadd.f32 %v183, %v321
    %v323 = vpop.f32.mrb[0].mxu0
    %324 = vmatprep.mubr.f32.mxu0 0.0
    %325 = vmatmul.mubr.f32.gmra.mrb[0].mxu0 %v208
    %v326 = vpop.f32.mrb[0].mxu0
    %v327 = vadd.f32 %v183, %v326
    %v328 = vpop.f32.mrb[0].mxu0
    %329 = vmatprep.mubr.f32.mxu0 0.0
    %330 = vmatmul.mubr.f32.gmra.mrb[0].mxu0 %v211
    %v331 = vpop.f32.mrb[0].mxu0
    %v332 = vadd.f32 %v183, %v331
    %v333 = vpop.f32.mrb[0].mxu0
    %334 = vmatprep.mubr.f32.mxu0 0.0
    %335 = vmatmul.mubr.f32.gmra.mrb[0].mxu0 %v214
    %v336 = vpop.f32.mrb[0].mxu0
    %v337 = vadd.f32 %v183, %v336
    %v338 = vpop.f32.mrb[0].mxu0
    %339 = vmatprep.mubr.f32.mxu0 0.0
    %340 = vmatmul.mubr.f32.gmra.mrb[0].mxu0 %v217
    %v341 = vpop.f32.mrb[0].mxu0
    %v342 = vadd.f32 %v183, %v341
    %v343 = vpop.f32.mrb[0].mxu0
    %344 = vmatprep.mubr.f32.mxu0 0.0
    %345 = vmatmul.mubr.f32.gmra.mrb[0].mxu0 %v220
    %v346 = vpop.f32.mrb[0].mxu0
    %v347 = vadd.f32 %v183, %v346
    %v348 = vpop.f32.mrb[0].mxu0
    %349 = vmatprep.mubr.f32.mxu0 0.0
    %350 = vmatmul.mubr.f32.gmra.mrb[0].mxu0 %v223
    %v351 = vpop.f32.mrb[0].mxu0
    %v352 = vadd.f32 %v183, %v351
    %v353 = vpop.f32.mrb[0].mxu0
    %354 = vdwg.mxu0
    %v355 = vmax.f32 %v292, 0.0
    %v356 = vmax.f32 %v297, 0.0
    %v357 = vmax.f32 %v302, 0.0
    %v358 = vmax.f32 %v307, 0.0
    %v359 = vmax.f32 %v312, 0.0
    %v360 = vmax.f32 %v317, 0.0
    %v361 = vmax.f32 %v322, 0.0
    %v362 = vmax.f32 %v327, 0.0
    %v363 = vmax.f32 %v332, 0.0
    %v364 = vmax.f32 %v337, 0.0
    %v365 = vmax.f32 %v342, 0.0
    %v366 = vmax.f32 %v347, 0.0
    %v367 = vmax.f32 %v352, 0.0
    %v368 = vld [vmem:[%s3] sm:$0xff]
    %v369 = vld [vmem:[%s3 + $0x8] sm:$0xff]
    %v370 = vld [vmem:[%s3 + $0x10] sm:$0xff]
    %v371 = vld [vmem:[%s3 + $0x18] sm:$0xff]
    %v372 = vld [vmem:[#allocation6] sm:$0x1]
    %v374 = vlaneseq
    %v375 = vshrl.u32 %v374, 7
    %v376 = vsub.s32 0, %v375
    %v377 = vrot.slane %v372, %v376
    %vm379 = vcmask 261120
    %v381 = vsel %vm379, %v355, 0
    %v384 = vsel %vm379, %v356, 0
    %v387 = vsel %vm379, %v357, 0
    %v390 = vsel %vm379, %v358, 0
    %v393 = vsel %vm379, %v359, 0
    %v396 = vsel %vm379, %v360, 0
    %v399 = vsel %vm379, %v361, 0
    %v402 = vsel %vm379, %v362, 0
    %v405 = vsel %vm379, %v363, 0
    %v408 = vsel %vm379, %v364, 0
    %v411 = vsel %vm379, %v365, 0
    %v414 = vsel %vm379, %v366, 0
    %v417 = vsel %vm379, %v367, 0
    %419 = vmatprep.subr.mxu0 0.0
    %420 = vmatpush1.msra.mxu0 %v368
    %421 = vmatprep.subr.mxu0 0.0
    %422 = vmatpush1.msra.mxu0 %v369
    %423 = vmatprep.subr.mxu0 0.0
    %424 = vmatpush1.msra.mxu0 %v370
    %425 = vmatprep.subr.mxu0 0.0
    %426 = vmatpush1.msra.mxu0 %v371
    %427 = vmatprep.subr.mxu0 0.0
    %428 = vmatpush1.msra.mxu0 0.0
    %429 = vmatprep.subr.mxu0 0.0
    %430 = vmatpush1.msra.mxu0 0.0
    %431 = vmatprep.subr.mxu0 0.0
    %432 = vmatpush1.msra.mxu0 0.0
    %433 = vmatprep.subr.mxu0 0.0
    %434 = vmatpush1.msra.mxu0 0.0
    %435 = vmatprep.subr.mxu0 0.0
    %436 = vmatpush1.msra.mxu0 0.0
    %437 = vmatprep.subr.mxu0 0.0
    %438 = vmatpush1.msra.mxu0 0.0
    %439 = vmatprep.subr.mxu0 0.0
    %440 = vmatpush1.msra.mxu0 0.0
    %441 = vmatprep.subr.mxu0 0.0
    %442 = vmatpush1.msra.mxu0 0.0
    %443 = vmatprep.subr.mxu0 0.0
    %444 = vmatpush1.msra.mxu0 0.0
    %445 = vmatprep.subr.mxu0 0.0
    %446 = vmatpush1.msra.mxu0 0.0
    %447 = vmatprep.subr.mxu0 0.0
    %448 = vmatpush1.msra.mxu0 0.0
    %449 = vmatprep.subr.mxu0 0.0
    %450 = vmatpush1.msra.mxu0 0.0
    %451 = vmatprep.subr.mxu0 0.0
    %452 = vmatpush1.msra.mxu0 0.0
    %453 = vmatprep.subr.mxu0 0.0
    %454 = vmatpush1.msra.mxu0 0.0
    %455 = vmatprep.subr.mxu0 0.0
    %456 = vmatpush1.msra.mxu0 0.0
    %457 = vmatprep.subr.mxu0 0.0
    %458 = vmatpush1.msra.mxu0 0.0
    %459 = vmatprep.subr.mxu0 0.0
    %460 = vmatpush1.msra.mxu0 0.0
    %461 = vmatprep.subr.mxu0 0.0
    %462 = vmatpush1.msra.mxu0 0.0
    %463 = vmatprep.subr.mxu0 0.0
    %464 = vmatpush1.msra.mxu0 0.0
    %465 = vmatprep.subr.mxu0 0.0
    %466 = vmatpush1.msra.mxu0 0.0
    %467 = vmatprep.subr.mxu0 0.0
    %468 = vmatpush1.msra.mxu0 0.0
    %469 = vmatprep.subr.mxu0 0.0
    %470 = vmatpush1.msra.mxu0 0.0
    %471 = vmatprep.subr.mxu0 0.0
    %472 = vmatpush1.msra.mxu0 0.0
    %473 = vmatprep.subr.mxu0 0.0
    %474 = vmatpush1.msra.mxu0 0.0
    %475 = vmatprep.subr.mxu0 0.0
    %476 = vmatpush1.msra.mxu0 0.0
    %477 = vmatprep.subr.mxu0 0.0
    %478 = vmatpush1.msra.mxu0 0.0
    %479 = vmatprep.subr.mxu0 0.0
    %480 = vmatpush1.msra.mxu0 0.0
    %481 = vmatprep.subr.mxu0 0.0
    %482 = vmatpush1.msra.mxu0 0.0
    %483 = vmatprep.mubr.f32.mxu0 0.0
    %484 = vmatmul.mubr.f32.gmra.mrb[0].mxu0 %v381
    %v485 = vpop.f32.mrb[0].mxu0
    %v486 = vadd.f32 %v377, %v485
    %v487 = vpop.f32.mrb[0].mxu0
    %488 = vmatprep.mubr.f32.mxu0 0.0
    %489 = vmatmul.mubr.f32.gmra.mrb[0].mxu0 %v384
    %v490 = vpop.f32.mrb[0].mxu0
    %v491 = vadd.f32 %v377, %v490
    %v492 = vpop.f32.mrb[0].mxu0
    %493 = vmatprep.mubr.f32.mxu0 0.0
    %494 = vmatmul.mubr.f32.gmra.mrb[0].mxu0 %v387
    %v495 = vpop.f32.mrb[0].mxu0
    %v496 = vadd.f32 %v377, %v495
    %v497 = vpop.f32.mrb[0].mxu0
    %498 = vmatprep.mubr.f32.mxu0 0.0
    %499 = vmatmul.mubr.f32.gmra.mrb[0].mxu0 %v390
    %v500 = vpop.f32.mrb[0].mxu0
    %v501 = vadd.f32 %v377, %v500
    %v502 = vpop.f32.mrb[0].mxu0
    %503 = vmatprep.mubr.f32.mxu0 0.0
    %504 = vmatmul.mubr.f32.gmra.mrb[0].mxu0 %v393
    %v505 = vpop.f32.mrb[0].mxu0
    %v506 = vadd.f32 %v377, %v505
    %v507 = vpop.f32.mrb[0].mxu0
    %508 = vmatprep.mubr.f32.mxu0 0.0
    %509 = vmatmul.mubr.f32.gmra.mrb[0].mxu0 %v396
    %v510 = vpop.f32.mrb[0].mxu0
    %v511 = vadd.f32 %v377, %v510
    %v512 = vpop.f32.mrb[0].mxu0
    %513 = vmatprep.mubr.f32.mxu0 0.0
    %514 = vmatmul.mubr.f32.gmra.mrb[0].mxu0 %v399
    %v515 = vpop.f32.mrb[0].mxu0
    %v516 = vadd.f32 %v377, %v515
    %v517 = vpop.f32.mrb[0].mxu0
    %518 = vmatprep.mubr.f32.mxu0 0.0
    %519 = vmatmul.mubr.f32.gmra.mrb[0].mxu0 %v402
    %v520 = vpop.f32.mrb[0].mxu0
    %v521 = vadd.f32 %v377, %v520
    %v522 = vpop.f32.mrb[0].mxu0
    %523 = vmatprep.mubr.f32.mxu0 0.0
    %524 = vmatmul.mubr.f32.gmra.mrb[0].mxu0 %v405
    %v525 = vpop.f32.mrb[0].mxu0
    %v526 = vadd.f32 %v377, %v525
    %v527 = vpop.f32.mrb[0].mxu0
    %528 = vmatprep.mubr.f32.mxu0 0.0
    %529 = vmatmul.mubr.f32.gmra.mrb[0].mxu0 %v408
    %v530 = vpop.f32.mrb[0].mxu0
    %v531 = vadd.f32 %v377, %v530
    %v532 = vpop.f32.mrb[0].mxu0
    %533 = vmatprep.mubr.f32.mxu0 0.0
    %534 = vmatmul.mubr.f32.gmra.mrb[0].mxu0 %v411
    %v535 = vpop.f32.mrb[0].mxu0
    %v536 = vadd.f32 %v377, %v535
    %v537 = vpop.f32.mrb[0].mxu0
    %538 = vmatprep.mubr.f32.mxu0 0.0
    %539 = vmatmul.mubr.f32.gmra.mrb[0].mxu0 %v414
    %v540 = vpop.f32.mrb[0].mxu0
    %v541 = vadd.f32 %v377, %v540
    %v542 = vpop.f32.mrb[0].mxu0
    %543 = vmatprep.mubr.f32.mxu0 0.0
    %544 = vmatmul.mubr.f32.gmra.mrb[0].mxu0 %v417
    %v545 = vpop.f32.mrb[0].mxu0
    %v546 = vadd.f32 %v377, %v545
    %v547 = vpop.f32.mrb[0].mxu0
    %548 = vdwg.mxu0
    %v549 = vmax.f32 %v486, 0.0
    %v550 = vmax.f32 %v491, 0.0
    %v551 = vmax.f32 %v496, 0.0
    %v552 = vmax.f32 %v501, 0.0
    %v553 = vmax.f32 %v506, 0.0
    %v554 = vmax.f32 %v511, 0.0
    %v555 = vmax.f32 %v516, 0.0
    %v556 = vmax.f32 %v521, 0.0
    %v557 = vmax.f32 %v526, 0.0
    %v558 = vmax.f32 %v531, 0.0
    %v559 = vmax.f32 %v536, 0.0
    %v560 = vmax.f32 %v541, 0.0
    %v561 = vmax.f32 %v546, 0.0
    %v562 = vld [vmem:[%s5] sm:$0xff]
    %v563 = vld [vmem:[%s5 + $0x8] sm:$0xff]
    %v564 = vld [vmem:[%s5 + $0x10] sm:$0xff]
    %v565 = vld [vmem:[%s5 + $0x18] sm:$0xff]
    %v566 = vld [vmem:[#allocation7] sm:$0x1]
    %v568 = vlaneseq
    %v569 = vshrl.u32 %v568, 7
    %v570 = vsub.s32 0, %v569
    %v571 = vrot.slane %v566, %v570
    %v574 = vsel %vm379, %v549, 0
    %v577 = vsel %vm379, %v550, 0
    %v580 = vsel %vm379, %v551, 0
    %v583 = vsel %vm379, %v552, 0
    %v586 = vsel %vm379, %v553, 0
    %v589 = vsel %vm379, %v554, 0
    %v592 = vsel %vm379, %v555, 0
    %v595 = vsel %vm379, %v556, 0
    %v598 = vsel %vm379, %v557, 0
    %v601 = vsel %vm379, %v558, 0
    %v604 = vsel %vm379, %v559, 0
    %v607 = vsel %vm379, %v560, 0
    %v610 = vsel %vm379, %v561, 0
    %612 = vmatprep.subr.mxu0 0.0
    %613 = vmatpush1.msra.mxu0 %v562
    %614 = vmatprep.subr.mxu0 0.0
    %615 = vmatpush1.msra.mxu0 %v563
    %616 = vmatprep.subr.mxu0 0.0
    %617 = vmatpush1.msra.mxu0 %v564
    %618 = vmatprep.subr.mxu0 0.0
    %619 = vmatpush1.msra.mxu0 %v565
    %620 = vmatprep.subr.mxu0 0.0
    %621 = vmatpush1.msra.mxu0 0.0
    %622 = vmatprep.subr.mxu0 0.0
    %623 = vmatpush1.msra.mxu0 0.0
    %624 = vmatprep.subr.mxu0 0.0
    %625 = vmatpush1.msra.mxu0 0.0
    %626 = vmatprep.subr.mxu0 0.0
    %627 = vmatpush1.msra.mxu0 0.0
    %628 = vmatprep.subr.mxu0 0.0
    %629 = vmatpush1.msra.mxu0 0.0
    %630 = vmatprep.subr.mxu0 0.0
    %631 = vmatpush1.msra.mxu0 0.0
    %632 = vmatprep.subr.mxu0 0.0
    %633 = vmatpush1.msra.mxu0 0.0
    %634 = vmatprep.subr.mxu0 0.0
    %635 = vmatpush1.msra.mxu0 0.0
    %636 = vmatprep.subr.mxu0 0.0
    %637 = vmatpush1.msra.mxu0 0.0
    %638 = vmatprep.subr.mxu0 0.0
    %639 = vmatpush1.msra.mxu0 0.0
    %640 = vmatprep.subr.mxu0 0.0
    %641 = vmatpush1.msra.mxu0 0.0
    %642 = vmatprep.subr.mxu0 0.0
    %643 = vmatpush1.msra.mxu0 0.0
    %644 = vmatprep.subr.mxu0 0.0
    %645 = vmatpush1.msra.mxu0 0.0
    %646 = vmatprep.subr.mxu0 0.0
    %647 = vmatpush1.msra.mxu0 0.0
    %648 = vmatprep.subr.mxu0 0.0
    %649 = vmatpush1.msra.mxu0 0.0
    %650 = vmatprep.subr.mxu0 0.0
    %651 = vmatpush1.msra.mxu0 0.0
    %652 = vmatprep.subr.mxu0 0.0
    %653 = vmatpush1.msra.mxu0 0.0
    %654 = vmatprep.subr.mxu0 0.0
    %655 = vmatpush1.msra.mxu0 0.0
    %656 = vmatprep.subr.mxu0 0.0
    %657 = vmatpush1.msra.mxu0 0.0
    %658 = vmatprep.subr.mxu0 0.0
    %659 = vmatpush1.msra.mxu0 0.0
    %660 = vmatprep.subr.mxu0 0.0
    %661 = vmatpush1.msra.mxu0 0.0
    %662 = vmatprep.subr.mxu0 0.0
    %663 = vmatpush1.msra.mxu0 0.0
    %664 = vmatprep.subr.mxu0 0.0
    %665 = vmatpush1.msra.mxu0 0.0
    %666 = vmatprep.subr.mxu0 0.0
    %667 = vmatpush1.msra.mxu0 0.0
    %668 = vmatprep.subr.mxu0 0.0
    %669 = vmatpush1.msra.mxu0 0.0
    %670 = vmatprep.subr.mxu0 0.0
    %671 = vmatpush1.msra.mxu0 0.0
    %672 = vmatprep.subr.mxu0 0.0
    %673 = vmatpush1.msra.mxu0 0.0
    %674 = vmatprep.subr.mxu0 0.0
    %675 = vmatpush1.msra.mxu0 0.0
    %676 = vmatprep.mubr.f32.mxu0 0.0
    %677 = vmatmul.mubr.f32.gmra.mrb[0].mxu0 %v574
    %v678 = vpop.f32.mrb[0].mxu0
    %v679 = vadd.f32 %v571, %v678
    %v680 = vpop.f32.mrb[0].mxu0
    %681 = vmatprep.mubr.f32.mxu0 0.0
    %682 = vmatmul.mubr.f32.gmra.mrb[0].mxu0 %v577
    %v683 = vpop.f32.mrb[0].mxu0
    %v684 = vadd.f32 %v571, %v683
    %v685 = vpop.f32.mrb[0].mxu0
    %686 = vmatprep.mubr.f32.mxu0 0.0
    %687 = vmatmul.mubr.f32.gmra.mrb[0].mxu0 %v580
    %v688 = vpop.f32.mrb[0].mxu0
    %v689 = vadd.f32 %v571, %v688
    %v690 = vpop.f32.mrb[0].mxu0
    %691 = vmatprep.mubr.f32.mxu0 0.0
    %692 = vmatmul.mubr.f32.gmra.mrb[0].mxu0 %v583
    %v693 = vpop.f32.mrb[0].mxu0
    %v694 = vadd.f32 %v571, %v693
    %v695 = vpop.f32.mrb[0].mxu0
    %696 = vmatprep.mubr.f32.mxu0 0.0
    %697 = vmatmul.mubr.f32.gmra.mrb[0].mxu0 %v586
    %v698 = vpop.f32.mrb[0].mxu0
    %v699 = vadd.f32 %v571, %v698
    %v700 = vpop.f32.mrb[0].mxu0
    %701 = vmatprep.mubr.f32.mxu0 0.0
    %702 = vmatmul.mubr.f32.gmra.mrb[0].mxu0 %v589
    %v703 = vpop.f32.mrb[0].mxu0
    %v704 = vadd.f32 %v571, %v703
    %v705 = vpop.f32.mrb[0].mxu0
    %706 = vmatprep.mubr.f32.mxu0 0.0
    %707 = vmatmul.mubr.f32.gmra.mrb[0].mxu0 %v592
    %v708 = vpop.f32.mrb[0].mxu0
    %v709 = vadd.f32 %v571, %v708
    %v710 = vpop.f32.mrb[0].mxu0
    %711 = vmatprep.mubr.f32.mxu0 0.0
    %712 = vmatmul.mubr.f32.gmra.mrb[0].mxu0 %v595
    %v713 = vpop.f32.mrb[0].mxu0
    %v714 = vadd.f32 %v571, %v713
    %v715 = vpop.f32.mrb[0].mxu0
    %716 = vmatprep.mubr.f32.mxu0 0.0
    %717 = vmatmul.mubr.f32.gmra.mrb[0].mxu0 %v598
    %v718 = vpop.f32.mrb[0].mxu0
    %v719 = vadd.f32 %v571, %v718
    %v720 = vpop.f32.mrb[0].mxu0
    %721 = vmatprep.mubr.f32.mxu0 0.0
    %722 = vmatmul.mubr.f32.gmra.mrb[0].mxu0 %v601
    %v723 = vpop.f32.mrb[0].mxu0
    %v724 = vadd.f32 %v571, %v723
    %v725 = vpop.f32.mrb[0].mxu0
    %726 = vmatprep.mubr.f32.mxu0 0.0
    %727 = vmatmul.mubr.f32.gmra.mrb[0].mxu0 %v604
    %v728 = vpop.f32.mrb[0].mxu0
    %v729 = vadd.f32 %v571, %v728
    %v730 = vpop.f32.mrb[0].mxu0
    %731 = vmatprep.mubr.f32.mxu0 0.0
    %732 = vmatmul.mubr.f32.gmra.mrb[0].mxu0 %v607
    %v733 = vpop.f32.mrb[0].mxu0
    %v734 = vadd.f32 %v571, %v733
    %v735 = vpop.f32.mrb[0].mxu0
    %736 = vmatprep.mubr.f32.mxu0 0.0
    %737 = vmatmul.mubr.f32.gmra.mrb[0].mxu0 %v610
    %v738 = vpop.f32.mrb[0].mxu0
    %v739 = vadd.f32 %v571, %v738
    %v740 = vpop.f32.mrb[0].mxu0
    %741 = vdwg.mxu0
    %v742 = vmax.f32 %v679, 0.0
    %v743 = vmax.f32 %v684, 0.0
    %v744 = vmax.f32 %v689, 0.0
    %v745 = vmax.f32 %v694, 0.0
    %v746 = vmax.f32 %v699, 0.0
    %v747 = vmax.f32 %v704, 0.0
    %v748 = vmax.f32 %v709, 0.0
    %v749 = vmax.f32 %v714, 0.0
    %v750 = vmax.f32 %v719, 0.0
    %v751 = vmax.f32 %v724, 0.0
    %v752 = vmax.f32 %v729, 0.0
    %v753 = vmax.f32 %v734, 0.0
    %v754 = vmax.f32 %v739, 0.0
    %v755 = vld [vmem:[%s7] sm:$0xff]
    %v756 = vld [vmem:[%s7 + $0x8] sm:$0xff]
    %v757 = vld [vmem:[%s7 + $0x10] sm:$0xff]
    %v758 = vld [vmem:[%s7 + $0x18] sm:$0xff]
    %v759 = vld [vmem:[#allocation9] sm:$0x1]
    %v761 = vlaneseq
    %v762 = vshrl.u32 %v761, 7
    %v763 = vsub.s32 0, %v762
    %v764 = vrot.slane %v759, %v763
    %v767 = vsel %vm379, %v742, 0
    %v770 = vsel %vm379, %v743, 0
    %v773 = vsel %vm379, %v744, 0
    %v776 = vsel %vm379, %v745, 0
    %v779 = vsel %vm379, %v746, 0
    %v782 = vsel %vm379, %v747, 0
    %v785 = vsel %vm379, %v748, 0
    %v788 = vsel %vm379, %v749, 0
    %v791 = vsel %vm379, %v750, 0
    %v794 = vsel %vm379, %v751, 0
    %v797 = vsel %vm379, %v752, 0
    %v800 = vsel %vm379, %v753, 0
    %v803 = vsel %vm379, %v754, 0
    %805 = vmatprep.subr.mxu0 0.0
    %806 = vmatpush1.msra.mxu0 %v755
    %807 = vmatprep.subr.mxu0 0.0
    %808 = vmatpush1.msra.mxu0 %v756
    %809 = vmatprep.subr.mxu0 0.0
    %810 = vmatpush1.msra.mxu0 %v757
    %811 = vmatprep.subr.mxu0 0.0
    %812 = vmatpush1.msra.mxu0 %v758
    %813 = vmatprep.subr.mxu0 0.0
    %814 = vmatpush1.msra.mxu0 0.0
    %815 = vmatprep.subr.mxu0 0.0
    %816 = vmatpush1.msra.mxu0 0.0
    %817 = vmatprep.subr.mxu0 0.0
    %818 = vmatpush1.msra.mxu0 0.0
    %819 = vmatprep.subr.mxu0 0.0
    %820 = vmatpush1.msra.mxu0 0.0
    %821 = vmatprep.subr.mxu0 0.0
    %822 = vmatpush1.msra.mxu0 0.0
    %823 = vmatprep.subr.mxu0 0.0
    %824 = vmatpush1.msra.mxu0 0.0
    %825 = vmatprep.subr.mxu0 0.0
    %826 = vmatpush1.msra.mxu0 0.0
    %827 = vmatprep.subr.mxu0 0.0
    %828 = vmatpush1.msra.mxu0 0.0
    %829 = vmatprep.subr.mxu0 0.0
    %830 = vmatpush1.msra.mxu0 0.0
    %831 = vmatprep.subr.mxu0 0.0
    %832 = vmatpush1.msra.mxu0 0.0
    %833 = vmatprep.subr.mxu0 0.0
    %834 = vmatpush1.msra.mxu0 0.0
    %835 = vmatprep.subr.mxu0 0.0
    %836 = vmatpush1.msra.mxu0 0.0
    %837 = vmatprep.subr.mxu0 0.0
    %838 = vmatpush1.msra.mxu0 0.0
    %839 = vmatprep.subr.mxu0 0.0
    %840 = vmatpush1.msra.mxu0 0.0
    %841 = vmatprep.subr.mxu0 0.0
    %842 = vmatpush1.msra.mxu0 0.0
    %843 = vmatprep.subr.mxu0 0.0
    %844 = vmatpush1.msra.mxu0 0.0
    %845 = vmatprep.subr.mxu0 0.0
    %846 = vmatpush1.msra.mxu0 0.0
    %847 = vmatprep.subr.mxu0 0.0
    %848 = vmatpush1.msra.mxu0 0.0
    %849 = vmatprep.subr.mxu0 0.0
    %850 = vmatpush1.msra.mxu0 0.0
    %851 = vmatprep.subr.mxu0 0.0
    %852 = vmatpush1.msra.mxu0 0.0
    %853 = vmatprep.subr.mxu0 0.0
    %854 = vmatpush1.msra.mxu0 0.0
    %855 = vmatprep.subr.mxu0 0.0
    %856 = vmatpush1.msra.mxu0 0.0
    %857 = vmatprep.subr.mxu0 0.0
    %858 = vmatpush1.msra.mxu0 0.0
    %859 = vmatprep.subr.mxu0 0.0
    %860 = vmatpush1.msra.mxu0 0.0
    %861 = vmatprep.subr.mxu0 0.0
    %862 = vmatpush1.msra.mxu0 0.0
    %863 = vmatprep.subr.mxu0 0.0
    %864 = vmatpush1.msra.mxu0 0.0
    %865 = vmatprep.subr.mxu0 0.0
    %866 = vmatpush1.msra.mxu0 0.0
    %867 = vmatprep.subr.mxu0 0.0
    %868 = vmatpush1.msra.mxu0 0.0
    %869 = vmatprep.mubr.f32.mxu0 0.0
    %870 = vmatmul.mubr.f32.gmra.mrb[0].mxu0 %v767
    %v871 = vpop.f32.mrb[0].mxu0
    %v872 = vadd.f32 %v764, %v871
    %v873 = vpop.f32.mrb[0].mxu0
    %874 = vmatprep.mubr.f32.mxu0 0.0
    %875 = vmatmul.mubr.f32.gmra.mrb[0].mxu0 %v770
    %v876 = vpop.f32.mrb[0].mxu0
    %v877 = vadd.f32 %v764, %v876
    %v878 = vpop.f32.mrb[0].mxu0
    %879 = vmatprep.mubr.f32.mxu0 0.0
    %880 = vmatmul.mubr.f32.gmra.mrb[0].mxu0 %v773
    %v881 = vpop.f32.mrb[0].mxu0
    %v882 = vadd.f32 %v764, %v881
    %v883 = vpop.f32.mrb[0].mxu0
    %884 = vmatprep.mubr.f32.mxu0 0.0
    %885 = vmatmul.mubr.f32.gmra.mrb[0].mxu0 %v776
    %v886 = vpop.f32.mrb[0].mxu0
    %v887 = vadd.f32 %v764, %v886
    %v888 = vpop.f32.mrb[0].mxu0
    %889 = vmatprep.mubr.f32.mxu0 0.0
    %890 = vmatmul.mubr.f32.gmra.mrb[0].mxu0 %v779
    %v891 = vpop.f32.mrb[0].mxu0
    %v892 = vadd.f32 %v764, %v891
    %v893 = vpop.f32.mrb[0].mxu0
    %894 = vmatprep.mubr.f32.mxu0 0.0
    %895 = vmatmul.mubr.f32.gmra.mrb[0].mxu0 %v782
    %v896 = vpop.f32.mrb[0].mxu0
    %v897 = vadd.f32 %v764, %v896
    %v898 = vpop.f32.mrb[0].mxu0
    %899 = vmatprep.mubr.f32.mxu0 0.0
    %900 = vmatmul.mubr.f32.gmra.mrb[0].mxu0 %v785
    %v901 = vpop.f32.mrb[0].mxu0
    %v902 = vadd.f32 %v764, %v901
    %v903 = vpop.f32.mrb[0].mxu0
    %904 = vmatprep.mubr.f32.mxu0 0.0
    %905 = vmatmul.mubr.f32.gmra.mrb[0].mxu0 %v788
    %v906 = vpop.f32.mrb[0].mxu0
    %v907 = vadd.f32 %v764, %v906
    %v908 = vpop.f32.mrb[0].mxu0
    %909 = vmatprep.mubr.f32.mxu0 0.0
    %910 = vmatmul.mubr.f32.gmra.mrb[0].mxu0 %v791
    %v911 = vpop.f32.mrb[0].mxu0
    %v912 = vadd.f32 %v764, %v911
    %v913 = vpop.f32.mrb[0].mxu0
    %914 = vmatprep.mubr.f32.mxu0 0.0
    %915 = vmatmul.mubr.f32.gmra.mrb[0].mxu0 %v794
    %v916 = vpop.f32.mrb[0].mxu0
    %v917 = vadd.f32 %v764, %v916
    %v918 = vpop.f32.mrb[0].mxu0
    %919 = vmatprep.mubr.f32.mxu0 0.0
    %920 = vmatmul.mubr.f32.gmra.mrb[0].mxu0 %v797
    %v921 = vpop.f32.mrb[0].mxu0
    %v922 = vadd.f32 %v764, %v921
    %v923 = vpop.f32.mrb[0].mxu0
    %924 = vmatprep.mubr.f32.mxu0 0.0
    %925 = vmatmul.mubr.f32.gmra.mrb[0].mxu0 %v800
    %v926 = vpop.f32.mrb[0].mxu0
    %v927 = vadd.f32 %v764, %v926
    %v928 = vpop.f32.mrb[0].mxu0
    %929 = vmatprep.mubr.f32.mxu0 0.0
    %930 = vmatmul.mubr.f32.gmra.mrb[0].mxu0 %v803
    %v931 = vpop.f32.mrb[0].mxu0
    %v932 = vadd.f32 %v764, %v931
    %v933 = vpop.f32.mrb[0].mxu0
    %934 = vdwg.mxu0
    %v935 = vmax.f32 %v872, 0.0
    %v936 = vmax.f32 %v877, 0.0
    %v937 = vmax.f32 %v882, 0.0
    %v938 = vmax.f32 %v887, 0.0
    %v939 = vmax.f32 %v892, 0.0
    %v940 = vmax.f32 %v897, 0.0
    %v941 = vmax.f32 %v902, 0.0
    %v942 = vmax.f32 %v907, 0.0
    %v943 = vmax.f32 %v912, 0.0
    %v944 = vmax.f32 %v917, 0.0
    %v945 = vmax.f32 %v922, 0.0
    %v946 = vmax.f32 %v927, 0.0
    %v947 = vmax.f32 %v932, 0.0
    %v948 = vld [vmem:[%s9] sm:$0xff]
    %v949 = vld [vmem:[%s9 + $0x8] sm:$0xff]
    %v950 = vld [vmem:[%s9 + $0x10] sm:$0xff]
    %v951 = vld [vmem:[%s9 + $0x18] sm:$0xff]
    %v952 = vld [vmem:[%s10] sm:$0xff]
    %v953 = vld [vmem:[%s10 + $0x8] sm:$0xff]
    %v954 = vld [vmem:[#allocation10] sm:$0x1]
    %955 = vmatprep.subr.mxu0 0.0
    %956 = vmatpush1.msra.mxu0 %v952
    %957 = vmatprep.subr.mxu0 0.0
    %958 = vmatpush1.msra.mxu0 %v953
    %959 = vmatprep.subr.mxu0 0.0
    %960 = vmatpush1.msra.mxu0 0.0
    %961 = vmatprep.subr.mxu0 0.0
    %962 = vmatpush1.msra.mxu0 0.0
    %963 = vmatprep.subr.mxu0 0.0
    %964 = vmatpush1.msra.mxu0 0.0
    %965 = vmatprep.subr.mxu0 0.0
    %966 = vmatpush1.msra.mxu0 0.0
    %967 = vmatprep.subr.mxu0 0.0
    %968 = vmatpush1.msra.mxu0 0.0
    %969 = vmatprep.subr.mxu0 0.0
    %970 = vmatpush1.msra.mxu0 0.0
    %971 = vmatprep.subr.mxu0 0.0
    %972 = vmatpush1.msra.mxu0 0.0
    %973 = vmatprep.subr.mxu0 0.0
    %974 = vmatpush1.msra.mxu0 0.0
    %975 = vmatprep.subr.mxu0 0.0
    %976 = vmatpush1.msra.mxu0 0.0
    %977 = vmatprep.subr.mxu0 0.0
    %978 = vmatpush1.msra.mxu0 0.0
    %979 = vmatprep.subr.mxu0 0.0
    %980 = vmatpush1.msra.mxu0 0.0
    %981 = vmatprep.subr.mxu0 0.0
    %982 = vmatpush1.msra.mxu0 0.0
    %983 = vmatprep.subr.mxu0 0.0
    %984 = vmatpush1.msra.mxu0 0.0
    %985 = vmatprep.subr.mxu0 0.0
    %986 = vmatpush1.msra.mxu0 0.0
    %987 = vmatprep.subr.mxu0 0.0
    %988 = vmatpush1.msra.mxu0 0.0
    %989 = vmatprep.subr.mxu0 0.0
    %990 = vmatpush1.msra.mxu0 0.0
    %991 = vmatprep.subr.mxu0 0.0
    %992 = vmatpush1.msra.mxu0 0.0
    %993 = vmatprep.subr.mxu0 0.0
    %994 = vmatpush1.msra.mxu0 0.0
    %995 = vmatprep.subr.mxu0 0.0
    %996 = vmatpush1.msra.mxu0 0.0
    %997 = vmatprep.subr.mxu0 0.0
    %998 = vmatpush1.msra.mxu0 0.0
    %999 = vmatprep.subr.mxu0 0.0
    %1000 = vmatpush1.msra.mxu0 0.0
    %1001 = vmatprep.subr.mxu0 0.0
    %1002 = vmatpush1.msra.mxu0 0.0
    %1003 = vmatprep.subr.mxu0 0.0
    %1004 = vmatpush1.msra.mxu0 0.0
    %1005 = vmatprep.subr.mxu0 0.0
    %1006 = vmatpush1.msra.mxu0 0.0
    %1007 = vmatprep.subr.mxu0 0.0
    %1008 = vmatpush1.msra.mxu0 0.0
    %1009 = vmatprep.subr.mxu0 0.0
    %1010 = vmatpush1.msra.mxu0 0.0
    %1011 = vmatprep.subr.mxu0 0.0
    %1012 = vmatpush1.msra.mxu0 0.0
    %1013 = vmatprep.subr.mxu0 0.0
    %1014 = vmatpush1.msra.mxu0 0.0
    %1015 = vmatprep.subr.mxu0 0.0
    %1016 = vmatpush1.msra.mxu0 0.0
    %1017 = vmatprep.subr.mxu0 0.0
    %1018 = vmatpush1.msra.mxu0 0.0
    %1019 = vmatprep.mubr.f32.mxu0 0.0
    %1020 = vmatmul.mubr.f32.gmra.mrb[0].mxu0 %v187
    %v1021 = vpop.f32.mrb[0].mxu0
    %v1022 = vadd.f32 0.0, %v1021
    %v1023 = vpop.f32.mrb[0].mxu0
    %1024 = vmatprep.mubr.f32.mxu0 0.0
    %1025 = vmatmul.mubr.f32.gmra.mrb[0].mxu0 %v190
    %v1026 = vpop.f32.mrb[0].mxu0
    %v1027 = vadd.f32 0.0, %v1026
    %v1028 = vpop.f32.mrb[0].mxu0
    %1029 = vmatprep.mubr.f32.mxu0 0.0
    %1030 = vmatmul.mubr.f32.gmra.mrb[0].mxu0 %v193
    %v1031 = vpop.f32.mrb[0].mxu0
    %v1032 = vadd.f32 0.0, %v1031
    %v1033 = vpop.f32.mrb[0].mxu0
    %1034 = vmatprep.mubr.f32.mxu0 0.0
    %1035 = vmatmul.mubr.f32.gmra.mrb[0].mxu0 %v196
    %v1036 = vpop.f32.mrb[0].mxu0
    %v1037 = vadd.f32 0.0, %v1036
    %v1038 = vpop.f32.mrb[0].mxu0
    %1039 = vmatprep.mubr.f32.mxu0 0.0
    %1040 = vmatmul.mubr.f32.gmra.mrb[0].mxu0 %v199
    %v1041 = vpop.f32.mrb[0].mxu0
    %v1042 = vadd.f32 0.0, %v1041
    %v1043 = vpop.f32.mrb[0].mxu0
    %1044 = vmatprep.mubr.f32.mxu0 0.0
    %1045 = vmatmul.mubr.f32.gmra.mrb[0].mxu0 %v202
    %v1046 = vpop.f32.mrb[0].mxu0
    %v1047 = vadd.f32 0.0, %v1046
    %v1048 = vpop.f32.mrb[0].mxu0
    %1049 = vmatprep.mubr.f32.mxu0 0.0
    %1050 = vmatmul.mubr.f32.gmra.mrb[0].mxu0 %v205
    %v1051 = vpop.f32.mrb[0].mxu0
    %v1052 = vadd.f32 0.0, %v1051
    %v1053 = vpop.f32.mrb[0].mxu0
    %1054 = vmatprep.mubr.f32.mxu0 0.0
    %1055 = vmatmul.mubr.f32.gmra.mrb[0].mxu0 %v208
    %v1056 = vpop.f32.mrb[0].mxu0
    %v1057 = vadd.f32 0.0, %v1056
    %v1058 = vpop.f32.mrb[0].mxu0
    %1059 = vmatprep.mubr.f32.mxu0 0.0
    %1060 = vmatmul.mubr.f32.gmra.mrb[0].mxu0 %v211
    %v1061 = vpop.f32.mrb[0].mxu0
    %v1062 = vadd.f32 0.0, %v1061
    %v1063 = vpop.f32.mrb[0].mxu0
    %1064 = vmatprep.mubr.f32.mxu0 0.0
    %1065 = vmatmul.mubr.f32.gmra.mrb[0].mxu0 %v214
    %v1066 = vpop.f32.mrb[0].mxu0
    %v1067 = vadd.f32 0.0, %v1066
    %v1068 = vpop.f32.mrb[0].mxu0
    %1069 = vmatprep.mubr.f32.mxu0 0.0
    %1070 = vmatmul.mubr.f32.gmra.mrb[0].mxu0 %v217
    %v1071 = vpop.f32.mrb[0].mxu0
    %v1072 = vadd.f32 0.0, %v1071
    %v1073 = vpop.f32.mrb[0].mxu0
    %1074 = vmatprep.mubr.f32.mxu0 0.0
    %1075 = vmatmul.mubr.f32.gmra.mrb[0].mxu0 %v220
    %v1076 = vpop.f32.mrb[0].mxu0
    %v1077 = vadd.f32 0.0, %v1076
    %v1078 = vpop.f32.mrb[0].mxu0
    %1079 = vmatprep.mubr.f32.mxu0 0.0
    %1080 = vmatmul.mubr.f32.gmra.mrb[0].mxu0 %v223
    %v1081 = vpop.f32.mrb[0].mxu0
    %v1082 = vadd.f32 0.0, %v1081
    %v1083 = vpop.f32.mrb[0].mxu0
    %1084 = vdwg.mxu0
    %v1086 = vsel %vm379, %v935, 0
    %v1089 = vsel %vm379, %v936, 0
    %v1092 = vsel %vm379, %v937, 0
    %v1095 = vsel %vm379, %v938, 0
    %v1098 = vsel %vm379, %v939, 0
    %v1101 = vsel %vm379, %v940, 0
    %v1104 = vsel %vm379, %v941, 0
    %v1107 = vsel %vm379, %v942, 0
    %v1110 = vsel %vm379, %v943, 0
    %v1113 = vsel %vm379, %v944, 0
    %v1116 = vsel %vm379, %v945, 0
    %v1119 = vsel %vm379, %v946, 0
    %v1122 = vsel %vm379, %v947, 0
    %1124 = vmatprep.subr.mxu0 0.0
    %1125 = vmatpush1.msra.mxu0 %v948
    %1126 = vmatprep.subr.mxu0 0.0
    %1127 = vmatpush1.msra.mxu0 %v949
    %1128 = vmatprep.subr.mxu0 0.0
    %1129 = vmatpush1.msra.mxu0 %v950
    %1130 = vmatprep.subr.mxu0 0.0
    %1131 = vmatpush1.msra.mxu0 %v951
    %1132 = vmatprep.subr.mxu0 0.0
    %1133 = vmatpush1.msra.mxu0 0.0
    %1134 = vmatprep.subr.mxu0 0.0
    %1135 = vmatpush1.msra.mxu0 0.0
    %1136 = vmatprep.subr.mxu0 0.0
    %1137 = vmatpush1.msra.mxu0 0.0
    %1138 = vmatprep.subr.mxu0 0.0
    %1139 = vmatpush1.msra.mxu0 0.0
    %1140 = vmatprep.subr.mxu0 0.0
    %1141 = vmatpush1.msra.mxu0 0.0
    %1142 = vmatprep.subr.mxu0 0.0
    %1143 = vmatpush1.msra.mxu0 0.0
    %1144 = vmatprep.subr.mxu0 0.0
    %1145 = vmatpush1.msra.mxu0 0.0
    %1146 = vmatprep.subr.mxu0 0.0
    %1147 = vmatpush1.msra.mxu0 0.0
    %1148 = vmatprep.subr.mxu0 0.0
    %1149 = vmatpush1.msra.mxu0 0.0
    %1150 = vmatprep.subr.mxu0 0.0
    %1151 = vmatpush1.msra.mxu0 0.0
    %1152 = vmatprep.subr.mxu0 0.0
    %1153 = vmatpush1.msra.mxu0 0.0
    %1154 = vmatprep.subr.mxu0 0.0
    %1155 = vmatpush1.msra.mxu0 0.0
    %1156 = vmatprep.subr.mxu0 0.0
    %1157 = vmatpush1.msra.mxu0 0.0
    %1158 = vmatprep.subr.mxu0 0.0
    %1159 = vmatpush1.msra.mxu0 0.0
    %1160 = vmatprep.subr.mxu0 0.0
    %1161 = vmatpush1.msra.mxu0 0.0
    %1162 = vmatprep.subr.mxu0 0.0
    %1163 = vmatpush1.msra.mxu0 0.0
    %1164 = vmatprep.subr.mxu0 0.0
    %1165 = vmatpush1.msra.mxu0 0.0
    %1166 = vmatprep.subr.mxu0 0.0
    %1167 = vmatpush1.msra.mxu0 0.0
    %1168 = vmatprep.subr.mxu0 0.0
    %1169 = vmatpush1.msra.mxu0 0.0
    %1170 = vmatprep.subr.mxu0 0.0
    %1171 = vmatpush1.msra.mxu0 0.0
    %1172 = vmatprep.subr.mxu0 0.0
    %1173 = vmatpush1.msra.mxu0 0.0
    %1174 = vmatprep.subr.mxu0 0.0
    %1175 = vmatpush1.msra.mxu0 0.0
    %1176 = vmatprep.subr.mxu0 0.0
    %1177 = vmatpush1.msra.mxu0 0.0
    %1178 = vmatprep.subr.mxu0 0.0
    %1179 = vmatpush1.msra.mxu0 0.0
    %1180 = vmatprep.subr.mxu0 0.0
    %1181 = vmatpush1.msra.mxu0 0.0
    %1182 = vmatprep.subr.mxu0 0.0
    %1183 = vmatpush1.msra.mxu0 0.0
    %1184 = vmatprep.subr.mxu0 0.0
    %1185 = vmatpush1.msra.mxu0 0.0
    %1186 = vmatprep.subr.mxu0 0.0
    %1187 = vmatpush1.msra.mxu0 0.0
    %1188 = vmatprep.mubr.f32.mxu0 0.0
    %1189 = vmatmul.mubr.f32.gmra.mrb[0].mxu0 %v1086
    %v1190 = vpop.f32.mrb[0].mxu0
    %v1191 = vadd.f32 %v1022, %v1190
    %v1192 = vpop.f32.mrb[0].mxu0
    %1193 = vmatprep.mubr.f32.mxu0 0.0
    %1194 = vmatmul.mubr.f32.gmra.mrb[0].mxu0 %v1089
    %v1195 = vpop.f32.mrb[0].mxu0
    %v1196 = vadd.f32 %v1027, %v1195
    %v1197 = vpop.f32.mrb[0].mxu0
    %1198 = vmatprep.mubr.f32.mxu0 0.0
    %1199 = vmatmul.mubr.f32.gmra.mrb[0].mxu0 %v1092
    %v1200 = vpop.f32.mrb[0].mxu0
    %v1201 = vadd.f32 %v1032, %v1200
    %v1202 = vpop.f32.mrb[0].mxu0
    %1203 = vmatprep.mubr.f32.mxu0 0.0
    %1204 = vmatmul.mubr.f32.gmra.mrb[0].mxu0 %v1095
    %v1205 = vpop.f32.mrb[0].mxu0
    %v1206 = vadd.f32 %v1037, %v1205
    %v1207 = vpop.f32.mrb[0].mxu0
    %1208 = vmatprep.mubr.f32.mxu0 0.0
    %1209 = vmatmul.mubr.f32.gmra.mrb[0].mxu0 %v1098
    %v1210 = vpop.f32.mrb[0].mxu0
    %v1211 = vadd.f32 %v1042, %v1210
    %v1212 = vpop.f32.mrb[0].mxu0
    %1213 = vmatprep.mubr.f32.mxu0 0.0
    %1214 = vmatmul.mubr.f32.gmra.mrb[0].mxu0 %v1101
    %v1215 = vpop.f32.mrb[0].mxu0
    %v1216 = vadd.f32 %v1047, %v1215
    %v1217 = vpop.f32.mrb[0].mxu0
    %1218 = vmatprep.mubr.f32.mxu0 0.0
    %1219 = vmatmul.mubr.f32.gmra.mrb[0].mxu0 %v1104
    %v1220 = vpop.f32.mrb[0].mxu0
    %v1221 = vadd.f32 %v1052, %v1220
    %v1222 = vpop.f32.mrb[0].mxu0
    %1223 = vmatprep.mubr.f32.mxu0 0.0
    %1224 = vmatmul.mubr.f32.gmra.mrb[0].mxu0 %v1107
    %v1225 = vpop.f32.mrb[0].mxu0
    %v1226 = vadd.f32 %v1057, %v1225
    %v1227 = vpop.f32.mrb[0].mxu0
    %1228 = vmatprep.mubr.f32.mxu0 0.0
    %1229 = vmatmul.mubr.f32.gmra.mrb[0].mxu0 %v1110
    %v1230 = vpop.f32.mrb[0].mxu0
    %v1231 = vadd.f32 %v1062, %v1230
    %v1232 = vpop.f32.mrb[0].mxu0
    %1233 = vmatprep.mubr.f32.mxu0 0.0
    %1234 = vmatmul.mubr.f32.gmra.mrb[0].mxu0 %v1113
    %v1235 = vpop.f32.mrb[0].mxu0
    %v1236 = vadd.f32 %v1067, %v1235
    %v1237 = vpop.f32.mrb[0].mxu0
    %1238 = vmatprep.mubr.f32.mxu0 0.0
    %1239 = vmatmul.mubr.f32.gmra.mrb[0].mxu0 %v1116
    %v1240 = vpop.f32.mrb[0].mxu0
    %v1241 = vadd.f32 %v1072, %v1240
    %v1242 = vpop.f32.mrb[0].mxu0
    %1243 = vmatprep.mubr.f32.mxu0 0.0
    %1244 = vmatmul.mubr.f32.gmra.mrb[0].mxu0 %v1119
    %v1245 = vpop.f32.mrb[0].mxu0
    %v1246 = vadd.f32 %v1077, %v1245
    %v1247 = vpop.f32.mrb[0].mxu0
    %1248 = vmatprep.mubr.f32.mxu0 0.0
    %1249 = vmatmul.mubr.f32.gmra.mrb[0].mxu0 %v1122
    %v1250 = vpop.f32.mrb[0].mxu0
    %v1251 = vadd.f32 %v1082, %v1250
    %v1252 = vpop.f32.mrb[0].mxu0
    %1253 = vdwg.mxu0
    %v1255 = vlaneseq
    %v1256 = vshrl.u32 %v1255, 7
    %v1257 = vsub.s32 0, %v1256
    %v1258 = vrot.slane %v954, %v1257
    %v1260 = vadd.f32 %v1191, %v1258
    %v1261 = vadd.f32 %v1196, %v1258
    %v1262 = vadd.f32 %v1201, %v1258
    %v1263 = vadd.f32 %v1206, %v1258
    %v1264 = vadd.f32 %v1211, %v1258
    %v1265 = vadd.f32 %v1216, %v1258
    %v1266 = vadd.f32 %v1221, %v1258
    %v1267 = vadd.f32 %v1226, %v1258
    %v1268 = vadd.f32 %v1231, %v1258
    %v1269 = vadd.f32 %v1236, %v1258
    %v1270 = vadd.f32 %v1241, %v1258
    %v1271 = vadd.f32 %v1246, %v1258
    %v1272 = vadd.f32 %v1251, %v1258
    %v1273 = vmax.f32 %v1260, 0.0
    %v1274 = vmax.f32 %v1261, 0.0
    %v1275 = vmax.f32 %v1262, 0.0
    %v1276 = vmax.f32 %v1263, 0.0
    %v1277 = vmax.f32 %v1264, 0.0
    %v1278 = vmax.f32 %v1265, 0.0
    %v1279 = vmax.f32 %v1266, 0.0
    %v1280 = vmax.f32 %v1267, 0.0
    %v1281 = vmax.f32 %v1268, 0.0
    %v1282 = vmax.f32 %v1269, 0.0
    %v1283 = vmax.f32 %v1270, 0.0
    %v1284 = vmax.f32 %v1271, 0.0
    %v1285 = vmax.f32 %v1272, 0.0
    %v1286 = vld [vmem:[%s12] sm:$0xff]
    %v1287 = vld [vmem:[%s12 + $0x8] sm:$0xff]
    %v1288 = vld [vmem:[%s12 + $0x10] sm:$0xff]
    %v1289 = vld [vmem:[%s12 + $0x18] sm:$0xff]
    %v1290 = vld [vmem:[#allocation12] sm:$0x1]
    %v1292 = vlaneseq
    %v1293 = vshrl.u32 %v1292, 7
    %v1294 = vsub.s32 0, %v1293
    %v1295 = vrot.slane %v1290, %v1294
    %v1298 = vsel %vm379, %v1273, 0
    %v1301 = vsel %vm379, %v1274, 0
    %v1304 = vsel %vm379, %v1275, 0
    %v1307 = vsel %vm379, %v1276, 0
    %v1310 = vsel %vm379, %v1277, 0
    %v1313 = vsel %vm379, %v1278, 0
    %v1316 = vsel %vm379, %v1279, 0
    %v1319 = vsel %vm379, %v1280, 0
    %v1322 = vsel %vm379, %v1281, 0
    %v1325 = vsel %vm379, %v1282, 0
    %v1328 = vsel %vm379, %v1283, 0
    %v1331 = vsel %vm379, %v1284, 0
    %v1334 = vsel %vm379, %v1285, 0
    %1336 = vmatprep.subr.mxu0 0.0
    %1337 = vmatpush1.msra.mxu0 %v1286
    %1338 = vmatprep.subr.mxu0 0.0
    %1339 = vmatpush1.msra.mxu0 %v1287
    %1340 = vmatprep.subr.mxu0 0.0
    %1341 = vmatpush1.msra.mxu0 %v1288
    %1342 = vmatprep.subr.mxu0 0.0
    %1343 = vmatpush1.msra.mxu0 %v1289
    %1344 = vmatprep.subr.mxu0 0.0
    %1345 = vmatpush1.msra.mxu0 0.0
    %1346 = vmatprep.subr.mxu0 0.0
    %1347 = vmatpush1.msra.mxu0 0.0
    %1348 = vmatprep.subr.mxu0 0.0
    %1349 = vmatpush1.msra.mxu0 0.0
    %1350 = vmatprep.subr.mxu0 0.0
    %1351 = vmatpush1.msra.mxu0 0.0
    %1352 = vmatprep.subr.mxu0 0.0
    %1353 = vmatpush1.msra.mxu0 0.0
    %1354 = vmatprep.subr.mxu0 0.0
    %1355 = vmatpush1.msra.mxu0 0.0
    %1356 = vmatprep.subr.mxu0 0.0
    %1357 = vmatpush1.msra.mxu0 0.0
    %1358 = vmatprep.subr.mxu0 0.0
    %1359 = vmatpush1.msra.mxu0 0.0
    %1360 = vmatprep.subr.mxu0 0.0
    %1361 = vmatpush1.msra.mxu0 0.0
    %1362 = vmatprep.subr.mxu0 0.0
    %1363 = vmatpush1.msra.mxu0 0.0
    %1364 = vmatprep.subr.mxu0 0.0
    %1365 = vmatpush1.msra.mxu0 0.0
    %1366 = vmatprep.subr.mxu0 0.0
    %1367 = vmatpush1.msra.mxu0 0.0
    %1368 = vmatprep.subr.mxu0 0.0
    %1369 = vmatpush1.msra.mxu0 0.0
    %1370 = vmatprep.subr.mxu0 0.0
    %1371 = vmatpush1.msra.mxu0 0.0
    %1372 = vmatprep.subr.mxu0 0.0
    %1373 = vmatpush1.msra.mxu0 0.0
    %1374 = vmatprep.subr.mxu0 0.0
    %1375 = vmatpush1.msra.mxu0 0.0
    %1376 = vmatprep.subr.mxu0 0.0
    %1377 = vmatpush1.msra.mxu0 0.0
    %1378 = vmatprep.subr.mxu0 0.0
    %1379 = vmatpush1.msra.mxu0 0.0
    %1380 = vmatprep.subr.mxu0 0.0
    %1381 = vmatpush1.msra.mxu0 0.0
    %1382 = vmatprep.subr.mxu0 0.0
    %1383 = vmatpush1.msra.mxu0 0.0
    %1384 = vmatprep.subr.mxu0 0.0
    %1385 = vmatpush1.msra.mxu0 0.0
    %1386 = vmatprep.subr.mxu0 0.0
    %1387 = vmatpush1.msra.mxu0 0.0
    %1388 = vmatprep.subr.mxu0 0.0
    %1389 = vmatpush1.msra.mxu0 0.0
    %1390 = vmatprep.subr.mxu0 0.0
    %1391 = vmatpush1.msra.mxu0 0.0
    %1392 = vmatprep.subr.mxu0 0.0
    %1393 = vmatpush1.msra.mxu0 0.0
    %1394 = vmatprep.subr.mxu0 0.0
    %1395 = vmatpush1.msra.mxu0 0.0
    %1396 = vmatprep.subr.mxu0 0.0
    %1397 = vmatpush1.msra.mxu0 0.0
    %1398 = vmatprep.subr.mxu0 0.0
    %1399 = vmatpush1.msra.mxu0 0.0
    %1400 = vmatprep.mubr.f32.mxu0 0.0
    %1401 = vmatmul.mubr.f32.gmra.mrb[0].mxu0 %v1298
    %v1402 = vpop.f32.mrb[0].mxu0
    %v1403 = vadd.f32 %v1295, %v1402
    %v1404 = vpop.f32.mrb[0].mxu0
    %1405 = vmatprep.mubr.f32.mxu0 0.0
    %1406 = vmatmul.mubr.f32.gmra.mrb[0].mxu0 %v1301
    %v1407 = vpop.f32.mrb[0].mxu0
    %v1408 = vadd.f32 %v1295, %v1407
    %v1409 = vpop.f32.mrb[0].mxu0
    %1410 = vmatprep.mubr.f32.mxu0 0.0
    %1411 = vmatmul.mubr.f32.gmra.mrb[0].mxu0 %v1304
    %v1412 = vpop.f32.mrb[0].mxu0
    %v1413 = vadd.f32 %v1295, %v1412
    %v1414 = vpop.f32.mrb[0].mxu0
    %1415 = vmatprep.mubr.f32.mxu0 0.0
    %1416 = vmatmul.mubr.f32.gmra.mrb[0].mxu0 %v1307
    %v1417 = vpop.f32.mrb[0].mxu0
    %v1418 = vadd.f32 %v1295, %v1417
    %v1419 = vpop.f32.mrb[0].mxu0
    %1420 = vmatprep.mubr.f32.mxu0 0.0
    %1421 = vmatmul.mubr.f32.gmra.mrb[0].mxu0 %v1310
    %v1422 = vpop.f32.mrb[0].mxu0
    %v1423 = vadd.f32 %v1295, %v1422
    %v1424 = vpop.f32.mrb[0].mxu0
    %1425 = vmatprep.mubr.f32.mxu0 0.0
    %1426 = vmatmul.mubr.f32.gmra.mrb[0].mxu0 %v1313
    %v1427 = vpop.f32.mrb[0].mxu0
    %v1428 = vadd.f32 %v1295, %v1427
    %v1429 = vpop.f32.mrb[0].mxu0
    %1430 = vmatprep.mubr.f32.mxu0 0.0
    %1431 = vmatmul.mubr.f32.gmra.mrb[0].mxu0 %v1316
    %v1432 = vpop.f32.mrb[0].mxu0
    %v1433 = vadd.f32 %v1295, %v1432
    %v1434 = vpop.f32.mrb[0].mxu0
    %1435 = vmatprep.mubr.f32.mxu0 0.0
    %1436 = vmatmul.mubr.f32.gmra.mrb[0].mxu0 %v1319
    %v1437 = vpop.f32.mrb[0].mxu0
    %v1438 = vadd.f32 %v1295, %v1437
    %v1439 = vpop.f32.mrb[0].mxu0
    %1440 = vmatprep.mubr.f32.mxu0 0.0
    %1441 = vmatmul.mubr.f32.gmra.mrb[0].mxu0 %v1322
    %v1442 = vpop.f32.mrb[0].mxu0
    %v1443 = vadd.f32 %v1295, %v1442
    %v1444 = vpop.f32.mrb[0].mxu0
    %1445 = vmatprep.mubr.f32.mxu0 0.0
    %1446 = vmatmul.mubr.f32.gmra.mrb[0].mxu0 %v1325
    %v1447 = vpop.f32.mrb[0].mxu0
    %v1448 = vadd.f32 %v1295, %v1447
    %v1449 = vpop.f32.mrb[0].mxu0
    %1450 = vmatprep.mubr.f32.mxu0 0.0
    %1451 = vmatmul.mubr.f32.gmra.mrb[0].mxu0 %v1328
    %v1452 = vpop.f32.mrb[0].mxu0
    %v1453 = vadd.f32 %v1295, %v1452
    %v1454 = vpop.f32.mrb[0].mxu0
    %1455 = vmatprep.mubr.f32.mxu0 0.0
    %1456 = vmatmul.mubr.f32.gmra.mrb[0].mxu0 %v1331
    %v1457 = vpop.f32.mrb[0].mxu0
    %v1458 = vadd.f32 %v1295, %v1457
    %v1459 = vpop.f32.mrb[0].mxu0
    %1460 = vmatprep.mubr.f32.mxu0 0.0
    %1461 = vmatmul.mubr.f32.gmra.mrb[0].mxu0 %v1334
    %v1462 = vpop.f32.mrb[0].mxu0
    %v1463 = vadd.f32 %v1295, %v1462
    %v1464 = vpop.f32.mrb[0].mxu0
    %1465 = vdwg.mxu0
    %v1466 = vmax.f32 %v1403, 0.0
    %v1467 = vmax.f32 %v1408, 0.0
    %v1468 = vmax.f32 %v1413, 0.0
    %v1469 = vmax.f32 %v1418, 0.0
    %v1470 = vmax.f32 %v1423, 0.0
    %v1471 = vmax.f32 %v1428, 0.0
    %v1472 = vmax.f32 %v1433, 0.0
    %v1473 = vmax.f32 %v1438, 0.0
    %v1474 = vmax.f32 %v1443, 0.0
    %v1475 = vmax.f32 %v1448, 0.0
    %v1476 = vmax.f32 %v1453, 0.0
    %v1477 = vmax.f32 %v1458, 0.0
    %v1478 = vmax.f32 %v1463, 0.0
    %v1479 = vld [vmem:[%s14] sm:$0xff]
    %v1480 = vld [vmem:[%s14 + $0x8] sm:$0xff]
    %v1481 = vld [vmem:[%s14 + $0x10] sm:$0xff]
    %v1482 = vld [vmem:[%s14 + $0x18] sm:$0xff]
    %v1483 = vld [vmem:[#allocation13] sm:$0x1]
    %v1485 = vlaneseq
    %v1486 = vshrl.u32 %v1485, 7
    %v1487 = vsub.s32 0, %v1486
    %v1488 = vrot.slane %v1483, %v1487
    %v1491 = vsel %vm379, %v1466, 0
    %v1494 = vsel %vm379, %v1467, 0
    %v1497 = vsel %vm379, %v1468, 0
    %v1500 = vsel %vm379, %v1469, 0
    %v1503 = vsel %vm379, %v1470, 0
    %v1506 = vsel %vm379, %v1471, 0
    %v1509 = vsel %vm379, %v1472, 0
    %v1512 = vsel %vm379, %v1473, 0
    %v1515 = vsel %vm379, %v1474, 0
    %v1518 = vsel %vm379, %v1475, 0
    %v1521 = vsel %vm379, %v1476, 0
    %v1524 = vsel %vm379, %v1477, 0
    %v1527 = vsel %vm379, %v1478, 0
    %1529 = vmatprep.subr.mxu0 0.0
    %1530 = vmatpush1.msra.mxu0 %v1479
    %1531 = vmatprep.subr.mxu0 0.0
    %1532 = vmatpush1.msra.mxu0 %v1480
    %1533 = vmatprep.subr.mxu0 0.0
    %1534 = vmatpush1.msra.mxu0 %v1481
    %1535 = vmatprep.subr.mxu0 0.0
    %1536 = vmatpush1.msra.mxu0 %v1482
    %1537 = vmatprep.subr.mxu0 0.0
    %1538 = vmatpush1.msra.mxu0 0.0
    %1539 = vmatprep.subr.mxu0 0.0
    %1540 = vmatpush1.msra.mxu0 0.0
    %1541 = vmatprep.subr.mxu0 0.0
    %1542 = vmatpush1.msra.mxu0 0.0
    %1543 = vmatprep.subr.mxu0 0.0
    %1544 = vmatpush1.msra.mxu0 0.0
    %1545 = vmatprep.subr.mxu0 0.0
    %1546 = vmatpush1.msra.mxu0 0.0
    %1547 = vmatprep.subr.mxu0 0.0
    %1548 = vmatpush1.msra.mxu0 0.0
    %1549 = vmatprep.subr.mxu0 0.0
    %1550 = vmatpush1.msra.mxu0 0.0
    %1551 = vmatprep.subr.mxu0 0.0
    %1552 = vmatpush1.msra.mxu0 0.0
    %1553 = vmatprep.subr.mxu0 0.0
    %1554 = vmatpush1.msra.mxu0 0.0
    %1555 = vmatprep.subr.mxu0 0.0
    %1556 = vmatpush1.msra.mxu0 0.0
    %1557 = vmatprep.subr.mxu0 0.0
    %1558 = vmatpush1.msra.mxu0 0.0
    %1559 = vmatprep.subr.mxu0 0.0
    %1560 = vmatpush1.msra.mxu0 0.0
    %1561 = vmatprep.subr.mxu0 0.0
    %1562 = vmatpush1.msra.mxu0 0.0
    %1563 = vmatprep.subr.mxu0 0.0
    %1564 = vmatpush1.msra.mxu0 0.0
    %1565 = vmatprep.subr.mxu0 0.0
    %1566 = vmatpush1.msra.mxu0 0.0
    %1567 = vmatprep.subr.mxu0 0.0
    %1568 = vmatpush1.msra.mxu0 0.0
    %1569 = vmatprep.subr.mxu0 0.0
    %1570 = vmatpush1.msra.mxu0 0.0
    %1571 = vmatprep.subr.mxu0 0.0
    %1572 = vmatpush1.msra.mxu0 0.0
    %1573 = vmatprep.subr.mxu0 0.0
    %1574 = vmatpush1.msra.mxu0 0.0
    %1575 = vmatprep.subr.mxu0 0.0
    %1576 = vmatpush1.msra.mxu0 0.0
    %1577 = vmatprep.subr.mxu0 0.0
    %1578 = vmatpush1.msra.mxu0 0.0
    %1579 = vmatprep.subr.mxu0 0.0
    %1580 = vmatpush1.msra.mxu0 0.0
    %1581 = vmatprep.subr.mxu0 0.0
    %1582 = vmatpush1.msra.mxu0 0.0
    %1583 = vmatprep.subr.mxu0 0.0
    %1584 = vmatpush1.msra.mxu0 0.0
    %1585 = vmatprep.subr.mxu0 0.0
    %1586 = vmatpush1.msra.mxu0 0.0
    %1587 = vmatprep.subr.mxu0 0.0
    %1588 = vmatpush1.msra.mxu0 0.0
    %1589 = vmatprep.subr.mxu0 0.0
    %1590 = vmatpush1.msra.mxu0 0.0
    %1591 = vmatprep.subr.mxu0 0.0
    %1592 = vmatpush1.msra.mxu0 0.0
    %1593 = vmatprep.mubr.f32.mxu0 0.0
    %1594 = vmatmul.mubr.f32.gmra.mrb[0].mxu0 %v1491
    %v1595 = vpop.f32.mrb[0].mxu0
    %v1596 = vadd.f32 %v1488, %v1595
    %v1597 = vpop.f32.mrb[0].mxu0
    %1598 = vmatprep.mubr.f32.mxu0 0.0
    %1599 = vmatmul.mubr.f32.gmra.mrb[0].mxu0 %v1494
    %v1600 = vpop.f32.mrb[0].mxu0
    %v1601 = vadd.f32 %v1488, %v1600
    %v1602 = vpop.f32.mrb[0].mxu0
    %1603 = vmatprep.mubr.f32.mxu0 0.0
    %1604 = vmatmul.mubr.f32.gmra.mrb[0].mxu0 %v1497
    %v1605 = vpop.f32.mrb[0].mxu0
    %v1606 = vadd.f32 %v1488, %v1605
    %v1607 = vpop.f32.mrb[0].mxu0
    %1608 = vmatprep.mubr.f32.mxu0 0.0
    %1609 = vmatmul.mubr.f32.gmra.mrb[0].mxu0 %v1500
    %v1610 = vpop.f32.mrb[0].mxu0
    %v1611 = vadd.f32 %v1488, %v1610
    %v1612 = vpop.f32.mrb[0].mxu0
    %1613 = vmatprep.mubr.f32.mxu0 0.0
    %1614 = vmatmul.mubr.f32.gmra.mrb[0].mxu0 %v1503
    %v1615 = vpop.f32.mrb[0].mxu0
    %v1616 = vadd.f32 %v1488, %v1615
    %v1617 = vpop.f32.mrb[0].mxu0
    %1618 = vmatprep.mubr.f32.mxu0 0.0
    %1619 = vmatmul.mubr.f32.gmra.mrb[0].mxu0 %v1506
    %v1620 = vpop.f32.mrb[0].mxu0
    %v1621 = vadd.f32 %v1488, %v1620
    %v1622 = vpop.f32.mrb[0].mxu0
    %1623 = vmatprep.mubr.f32.mxu0 0.0
    %1624 = vmatmul.mubr.f32.gmra.mrb[0].mxu0 %v1509
    %v1625 = vpop.f32.mrb[0].mxu0
    %v1626 = vadd.f32 %v1488, %v1625
    %v1627 = vpop.f32.mrb[0].mxu0
    %1628 = vmatprep.mubr.f32.mxu0 0.0
    %1629 = vmatmul.mubr.f32.gmra.mrb[0].mxu0 %v1512
    %v1630 = vpop.f32.mrb[0].mxu0
    %v1631 = vadd.f32 %v1488, %v1630
    %v1632 = vpop.f32.mrb[0].mxu0
    %1633 = vmatprep.mubr.f32.mxu0 0.0
    %1634 = vmatmul.mubr.f32.gmra.mrb[0].mxu0 %v1515
    %v1635 = vpop.f32.mrb[0].mxu0
    %v1636 = vadd.f32 %v1488, %v1635
    %v1637 = vpop.f32.mrb[0].mxu0
    %1638 = vmatprep.mubr.f32.mxu0 0.0
    %1639 = vmatmul.mubr.f32.gmra.mrb[0].mxu0 %v1518
    %v1640 = vpop.f32.mrb[0].mxu0
    %v1641 = vadd.f32 %v1488, %v1640
    %v1642 = vpop.f32.mrb[0].mxu0
    %1643 = vmatprep.mubr.f32.mxu0 0.0
    %1644 = vmatmul.mubr.f32.gmra.mrb[0].mxu0 %v1521
    %v1645 = vpop.f32.mrb[0].mxu0
    %v1646 = vadd.f32 %v1488, %v1645
    %v1647 = vpop.f32.mrb[0].mxu0
    %1648 = vmatprep.mubr.f32.mxu0 0.0
    %1649 = vmatmul.mubr.f32.gmra.mrb[0].mxu0 %v1524
    %v1650 = vpop.f32.mrb[0].mxu0
    %v1651 = vadd.f32 %v1488, %v1650
    %v1652 = vpop.f32.mrb[0].mxu0
    %1653 = vmatprep.mubr.f32.mxu0 0.0
    %1654 = vmatmul.mubr.f32.gmra.mrb[0].mxu0 %v1527
    %v1655 = vpop.f32.mrb[0].mxu0
    %v1656 = vadd.f32 %v1488, %v1655
    %v1657 = vpop.f32.mrb[0].mxu0
    %1658 = vdwg.mxu0
    %v1659 = vld [vmem:[%s16] sm:$0xff]
    %v1660 = vld [vmem:[%s16 + $0x8] sm:$0xff]
    %v1661 = vld [vmem:[%s16 + $0x10] sm:$0xff]
    %v1662 = vld [vmem:[%s16 + $0x18] sm:$0xff]
    %v1663 = vld [vmem:[%s17] sm:$0xff]
    %v1664 = vld [vmem:[%s17 + $0x8] sm:$0xff]
    %v1665 = vld [vmem:[%s18] sm:$0x1]
    %1666 = vmatprep.subr.mxu0 0.0
    %1667 = vmatpush1.msra.mxu0 %v1663
    %1668 = vmatprep.subr.mxu0 0.0
    %1669 = vmatpush1.msra.mxu0 %v1664
    %1670 = vmatprep.subr.mxu0 0.0
    %1671 = vmatpush1.msra.mxu0 0.0
    %1672 = vmatprep.subr.mxu0 0.0
    %1673 = vmatpush1.msra.mxu0 0.0
    %1674 = vmatprep.subr.mxu0 0.0
    %1675 = vmatpush1.msra.mxu0 0.0
    %1676 = vmatprep.subr.mxu0 0.0
    %1677 = vmatpush1.msra.mxu0 0.0
    %1678 = vmatprep.subr.mxu0 0.0
    %1679 = vmatpush1.msra.mxu0 0.0
    %1680 = vmatprep.subr.mxu0 0.0
    %1681 = vmatpush1.msra.mxu0 0.0
    %1682 = vmatprep.subr.mxu0 0.0
    %1683 = vmatpush1.msra.mxu0 0.0
    %1684 = vmatprep.subr.mxu0 0.0
    %1685 = vmatpush1.msra.mxu0 0.0
    %1686 = vmatprep.subr.mxu0 0.0
    %1687 = vmatpush1.msra.mxu0 0.0
    %1688 = vmatprep.subr.mxu0 0.0
    %1689 = vmatpush1.msra.mxu0 0.0
    %1690 = vmatprep.subr.mxu0 0.0
    %1691 = vmatpush1.msra.mxu0 0.0
    %1692 = vmatprep.subr.mxu0 0.0
    %1693 = vmatpush1.msra.mxu0 0.0
    %1694 = vmatprep.subr.mxu0 0.0
    %1695 = vmatpush1.msra.mxu0 0.0
    %1696 = vmatprep.subr.mxu0 0.0
    %1697 = vmatpush1.msra.mxu0 0.0
    %1698 = vmatprep.subr.mxu0 0.0
    %1699 = vmatpush1.msra.mxu0 0.0
    %1700 = vmatprep.subr.mxu0 0.0
    %1701 = vmatpush1.msra.mxu0 0.0
    %1702 = vmatprep.subr.mxu0 0.0
    %1703 = vmatpush1.msra.mxu0 0.0
    %1704 = vmatprep.subr.mxu0 0.0
    %1705 = vmatpush1.msra.mxu0 0.0
    %1706 = vmatprep.subr.mxu0 0.0
    %1707 = vmatpush1.msra.mxu0 0.0
    %1708 = vmatprep.subr.mxu0 0.0
    %1709 = vmatpush1.msra.mxu0 0.0
    %1710 = vmatprep.subr.mxu0 0.0
    %1711 = vmatpush1.msra.mxu0 0.0
    %1712 = vmatprep.subr.mxu0 0.0
    %1713 = vmatpush1.msra.mxu0 0.0
    %1714 = vmatprep.subr.mxu0 0.0
    %1715 = vmatpush1.msra.mxu0 0.0
    %1716 = vmatprep.subr.mxu0 0.0
    %1717 = vmatpush1.msra.mxu0 0.0
    %1718 = vmatprep.subr.mxu0 0.0
    %1719 = vmatpush1.msra.mxu0 0.0
    %1720 = vmatprep.subr.mxu0 0.0
    %1721 = vmatpush1.msra.mxu0 0.0
    %1722 = vmatprep.subr.mxu0 0.0
    %1723 = vmatpush1.msra.mxu0 0.0
    %1724 = vmatprep.subr.mxu0 0.0
    %1725 = vmatpush1.msra.mxu0 0.0
    %1726 = vmatprep.subr.mxu0 0.0
    %1727 = vmatpush1.msra.mxu0 0.0
    %1728 = vmatprep.subr.mxu0 0.0
    %1729 = vmatpush1.msra.mxu0 0.0
    %1730 = vmatprep.mubr.f32.mxu0 0.0
    %1731 = vmatmul.mubr.f32.gmra.mrb[0].mxu0 %v187
    %v1732 = vpop.f32.mrb[0].mxu0
    %v1733 = vadd.f32 0.0, %v1732
    %v1734 = vpop.f32.mrb[0].mxu0
    %1735 = vmatprep.mubr.f32.mxu0 0.0
    %1736 = vmatmul.mubr.f32.gmra.mrb[0].mxu0 %v190
    %v1737 = vpop.f32.mrb[0].mxu0
    %v1738 = vadd.f32 0.0, %v1737
    %v1739 = vpop.f32.mrb[0].mxu0
    %1740 = vmatprep.mubr.f32.mxu0 0.0
    %1741 = vmatmul.mubr.f32.gmra.mrb[0].mxu0 %v193
    %v1742 = vpop.f32.mrb[0].mxu0
    %v1743 = vadd.f32 0.0, %v1742
    %v1744 = vpop.f32.mrb[0].mxu0
    %1745 = vmatprep.mubr.f32.mxu0 0.0
    %1746 = vmatmul.mubr.f32.gmra.mrb[0].mxu0 %v196
    %v1747 = vpop.f32.mrb[0].mxu0
    %v1748 = vadd.f32 0.0, %v1747
    %v1749 = vpop.f32.mrb[0].mxu0
    %1750 = vmatprep.mubr.f32.mxu0 0.0
    %1751 = vmatmul.mubr.f32.gmra.mrb[0].mxu0 %v199
    %v1752 = vpop.f32.mrb[0].mxu0
    %v1753 = vadd.f32 0.0, %v1752
    %v1754 = vpop.f32.mrb[0].mxu0
    %1755 = vmatprep.mubr.f32.mxu0 0.0
    %1756 = vmatmul.mubr.f32.gmra.mrb[0].mxu0 %v202
    %v1757 = vpop.f32.mrb[0].mxu0
    %v1758 = vadd.f32 0.0, %v1757
    %v1759 = vpop.f32.mrb[0].mxu0
    %1760 = vmatprep.mubr.f32.mxu0 0.0
    %1761 = vmatmul.mubr.f32.gmra.mrb[0].mxu0 %v205
    %v1762 = vpop.f32.mrb[0].mxu0
    %v1763 = vadd.f32 0.0, %v1762
    %v1764 = vpop.f32.mrb[0].mxu0
    %1765 = vmatprep.mubr.f32.mxu0 0.0
    %1766 = vmatmul.mubr.f32.gmra.mrb[0].mxu0 %v208
    %v1767 = vpop.f32.mrb[0].mxu0
    %v1768 = vadd.f32 0.0, %v1767
    %v1769 = vpop.f32.mrb[0].mxu0
    %1770 = vmatprep.mubr.f32.mxu0 0.0
    %1771 = vmatmul.mubr.f32.gmra.mrb[0].mxu0 %v211
    %v1772 = vpop.f32.mrb[0].mxu0
    %v1773 = vadd.f32 0.0, %v1772
    %v1774 = vpop.f32.mrb[0].mxu0
    %1775 = vmatprep.mubr.f32.mxu0 0.0
    %1776 = vmatmul.mubr.f32.gmra.mrb[0].mxu0 %v214
    %v1777 = vpop.f32.mrb[0].mxu0
    %v1778 = vadd.f32 0.0, %v1777
    %v1779 = vpop.f32.mrb[0].mxu0
    %1780 = vmatprep.mubr.f32.mxu0 0.0
    %1781 = vmatmul.mubr.f32.gmra.mrb[0].mxu0 %v217
    %v1782 = vpop.f32.mrb[0].mxu0
    %v1783 = vadd.f32 0.0, %v1782
    %v1784 = vpop.f32.mrb[0].mxu0
    %1785 = vmatprep.mubr.f32.mxu0 0.0
    %1786 = vmatmul.mubr.f32.gmra.mrb[0].mxu0 %v220
    %v1787 = vpop.f32.mrb[0].mxu0
    %v1788 = vadd.f32 0.0, %v1787
    %v1789 = vpop.f32.mrb[0].mxu0
    %1790 = vmatprep.mubr.f32.mxu0 0.0
    %1791 = vmatmul.mubr.f32.gmra.mrb[0].mxu0 %v223
    %v1792 = vpop.f32.mrb[0].mxu0
    %v1793 = vadd.f32 0.0, %v1792
    %v1794 = vpop.f32.mrb[0].mxu0
    %1795 = vdwg.mxu0
    %v1797 = vsel %vm379, %v1596, 0
    %v1800 = vsel %vm379, %v1601, 0
    %v1803 = vsel %vm379, %v1606, 0
    %v1806 = vsel %vm379, %v1611, 0
    %v1809 = vsel %vm379, %v1616, 0
    %v1812 = vsel %vm379, %v1621, 0
    %v1815 = vsel %vm379, %v1626, 0
    %v1818 = vsel %vm379, %v1631, 0
    %v1821 = vsel %vm379, %v1636, 0
    %v1824 = vsel %vm379, %v1641, 0
    %v1827 = vsel %vm379, %v1646, 0
    %v1830 = vsel %vm379, %v1651, 0
    %v1833 = vsel %vm379, %v1656, 0
    %1835 = vmatprep.subr.mxu0 0.0
    %1836 = vmatpush1.msra.mxu0 %v1659
    %1837 = vmatprep.subr.mxu0 0.0
    %1838 = vmatpush1.msra.mxu0 %v1660
    %1839 = vmatprep.subr.mxu0 0.0
    %1840 = vmatpush1.msra.mxu0 %v1661
    %1841 = vmatprep.subr.mxu0 0.0
    %1842 = vmatpush1.msra.mxu0 %v1662
    %1843 = vmatprep.subr.mxu0 0.0
    %1844 = vmatpush1.msra.mxu0 0.0
    %1845 = vmatprep.subr.mxu0 0.0
    %1846 = vmatpush1.msra.mxu0 0.0
    %1847 = vmatprep.subr.mxu0 0.0
    %1848 = vmatpush1.msra.mxu0 0.0
    %1849 = vmatprep.subr.mxu0 0.0
    %1850 = vmatpush1.msra.mxu0 0.0
    %1851 = vmatprep.subr.mxu0 0.0
    %1852 = vmatpush1.msra.mxu0 0.0
    %1853 = vmatprep.subr.mxu0 0.0
    %1854 = vmatpush1.msra.mxu0 0.0
    %1855 = vmatprep.subr.mxu0 0.0
    %1856 = vmatpush1.msra.mxu0 0.0
    %1857 = vmatprep.subr.mxu0 0.0
    %1858 = vmatpush1.msra.mxu0 0.0
    %1859 = vmatprep.subr.mxu0 0.0
    %1860 = vmatpush1.msra.mxu0 0.0
    %1861 = vmatprep.subr.mxu0 0.0
    %1862 = vmatpush1.msra.mxu0 0.0
    %1863 = vmatprep.subr.mxu0 0.0
    %1864 = vmatpush1.msra.mxu0 0.0
    %1865 = vmatprep.subr.mxu0 0.0
    %1866 = vmatpush1.msra.mxu0 0.0
    %1867 = vmatprep.subr.mxu0 0.0
    %1868 = vmatpush1.msra.mxu0 0.0
    %1869 = vmatprep.subr.mxu0 0.0
    %1870 = vmatpush1.msra.mxu0 0.0
    %1871 = vmatprep.subr.mxu0 0.0
    %1872 = vmatpush1.msra.mxu0 0.0
    %1873 = vmatprep.subr.mxu0 0.0
    %1874 = vmatpush1.msra.mxu0 0.0
    %1875 = vmatprep.subr.mxu0 0.0
    %1876 = vmatpush1.msra.mxu0 0.0
    %1877 = vmatprep.subr.mxu0 0.0
    %1878 = vmatpush1.msra.mxu0 0.0
    %1879 = vmatprep.subr.mxu0 0.0
    %1880 = vmatpush1.msra.mxu0 0.0
    %1881 = vmatprep.subr.mxu0 0.0
    %1882 = vmatpush1.msra.mxu0 0.0
    %1883 = vmatprep.subr.mxu0 0.0
    %1884 = vmatpush1.msra.mxu0 0.0
    %1885 = vmatprep.subr.mxu0 0.0
    %1886 = vmatpush1.msra.mxu0 0.0
    %1887 = vmatprep.subr.mxu0 0.0
    %1888 = vmatpush1.msra.mxu0 0.0
    %1889 = vmatprep.subr.mxu0 0.0
    %1890 = vmatpush1.msra.mxu0 0.0
    %1891 = vmatprep.subr.mxu0 0.0
    %1892 = vmatpush1.msra.mxu0 0.0
    %1893 = vmatprep.subr.mxu0 0.0
    %1894 = vmatpush1.msra.mxu0 0.0
    %1895 = vmatprep.subr.mxu0 0.0
    %1896 = vmatpush1.msra.mxu0 0.0
    %1897 = vmatprep.subr.mxu0 0.0
    %1898 = vmatpush1.msra.mxu0 0.0
    %1899 = vmatprep.mubr.f32.mxu0 0.0
    %1900 = vmatmul.mubr.f32.gmra.mrb[0].mxu0 %v1797
    %v1901 = vpop.f32.mrb[0].mxu0
    %v1902 = vadd.f32 %v1733, %v1901
    %v1903 = vpop.f32.mrb[0].mxu0
    %1904 = vmatprep.mubr.f32.mxu0 0.0
    %1905 = vmatmul.mubr.f32.gmra.mrb[0].mxu0 %v1800
    %v1906 = vpop.f32.mrb[0].mxu0
    %v1907 = vadd.f32 %v1738, %v1906
    %v1908 = vpop.f32.mrb[0].mxu0
    %1909 = vmatprep.mubr.f32.mxu0 0.0
    %1910 = vmatmul.mubr.f32.gmra.mrb[0].mxu0 %v1803
    %v1911 = vpop.f32.mrb[0].mxu0
    %v1912 = vadd.f32 %v1743, %v1911
    %v1913 = vpop.f32.mrb[0].mxu0
    %1914 = vmatprep.mubr.f32.mxu0 0.0
    %1915 = vmatmul.mubr.f32.gmra.mrb[0].mxu0 %v1806
    %v1916 = vpop.f32.mrb[0].mxu0
    %v1917 = vadd.f32 %v1748, %v1916
    %v1918 = vpop.f32.mrb[0].mxu0
    %1919 = vmatprep.mubr.f32.mxu0 0.0
    %1920 = vmatmul.mubr.f32.gmra.mrb[0].mxu0 %v1809
    %v1921 = vpop.f32.mrb[0].mxu0
    %v1922 = vadd.f32 %v1753, %v1921
    %v1923 = vpop.f32.mrb[0].mxu0
    %1924 = vmatprep.mubr.f32.mxu0 0.0
    %1925 = vmatmul.mubr.f32.gmra.mrb[0].mxu0 %v1812
    %v1926 = vpop.f32.mrb[0].mxu0
    %v1927 = vadd.f32 %v1758, %v1926
    %v1928 = vpop.f32.mrb[0].mxu0
    %1929 = vmatprep.mubr.f32.mxu0 0.0
    %1930 = vmatmul.mubr.f32.gmra.mrb[0].mxu0 %v1815
    %v1931 = vpop.f32.mrb[0].mxu0
    %v1932 = vadd.f32 %v1763, %v1931
    %v1933 = vpop.f32.mrb[0].mxu0
    %1934 = vmatprep.mubr.f32.mxu0 0.0
    %1935 = vmatmul.mubr.f32.gmra.mrb[0].mxu0 %v1818
    %v1936 = vpop.f32.mrb[0].mxu0
    %v1937 = vadd.f32 %v1768, %v1936
    %v1938 = vpop.f32.mrb[0].mxu0
    %1939 = vmatprep.mubr.f32.mxu0 0.0
    %1940 = vmatmul.mubr.f32.gmra.mrb[0].mxu0 %v1821
    %v1941 = vpop.f32.mrb[0].mxu0
    %v1942 = vadd.f32 %v1773, %v1941
    %v1943 = vpop.f32.mrb[0].mxu0
    %1944 = vmatprep.mubr.f32.mxu0 0.0
    %1945 = vmatmul.mubr.f32.gmra.mrb[0].mxu0 %v1824
    %v1946 = vpop.f32.mrb[0].mxu0
    %v1947 = vadd.f32 %v1778, %v1946
    %v1948 = vpop.f32.mrb[0].mxu0
    %1949 = vmatprep.mubr.f32.mxu0 0.0
    %1950 = vmatmul.mubr.f32.gmra.mrb[0].mxu0 %v1827
    %v1951 = vpop.f32.mrb[0].mxu0
    %v1952 = vadd.f32 %v1783, %v1951
    %v1953 = vpop.f32.mrb[0].mxu0
    %1954 = vmatprep.mubr.f32.mxu0 0.0
    %1955 = vmatmul.mubr.f32.gmra.mrb[0].mxu0 %v1830
    %v1956 = vpop.f32.mrb[0].mxu0
    %v1957 = vadd.f32 %v1788, %v1956
    %v1958 = vpop.f32.mrb[0].mxu0
    %1959 = vmatprep.mubr.f32.mxu0 0.0
    %1960 = vmatmul.mubr.f32.gmra.mrb[0].mxu0 %v1833
    %v1961 = vpop.f32.mrb[0].mxu0
    %v1962 = vadd.f32 %v1793, %v1961
    %v1963 = vpop.f32.mrb[0].mxu0
    %1964 = vdwg.mxu0
    %v1966 = vlaneseq
    %v1967 = vshrl.u32 %v1966, 7
    %v1968 = vsub.s32 0, %v1967
    %v1969 = vrot.slane %v1665, %v1968
    %v1971 = vadd.f32 %v1902, %v1969
    %v1972 = vadd.f32 %v1907, %v1969
    %v1973 = vadd.f32 %v1912, %v1969
    %v1974 = vadd.f32 %v1917, %v1969
    %v1975 = vadd.f32 %v1922, %v1969
    %v1976 = vadd.f32 %v1927, %v1969
    %v1977 = vadd.f32 %v1932, %v1969
    %v1978 = vadd.f32 %v1937, %v1969
    %v1979 = vadd.f32 %v1942, %v1969
    %v1980 = vadd.f32 %v1947, %v1969
    %v1981 = vadd.f32 %v1952, %v1969
    %v1982 = vadd.f32 %v1957, %v1969
    %v1983 = vadd.f32 %v1962, %v1969
    %v1984 = vmax.f32 %v1971, 0.0
    %v1985 = vmax.f32 %v1972, 0.0
    %v1986 = vmax.f32 %v1973, 0.0
    %v1987 = vmax.f32 %v1974, 0.0
    %v1988 = vmax.f32 %v1975, 0.0
    %v1989 = vmax.f32 %v1976, 0.0
    %v1990 = vmax.f32 %v1977, 0.0
    %v1991 = vmax.f32 %v1978, 0.0
    %v1992 = vmax.f32 %v1979, 0.0
    %v1993 = vmax.f32 %v1980, 0.0
    %v1994 = vmax.f32 %v1981, 0.0
    %v1995 = vmax.f32 %v1982, 0.0
    %v1996 = vmax.f32 %v1983, 0.0
    %v1997 = vld [vmem:[%s19] sm:$0xff]
    %v1998 = vld [vmem:[%s19 + $0x8] sm:$0xff]
    %v1999 = vld [vmem:[%s20] sm:$0x1]
    %v2001 = vlaneseq
    %v2002 = vshrl.u32 %v2001, 7
    %v2003 = vsub.s32 0, %v2002
    %v2004 = vrot.slane %v1999, %v2003
    %v2007 = vsel %vm185, %v1984, 0
    %v2010 = vsel %vm185, %v1985, 0
    %v2013 = vsel %vm185, %v1986, 0
    %v2016 = vsel %vm185, %v1987, 0
    %v2019 = vsel %vm185, %v1988, 0
    %v2022 = vsel %vm185, %v1989, 0
    %v2025 = vsel %vm185, %v1990, 0
    %v2028 = vsel %vm185, %v1991, 0
    %v2031 = vsel %vm185, %v1992, 0
    %v2034 = vsel %vm185, %v1993, 0
    %v2037 = vsel %vm185, %v1994, 0
    %v2040 = vsel %vm185, %v1995, 0
    %v2043 = vsel %vm185, %v1996, 0
    %2045 = vmatprep.subr.mxu0 0.0
    %2046 = vmatpush1.msra.mxu0 %v1997
    %2047 = vmatprep.subr.mxu0 0.0
    %2048 = vmatpush1.msra.mxu0 %v1998
    %2049 = vmatprep.subr.mxu0 0.0
    %2050 = vmatpush1.msra.mxu0 0.0
    %2051 = vmatprep.subr.mxu0 0.0
    %2052 = vmatpush1.msra.mxu0 0.0
    %2053 = vmatprep.subr.mxu0 0.0
    %2054 = vmatpush1.msra.mxu0 0.0
    %2055 = vmatprep.subr.mxu0 0.0
    %2056 = vmatpush1.msra.mxu0 0.0
    %2057 = vmatprep.subr.mxu0 0.0
    %2058 = vmatpush1.msra.mxu0 0.0
    %2059 = vmatprep.subr.mxu0 0.0
    %2060 = vmatpush1.msra.mxu0 0.0
    %2061 = vmatprep.subr.mxu0 0.0
    %2062 = vmatpush1.msra.mxu0 0.0
    %2063 = vmatprep.subr.mxu0 0.0
    %2064 = vmatpush1.msra.mxu0 0.0
    %2065 = vmatprep.subr.mxu0 0.0
    %2066 = vmatpush1.msra.mxu0 0.0
    %2067 = vmatprep.subr.mxu0 0.0
    %2068 = vmatpush1.msra.mxu0 0.0
    %2069 = vmatprep.subr.mxu0 0.0
    %2070 = vmatpush1.msra.mxu0 0.0
    %2071 = vmatprep.subr.mxu0 0.0
    %2072 = vmatpush1.msra.mxu0 0.0
    %2073 = vmatprep.subr.mxu0 0.0
    %2074 = vmatpush1.msra.mxu0 0.0
    %2075 = vmatprep.subr.mxu0 0.0
    %2076 = vmatpush1.msra.mxu0 0.0
    %2077 = vmatprep.subr.mxu0 0.0
    %2078 = vmatpush1.msra.mxu0 0.0
    %2079 = vmatprep.subr.mxu0 0.0
    %2080 = vmatpush1.msra.mxu0 0.0
    %2081 = vmatprep.subr.mxu0 0.0
    %2082 = vmatpush1.msra.mxu0 0.0
    %2083 = vmatprep.subr.mxu0 0.0
    %2084 = vmatpush1.msra.mxu0 0.0
    %2085 = vmatprep.subr.mxu0 0.0
    %2086 = vmatpush1.msra.mxu0 0.0
    %2087 = vmatprep.subr.mxu0 0.0
    %2088 = vmatpush1.msra.mxu0 0.0
    %2089 = vmatprep.subr.mxu0 0.0
    %2090 = vmatpush1.msra.mxu0 0.0
    %2091 = vmatprep.subr.mxu0 0.0
    %2092 = vmatpush1.msra.mxu0 0.0
    %2093 = vmatprep.subr.mxu0 0.0
    %2094 = vmatpush1.msra.mxu0 0.0
    %2095 = vmatprep.subr.mxu0 0.0
    %2096 = vmatpush1.msra.mxu0 0.0
    %2097 = vmatprep.subr.mxu0 0.0
    %2098 = vmatpush1.msra.mxu0 0.0
    %2099 = vmatprep.subr.mxu0 0.0
    %2100 = vmatpush1.msra.mxu0 0.0
    %2101 = vmatprep.subr.mxu0 0.0
    %2102 = vmatpush1.msra.mxu0 0.0
    %2103 = vmatprep.subr.mxu0 0.0
    %2104 = vmatpush1.msra.mxu0 0.0
    %2105 = vmatprep.subr.mxu0 0.0
    %2106 = vmatpush1.msra.mxu0 0.0
    %2107 = vmatprep.subr.mxu0 0.0
    %2108 = vmatpush1.msra.mxu0 0.0
    %2109 = vmatprep.mubr.f32.mxu0 0.0
    %2110 = vmatmul.mubr.f32.gmra.mrb[0].mxu0 %v2007
    %v2111 = vpop.f32.mrb[0].mxu0
    %v2112 = vadd.f32 %v2004, %v2111
    %v2113 = vpop.f32.mrb[0].mxu0
    %2114 = vmatprep.mubr.f32.mxu0 0.0
    %2115 = vmatmul.mubr.f32.gmra.mrb[0].mxu0 %v2010
    %v2116 = vpop.f32.mrb[0].mxu0
    %v2117 = vadd.f32 %v2004, %v2116
    %v2118 = vpop.f32.mrb[0].mxu0
    %2119 = vmatprep.mubr.f32.mxu0 0.0
    %2120 = vmatmul.mubr.f32.gmra.mrb[0].mxu0 %v2013
    %v2121 = vpop.f32.mrb[0].mxu0
    %v2122 = vadd.f32 %v2004, %v2121
    %v2123 = vpop.f32.mrb[0].mxu0
    %2124 = vmatprep.mubr.f32.mxu0 0.0
    %2125 = vmatmul.mubr.f32.gmra.mrb[0].mxu0 %v2016
    %v2126 = vpop.f32.mrb[0].mxu0
    %v2127 = vadd.f32 %v2004, %v2126
    %v2128 = vpop.f32.mrb[0].mxu0
    %2129 = vmatprep.mubr.f32.mxu0 0.0
    %2130 = vmatmul.mubr.f32.gmra.mrb[0].mxu0 %v2019
    %v2131 = vpop.f32.mrb[0].mxu0
    %v2132 = vadd.f32 %v2004, %v2131
    %v2133 = vpop.f32.mrb[0].mxu0
    %2134 = vmatprep.mubr.f32.mxu0 0.0
    %2135 = vmatmul.mubr.f32.gmra.mrb[0].mxu0 %v2022
    %v2136 = vpop.f32.mrb[0].mxu0
    %v2137 = vadd.f32 %v2004, %v2136
    %v2138 = vpop.f32.mrb[0].mxu0
    %2139 = vmatprep.mubr.f32.mxu0 0.0
    %2140 = vmatmul.mubr.f32.gmra.mrb[0].mxu0 %v2025
    %v2141 = vpop.f32.mrb[0].mxu0
    %v2142 = vadd.f32 %v2004, %v2141
    %v2143 = vpop.f32.mrb[0].mxu0
    %2144 = vmatprep.mubr.f32.mxu0 0.0
    %2145 = vmatmul.mubr.f32.gmra.mrb[0].mxu0 %v2028
    %v2146 = vpop.f32.mrb[0].mxu0
    %v2147 = vadd.f32 %v2004, %v2146
    %v2148 = vpop.f32.mrb[0].mxu0
    %2149 = vmatprep.mubr.f32.mxu0 0.0
    %2150 = vmatmul.mubr.f32.gmra.mrb[0].mxu0 %v2031
    %v2151 = vpop.f32.mrb[0].mxu0
    %v2152 = vadd.f32 %v2004, %v2151
    %v2153 = vpop.f32.mrb[0].mxu0
    %2154 = vmatprep.mubr.f32.mxu0 0.0
    %2155 = vmatmul.mubr.f32.gmra.mrb[0].mxu0 %v2034
    %v2156 = vpop.f32.mrb[0].mxu0
    %v2157 = vadd.f32 %v2004, %v2156
    %v2158 = vpop.f32.mrb[0].mxu0
    %2159 = vmatprep.mubr.f32.mxu0 0.0
    %2160 = vmatmul.mubr.f32.gmra.mrb[0].mxu0 %v2037
    %v2161 = vpop.f32.mrb[0].mxu0
    %v2162 = vadd.f32 %v2004, %v2161
    %v2163 = vpop.f32.mrb[0].mxu0
    %2164 = vmatprep.mubr.f32.mxu0 0.0
    %2165 = vmatmul.mubr.f32.gmra.mrb[0].mxu0 %v2040
    %v2166 = vpop.f32.mrb[0].mxu0
    %v2167 = vadd.f32 %v2004, %v2166
    %v2168 = vpop.f32.mrb[0].mxu0
    %2169 = vmatprep.mubr.f32.mxu0 0.0
    %2170 = vmatmul.mubr.f32.gmra.mrb[0].mxu0 %v2043
    %v2171 = vpop.f32.mrb[0].mxu0
    %v2172 = vadd.f32 %v2004, %v2171
    %v2173 = vpop.f32.mrb[0].mxu0
    %2174 = vdwg.mxu0
    %v2175 = vxor.u32 %v2112, 2147483648
    %v2176 = vxor.u32 %v2117, 2147483648
    %v2177 = vxor.u32 %v2122, 2147483648
    %v2178 = vxor.u32 %v2127, 2147483648
    %v2179 = vxor.u32 %v2132, 2147483648
    %v2180 = vxor.u32 %v2137, 2147483648
    %v2181 = vxor.u32 %v2142, 2147483648
    %v2182 = vxor.u32 %v2147, 2147483648
    %v2183 = vxor.u32 %v2152, 2147483648
    %v2184 = vxor.u32 %v2157, 2147483648
    %v2185 = vxor.u32 %v2162, 2147483648
    %v2186 = vxor.u32 %v2167, 2147483648
    %v2187 = vxor.u32 %v2172, 2147483648
    %v2188 = vmul.f32 %v2175, 1.442695
    %v2189 = vpow.pop %v2188
    %v2190 = vmul.f32 %v2176, 1.442695
    %v2191 = vpow.pop %v2190
    %v2192 = vmul.f32 %v2177, 1.442695
    %v2193 = vpow.pop %v2192
    %v2194 = vmul.f32 %v2178, 1.442695
    %v2195 = vpow.pop %v2194
    %v2196 = vmul.f32 %v2179, 1.442695
    %v2197 = vpow.pop %v2196
    %v2198 = vmul.f32 %v2180, 1.442695
    %v2199 = vpow.pop %v2198
    %v2200 = vmul.f32 %v2181, 1.442695
    %v2201 = vpow.pop %v2200
    %v2202 = vmul.f32 %v2182, 1.442695
    %v2203 = vpow.pop %v2202
    %v2204 = vmul.f32 %v2183, 1.442695
    %v2205 = vpow.pop %v2204
    %v2206 = vmul.f32 %v2184, 1.442695
    %v2207 = vpow.pop %v2206
    %v2208 = vmul.f32 %v2185, 1.442695
    %v2209 = vpow.pop %v2208
    %v2210 = vmul.f32 %v2186, 1.442695
    %v2211 = vpow.pop %v2210
    %v2212 = vmul.f32 %v2187, 1.442695
    %v2213 = vpow.pop %v2212
    %v2214 = vadd.f32 %v2189, 1.0
    %v2215 = vadd.f32 %v2191, 1.0
    %v2216 = vadd.f32 %v2193, 1.0
    %v2217 = vadd.f32 %v2195, 1.0
    %v2218 = vadd.f32 %v2197, 1.0
    %v2219 = vadd.f32 %v2199, 1.0
    %v2220 = vadd.f32 %v2201, 1.0
    %v2221 = vadd.f32 %v2203, 1.0
    %v2222 = vadd.f32 %v2205, 1.0
    %v2223 = vadd.f32 %v2207, 1.0
    %v2224 = vadd.f32 %v2209, 1.0
    %v2225 = vadd.f32 %v2211, 1.0
    %v2226 = vadd.f32 %v2213, 1.0
    %v2227 = vrcp.pop %v2214
    %v2228 = vmul.f32 1.0, %v2227
    %v2229 = vrcp.pop %v2215
    %v2230 = vmul.f32 1.0, %v2229
    %v2231 = vrcp.pop %v2216
    %v2232 = vmul.f32 1.0, %v2231
    %v2233 = vrcp.pop %v2217
    %v2234 = vmul.f32 1.0, %v2233
    %v2235 = vrcp.pop %v2218
    %v2236 = vmul.f32 1.0, %v2235
    %v2237 = vrcp.pop %v2219
    %v2238 = vmul.f32 1.0, %v2237
    %v2239 = vrcp.pop %v2220
    %v2240 = vmul.f32 1.0, %v2239
    %v2241 = vrcp.pop %v2221
    %v2242 = vmul.f32 1.0, %v2241
    %v2243 = vrcp.pop %v2222
    %v2244 = vmul.f32 1.0, %v2243
    %v2245 = vrcp.pop %v2223
    %v2246 = vmul.f32 1.0, %v2245
    %v2247 = vrcp.pop %v2224
    %v2248 = vmul.f32 1.0, %v2247
    %v2249 = vrcp.pop %v2225
    %v2250 = vmul.f32 1.0, %v2249
    %v2251 = vrcp.pop %v2226
    %v2252 = vmul.f32 1.0, %v2251
    %v2253 = vlaneseq
    %v2254 = vand.u32 %v2253, 127
    %vm2255 = vcmp.eq.s32.totalorder %v2254, 3
    %2256 = vset.pattern.permute.xlu0 32
    %2257 = vperm.xlu0 %2256, %v1596
    %v2258 = vpop.permute.xlu0 %2257
    %2260 = vset.pattern.permute.xlu0 32
    %2261 = vperm.xlu0 %2260, %v1601
    %v2262 = vpop.permute.xlu0 %2261
    %2264 = vset.pattern.permute.xlu0 32
    %2265 = vperm.xlu0 %2264, %v1606
    %v2266 = vpop.permute.xlu0 %2265
    %2268 = vset.pattern.permute.xlu0 32
    %2269 = vperm.xlu0 %2268, %v1611
    %v2270 = vpop.permute.xlu0 %2269
    %2272 = vset.pattern.permute.xlu0 32
    %2273 = vperm.xlu0 %2272, %v1616
    %v2274 = vpop.permute.xlu0 %2273
    %2276 = vset.pattern.permute.xlu0 32
    %2277 = vperm.xlu0 %2276, %v1621
    %v2278 = vpop.permute.xlu0 %2277
    %2280 = vset.pattern.permute.xlu0 32
    %2281 = vperm.xlu0 %2280, %v1626
    %v2282 = vpop.permute.xlu0 %2281
    %2284 = vset.pattern.permute.xlu0 32
    %2285 = vperm.xlu0 %2284, %v1631
    %v2286 = vpop.permute.xlu0 %2285
    %2288 = vset.pattern.permute.xlu0 32
    %2289 = vperm.xlu0 %2288, %v1636
    %v2290 = vpop.permute.xlu0 %2289
    %2292 = vset.pattern.permute.xlu0 32
    %2293 = vperm.xlu0 %2292, %v1641
    %v2294 = vpop.permute.xlu0 %2293
    %2296 = vset.pattern.permute.xlu0 32
    %2297 = vperm.xlu0 %2296, %v1646
    %v2298 = vpop.permute.xlu0 %2297
    %2300 = vset.pattern.permute.xlu0 32
    %2301 = vperm.xlu0 %2300, %v1651
    %v2302 = vpop.permute.xlu0 %2301
    %2304 = vset.pattern.permute.xlu0 32
    %2305 = vperm.xlu0 %2304, %v1656
    %v2306 = vpop.permute.xlu0 %2305
    %v2308 = vsel %vm2255, %v2258, %v2228
    %v2309 = vsel %vm2255, %v2262, %v2230
    %v2310 = vsel %vm2255, %v2266, %v2232
    %v2311 = vsel %vm2255, %v2270, %v2234
    %v2312 = vsel %vm2255, %v2274, %v2236
    %v2313 = vsel %vm2255, %v2278, %v2238
    %v2314 = vsel %vm2255, %v2282, %v2240
    %v2315 = vsel %vm2255, %v2286, %v2242
    %v2316 = vsel %vm2255, %v2290, %v2244
    %v2317 = vsel %vm2255, %v2294, %v2246
    %v2318 = vsel %vm2255, %v2298, %v2248
    %v2319 = vsel %vm2255, %v2302, %v2250
    %v2320 = vsel %vm2255, %v2306, %v2252
    %vm2321 = vcmask 64512
    %2322 = vst.msk [vmem:[%s21] sm:$0xff] %vm2321, %v2308
    %2323 = vst.msk [vmem:[%s21 + $0x8] sm:$0xff] %vm2321, %v2309
    %2324 = vst.msk [vmem:[%s21 + $0x10] sm:$0xff] %vm2321, %v2310
    %2325 = vst.msk [vmem:[%s21 + $0x18] sm:$0xff] %vm2321, %v2311
    %2326 = vst.msk [vmem:[%s21 + $0x20] sm:$0xff] %vm2321, %v2312
    %2327 = vst.msk [vmem:[%s21 + $0x28] sm:$0xff] %vm2321, %v2313
    %2328 = vst.msk [vmem:[%s21 + $0x30] sm:$0xff] %vm2321, %v2314
    %2329 = vst.msk [vmem:[%s21 + $0x38] sm:$0xff] %vm2321, %v2315
    %2330 = vst.msk [vmem:[%s21 + $0x40] sm:$0xff] %vm2321, %v2316
    %2331 = vst.msk [vmem:[%s21 + $0x48] sm:$0xff] %vm2321, %v2317
    %2332 = vst.msk [vmem:[%s21 + $0x50] sm:$0xff] %vm2321, %v2318
    %2333 = vst.msk [vmem:[%s21 + $0x58] sm:$0xff] %vm2321, %v2319
    %2334 = vst.msk [vmem:[%s21 + $0x60] sm:$0xff] %vm2321, %v2320
    // Predicated region
    $region118: #{tpu_custom_call.1} parent=1 // pred_check
      _
    $region119: #{tpu_custom_call.1} parent=1 // pred_check_branch
      %2336 = sbr.rel (0) target = $region121
    $region120: #{tpu_custom_call.1} parent=1 // pred_region
      _
    $region121: #{tpu_custom_call.1} parent=1 // pred_fallthru
      _
    // Predicated region
    $region122: #{tpu_custom_call.1} parent=1 // pred_check
      _
    $region123: #{tpu_custom_call.1} parent=1 // pred_check_branch
      %2338 = sbr.rel (0) target = $region125
    $region124: #{tpu_custom_call.1} parent=1 // pred_region
      _
    $region125: #{tpu_custom_call.1} parent=1 // pred_fallthru
      _
    %2339 = vsyncpa [#allocation3], 1
    %2340 = vsyncpa [#allocation5], 1
    %2341 = vsyncpa [#allocation8], 1
    %2342 = vsyncpa [#allocation11], 1
    %2343 = vsyncpa [#allocation14], 1

// kernel: tpu_custom_call.1
$region0: #{tpu_custom_call.1}
  #allocation0 [shape = 'u32[]', space=smem, size = 0x4, offset = 0x4, fixed_abs, tag = 'smem constant byte address 0x4 - core index']
  #allocation1 [shape = 'u32[144,128]{1,0:T(1,128)}', space=vmem, size = 0x12000, scoped, tag = 'internal scratch']
  %s0 = inlined_call_operand.vmem [shape: f32[104,16], index: 0, kind: input, shape index: {}]
  %s1 = inlined_call_operand.hbm [shape: f32[16,32], index: 1, kind: input, shape index: {}]
  %s2 = inlined_call_operand.hbm [shape: f32[1,32], index: 2, kind: input, shape index: {}]
  %s3 = inlined_call_operand.vmem [shape: f32[32,32], index: 3, kind: input, shape index: {}]
  %s4 = inlined_call_operand.hbm [shape: f32[1,32], index: 4, kind: input, shape index: {}]
  %s5 = inlined_call_operand.vmem [shape: f32[32,32], index: 5, kind: input, shape index: {}]
  %s6 = inlined_call_operand.hbm [shape: f32[1,32], index: 6, kind: input, shape index: {}]
  %s7 = inlined_call_operand.vmem [shape: f32[32,32], index: 7, kind: input, shape index: {}]
  %s8 = inlined_call_operand.hbm [shape: f32[1,32], index: 8, kind: input, shape index: {}]
  %s9 = inlined_call_operand.vmem [shape: f32[32,32], index: 9, kind: input, shape index: {}]
  %s10 = inlined_call_operand.vmem [shape: f32[16,32], index: 10, kind: input, shape index: {}]
  %s11 = inlined_call_operand.hbm [shape: f32[1,32], index: 11, kind: input, shape index: {}]
  %s12 = inlined_call_operand.vmem [shape: f32[32,32], index: 12, kind: input, shape index: {}]
  %s13 = inlined_call_operand.hbm [shape: f32[1,32], index: 13, kind: input, shape index: {}]
  %s14 = inlined_call_operand.vmem [shape: f32[32,128], index: 14, kind: input, shape index: {}]
  %s15 = inlined_call_operand.hbm [shape: f32[1,128], index: 15, kind: input, shape index: {}]
  %s16 = inlined_call_operand.vmem [shape: f32[32,16], index: 16, kind: input, shape index: {}]
  %s17 = inlined_call_operand.vmem [shape: f32[16,16], index: 17, kind: input, shape index: {}]
  %s18 = inlined_call_operand.vmem [shape: f32[1,16], index: 18, kind: input, shape index: {}]
  %s19 = inlined_call_operand.vmem [shape: f32[16,8], index: 19, kind: input, shape index: {}]
  %s20 = inlined_call_operand.vmem [shape: f32[1,8], index: 20, kind: input, shape index: {}]
  %s21 = inlined_call_operand.vmem [shape: f32[104,8], index: 21, kind: output, shape index: {}]
  %s22 = sld [smem:[#allocation0]]
  $region126: #{tpu_custom_call.1} parent=0
    _
  %s24 = ssub.s32 1, %s22
  %s25 = scalar_select 0, %s24, %s22
  $region1: #{tpu_custom_call.1} parent=0
    #allocation2 [shape = 'u8[8192]{0}', space=vmem, size = 0x2000, scoped, tag = 'input window, operand 1, single buffered']
    #allocation3 [shape = 's32[1]{0}', space=sflag, size = 0x4, scoped, tag = 'scoped memory for tpu_custom_call.1']
    #allocation4 [shape = 'u8[512]{0}', space=vmem, size = 0x400, scoped, tag = 'input window, operand 2, single buffered']
    #allocation5 [shape = 's32[1]{0}', space=sflag, size = 0x4, scoped, tag = 'scoped memory for tpu_custom_call.1']
    #allocation6 [shape = 'u8[512]{0}', space=vmem, size = 0x400, scoped, tag = 'input window, operand 4, single buffered']
    #allocation7 [shape = 'u8[512]{0}', space=vmem, size = 0x400, scoped, tag = 'input window, operand 6, single buffered']
    #allocation8 [shape = 's32[1]{0}', space=sflag, size = 0x4, scoped, tag = 'scoped memory for tpu_custom_call.1']
    #allocation9 [shape = 'u8[512]{0}', space=vmem, size = 0x400, scoped, tag = 'input window, operand 8, single buffered']
    #allocation10 [shape = 'u8[512]{0}', space=vmem, size = 0x400, scoped, tag = 'input window, operand 11, single buffered']
    #allocation11 [shape = 's32[1]{0}', space=sflag, size = 0x4, scoped, tag = 'scoped memory for tpu_custom_call.1']
    #allocation12 [shape = 'u8[512]{0}', space=vmem, size = 0x400, scoped, tag = 'input window, operand 13, single buffered']
    #allocation13 [shape = 'u8[512]{0}', space=vmem, size = 0x400, scoped, tag = 'input window, operand 15, single buffered']
    #allocation14 [shape = 's32[1]{0}', space=sflag, size = 0x4, scoped, tag = 'scoped memory for tpu_custom_call.1']
    %26 = vsyncpa [#allocation3], 0
    %27 = vsyncpa [#allocation5], 0
    %28 = vsyncpa [#allocation8], 0
    %29 = vsyncpa [#allocation11], 0
    %30 = vsyncpa [#allocation14], 0
    // Predicated region
    $region2: #{tpu_custom_call.1} parent=1 // pred_check
      _
    $region3: #{tpu_custom_call.1} parent=1 // pred_check_branch
      %32 = sbr.rel (0) target = $region5
    $region4: #{tpu_custom_call.1} parent=1 // pred_region
      _
    $region5: #{tpu_custom_call.1} parent=1 // pred_fallthru
      _
    // Predicated region
    $region6: #{tpu_custom_call.1} parent=1 // pred_check
      _
    $region7: #{tpu_custom_call.1} parent=1 // pred_check_branch
      %34 = sbr.rel (0) target = $region9
    $region8: #{tpu_custom_call.1} parent=1 // pred_region
      %s36 = ssub.s32 256, 256
      %37 = vsyncadd [#allocation3], %s36
      %s38 = sshll.u32 [#allocation2], 4
      %s39 = int_to_ptr.vmem [resolvable:$true] %s38
      %44 = dma.hbm_to_vmem [thread:$0]  %s1, 256, %s39, [#allocation3], 128, 128, 8
    $region9: #{tpu_custom_call.1} parent=1 // pred_fallthru
      _
    // Predicated region
    $region10: #{tpu_custom_call.1} parent=1 // pred_check
      _
    $region11: #{tpu_custom_call.1} parent=1 // pred_check_branch
      %46 = sbr.rel (0) target = $region13
    $region12: #{tpu_custom_call.1} parent=1 // pred_region
      %s48 = ssub.s32 16, 16
      %49 = vsyncadd [#allocation5], %s48
      %s51 = sshll.u32 [#allocation4], 4
      %s52 = int_to_ptr.vmem [resolvable:$true] %s51
      %54 = dma.hbm_to_vmem [thread:$0]  %s2, 16, %s52, [#allocation5]
    $region13: #{tpu_custom_call.1} parent=1 // pred_fallthru
      _
    // Predicated region
    $region14: #{tpu_custom_call.1} parent=1 // pred_check
      _
    $region15: #{tpu_custom_call.1} parent=1 // pred_check_branch
      %56 = sbr.rel (0) target = $region17
    $region16: #{tpu_custom_call.1} parent=1 // pred_region
      _
    $region17: #{tpu_custom_call.1} parent=1 // pred_fallthru
      _
    // Predicated region
    $region18: #{tpu_custom_call.1} parent=1 // pred_check
      _
    $region19: #{tpu_custom_call.1} parent=1 // pred_check_branch
      %58 = sbr.rel (0) target = $region21
    $region20: #{tpu_custom_call.1} parent=1 // pred_region
      %s60 = ssub.s32 16, 16
      %61 = vsyncadd [#allocation5], %s60
      %s63 = sshll.u32 [#allocation6], 4
      %s64 = int_to_ptr.vmem [resolvable:$true] %s63
      %66 = dma.hbm_to_vmem [thread:$0]  %s4, 16, %s64, [#allocation5]
    $region21: #{tpu_custom_call.1} parent=1 // pred_fallthru
      _
    // Predicated region
    $region22: #{tpu_custom_call.1} parent=1 // pred_check
      _
    $region23: #{tpu_custom_call.1} parent=1 // pred_check_branch
      %68 = sbr.rel (0) target = $region25
    $region24: #{tpu_custom_call.1} parent=1 // pred_region
      _
    $region25: #{tpu_custom_call.1} parent=1 // pred_fallthru
      _
    // Predicated region
    $region26: #{tpu_custom_call.1} parent=1 // pred_check
      _
    $region27: #{tpu_custom_call.1} parent=1 // pred_check_branch
      %70 = sbr.rel (0) target = $region29
    $region28: #{tpu_custom_call.1} parent=1 // pred_region
      %s72 = ssub.s32 16, 16
      %73 = vsyncadd [#allocation8], %s72
      %s75 = sshll.u32 [#allocation7], 4
      %s76 = int_to_ptr.vmem [resolvable:$true] %s75
      %78 = dma.hbm_to_vmem [thread:$0]  %s6, 16, %s76, [#allocation8]
    $region29: #{tpu_custom_call.1} parent=1 // pred_fallthru
      _
    // Predicated region
    $region30: #{tpu_custom_call.1} parent=1 // pred_check
      _
    $region31: #{tpu_custom_call.1} parent=1 // pred_check_branch
      %80 = sbr.rel (0) target = $region33
    $region32: #{tpu_custom_call.1} parent=1 // pred_region
      _
    $region33: #{tpu_custom_call.1} parent=1 // pred_fallthru
      _
    // Predicated region
    $region34: #{tpu_custom_call.1} parent=1 // pred_check
      _
    $region35: #{tpu_custom_call.1} parent=1 // pred_check_branch
      %82 = sbr.rel (0) target = $region37
    $region36: #{tpu_custom_call.1} parent=1 // pred_region
      %s84 = ssub.s32 16, 16
      %85 = vsyncadd [#allocation8], %s84
      %s87 = sshll.u32 [#allocation9], 4
      %s88 = int_to_ptr.vmem [resolvable:$true] %s87
      %90 = dma.hbm_to_vmem [thread:$0]  %s8, 16, %s88, [#allocation8]
    $region37: #{tpu_custom_call.1} parent=1 // pred_fallthru
      _
    // Predicated region
    $region38: #{tpu_custom_call.1} parent=1 // pred_check
      _
    $region39: #{tpu_custom_call.1} parent=1 // pred_check_branch
      %92 = sbr.rel (0) target = $region41
    $region40: #{tpu_custom_call.1} parent=1 // pred_region
      _
    $region41: #{tpu_custom_call.1} parent=1 // pred_fallthru
      _
    // Predicated region
    $region42: #{tpu_custom_call.1} parent=1 // pred_check
      _
    $region43: #{tpu_custom_call.1} parent=1 // pred_check_branch
      %94 = sbr.rel (0) target = $region45
    $region44: #{tpu_custom_call.1} parent=1 // pred_region
      _
    $region45: #{tpu_custom_call.1} parent=1 // pred_fallthru
      _
    // Predicated region
    $region46: #{tpu_custom_call.1} parent=1 // pred_check
      _
    $region47: #{tpu_custom_call.1} parent=1 // pred_check_branch
      %96 = sbr.rel (0) target = $region49
    $region48: #{tpu_custom_call.1} parent=1 // pred_region
      %s98 = ssub.s32 16, 16
      %99 = vsyncadd [#allocation11], %s98
      %s101 = sshll.u32 [#allocation10], 4
      %s102 = int_to_ptr.vmem [resolvable:$true] %s101
      %104 = dma.hbm_to_vmem [thread:$0]  %s11, 16, %s102, [#allocation11]
    $region49: #{tpu_custom_call.1} parent=1 // pred_fallthru
      _
    // Predicated region
    $region50: #{tpu_custom_call.1} parent=1 // pred_check
      _
    $region51: #{tpu_custom_call.1} parent=1 // pred_check_branch
      %106 = sbr.rel (0) target = $region53
    $region52: #{tpu_custom_call.1} parent=1 // pred_region
      _
    $region53: #{tpu_custom_call.1} parent=1 // pred_fallthru
      _
    // Predicated region
    $region54: #{tpu_custom_call.1} parent=1 // pred_check
      _
    $region55: #{tpu_custom_call.1} parent=1 // pred_check_branch
      %108 = sbr.rel (0) target = $region57
    $region56: #{tpu_custom_call.1} parent=1 // pred_region
      %s110 = ssub.s32 16, 16
      %111 = vsyncadd [#allocation11], %s110
      %s113 = sshll.u32 [#allocation12], 4
      %s114 = int_to_ptr.vmem [resolvable:$true] %s113
      %116 = dma.hbm_to_vmem [thread:$0]  %s13, 16, %s114, [#allocation11]
    $region57: #{tpu_custom_call.1} parent=1 // pred_fallthru
      _
    // Predicated region
    $region58: #{tpu_custom_call.1} parent=1 // pred_check
      _
    $region59: #{tpu_custom_call.1} parent=1 // pred_check_branch
      %118 = sbr.rel (0) target = $region61
    $region60: #{tpu_custom_call.1} parent=1 // pred_region
      _
    $region61: #{tpu_custom_call.1} parent=1 // pred_fallthru
      _
    // Predicated region
    $region62: #{tpu_custom_call.1} parent=1 // pred_check
      _
    $region63: #{tpu_custom_call.1} parent=1 // pred_check_branch
      %120 = sbr.rel (0) target = $region65
    $region64: #{tpu_custom_call.1} parent=1 // pred_region
      %s122 = ssub.s32 16, 16
      %123 = vsyncadd [#allocation14], %s122
      %s125 = sshll.u32 [#allocation13], 4
      %s126 = int_to_ptr.vmem [resolvable:$true] %s125
      %128 = dma.hbm_to_vmem [thread:$0]  %s15, 16, %s126, [#allocation14]
    $region65: #{tpu_custom_call.1} parent=1 // pred_fallthru
      _
    // Predicated region
    $region66: #{tpu_custom_call.1} parent=1 // pred_check
      _
    $region67: #{tpu_custom_call.1} parent=1 // pred_check_branch
      %130 = sbr.rel (0) target = $region69
    $region68: #{tpu_custom_call.1} parent=1 // pred_region
      _
    $region69: #{tpu_custom_call.1} parent=1 // pred_fallthru
      _
    // Predicated region
    $region70: #{tpu_custom_call.1} parent=1 // pred_check
      _
    $region71: #{tpu_custom_call.1} parent=1 // pred_check_branch
      %132 = sbr.rel (0) target = $region73
    $region72: #{tpu_custom_call.1} parent=1 // pred_region
      _
    $region73: #{tpu_custom_call.1} parent=1 // pred_fallthru
      _
    // Predicated region
    $region74: #{tpu_custom_call.1} parent=1 // pred_check
      _
    $region75: #{tpu_custom_call.1} parent=1 // pred_check_branch
      %134 = sbr.rel (0) target = $region77
    $region76: #{tpu_custom_call.1} parent=1 // pred_region
      _
    $region77: #{tpu_custom_call.1} parent=1 // pred_fallthru
      _
    // Predicated region
    $region78: #{tpu_custom_call.1} parent=1 // pred_check
      _
    $region79: #{tpu_custom_call.1} parent=1 // pred_check_branch
      %136 = sbr.rel (0) target = $region81
    $region80: #{tpu_custom_call.1} parent=1 // pred_region
      _
    $region81: #{tpu_custom_call.1} parent=1 // pred_fallthru
      _
    // Predicated region
    $region82: #{tpu_custom_call.1} parent=1 // pred_check
      _
    $region83: #{tpu_custom_call.1} parent=1 // pred_check_branch
      %138 = sbr.rel (0) target = $region85
    $region84: #{tpu_custom_call.1} parent=1 // pred_region
      _
    $region85: #{tpu_custom_call.1} parent=1 // pred_fallthru
      _
    // Predicated region
    $region86: #{tpu_custom_call.1} parent=1 // pred_check
      _
    $region87: #{tpu_custom_call.1} parent=1 // pred_check_branch
      %140 = sbr.rel (0) target = $region89
    $region88: #{tpu_custom_call.1} parent=1 // pred_region
      %141 = dma.done [#allocation3], 256
    $region89: #{tpu_custom_call.1} parent=1 // pred_fallthru
      _
    // Predicated region
    $region90: #{tpu_custom_call.1} parent=1 // pred_check
      _
    $region91: #{tpu_custom_call.1} parent=1 // pred_check_branch
      %143 = sbr.rel (0) target = $region93
    $region92: #{tpu_custom_call.1} parent=1 // pred_region
      %144 = dma.done [#allocation5], 16
    $region93: #{tpu_custom_call.1} parent=1 // pred_fallthru
      _
    // Predicated region
    $region94: #{tpu_custom_call.1} parent=1 // pred_check
      _
    $region95: #{tpu_custom_call.1} parent=1 // pred_check_branch
      %146 = sbr.rel (0) target = $region97
    $region96: #{tpu_custom_call.1} parent=1 // pred_region
      %147 = dma.done [#allocation5], 16
    $region97: #{tpu_custom_call.1} parent=1 // pred_fallthru
      _
    // Predicated region
    $region98: #{tpu_custom_call.1} parent=1 // pred_check
      _
    $region99: #{tpu_custom_call.1} parent=1 // pred_check_branch
      %149 = sbr.rel (0) target = $region101
    $region100: #{tpu_custom_call.1} parent=1 // pred_region
      %150 = dma.done [#allocation8], 16
    $region101: #{tpu_custom_call.1} parent=1 // pred_fallthru
      _
    // Predicated region
    $region102: #{tpu_custom_call.1} parent=1 // pred_check
      _
    $region103: #{tpu_custom_call.1} parent=1 // pred_check_branch
      %152 = sbr.rel (0) target = $region105
    $region104: #{tpu_custom_call.1} parent=1 // pred_region
      %153 = dma.done [#allocation8], 16
    $region105: #{tpu_custom_call.1} parent=1 // pred_fallthru
      _
    // Predicated region
    $region106: #{tpu_custom_call.1} parent=1 // pred_check
      _
    $region107: #{tpu_custom_call.1} parent=1 // pred_check_branch
      %155 = sbr.rel (0) target = $region109
    $region108: #{tpu_custom_call.1} parent=1 // pred_region
      %156 = dma.done [#allocation11], 16
    $region109: #{tpu_custom_call.1} parent=1 // pred_fallthru
      _
    // Predicated region
    $region110: #{tpu_custom_call.1} parent=1 // pred_check
      _
    $region111: #{tpu_custom_call.1} parent=1 // pred_check_branch
      %158 = sbr.rel (0) target = $region113
    $region112: #{tpu_custom_call.1} parent=1 // pred_region
      %159 = dma.done [#allocation11], 16
    $region113: #{tpu_custom_call.1} parent=1 // pred_fallthru
      _
    // Predicated region
    $region114: #{tpu_custom_call.1} parent=1 // pred_check
      _
    $region115: #{tpu_custom_call.1} parent=1 // pred_check_branch
      %161 = sbr.rel (0) target = $region117
    $region116: #{tpu_custom_call.1} parent=1 // pred_region
      %162 = dma.done [#allocation14], 16
    $region117: #{tpu_custom_call.1} parent=1 // pred_fallthru
      _
    %v163 = vld [vmem:[%s0] sm:$0xff]
    %v164 = vld [vmem:[%s0 + $0x8] sm:$0xff]
    %v165 = vld [vmem:[%s0 + $0x10] sm:$0xff]
    %v166 = vld [vmem:[%s0 + $0x18] sm:$0xff]
    %v167 = vld [vmem:[%s0 + $0x20] sm:$0xff]
    %v168 = vld [vmem:[%s0 + $0x28] sm:$0xff]
    %v169 = vld [vmem:[%s0 + $0x30] sm:$0xff]
    %v170 = vld [vmem:[%s0 + $0x38] sm:$0xff]
    %v171 = vld [vmem:[%s0 + $0x40] sm:$0xff]
    %v172 = vld [vmem:[%s0 + $0x48] sm:$0xff]
    %v173 = vld [vmem:[%s0 + $0x50] sm:$0xff]
    %v174 = vld [vmem:[%s0 + $0x58] sm:$0xff]
    %v175 = vld [vmem:[%s0 + $0x60] sm:$0xff]
    %v176 = vld [vmem:[#allocation2] sm:$0xff]
    %v177 = vld [vmem:[#allocation2 + $0x8] sm:$0xff]
    %v178 = vld [vmem:[#allocation4] sm:$0x1]
    %v180 = vlaneseq
    %v181 = vshrl.u32 %v180, 7
    %v182 = vsub.s32 0, %v181
    %v183 = vrot.slane %v178, %v182
    %vm185 = vcmask 130048
    %v187 = vsel %vm185, %v163, 0
    %v190 = vsel %vm185, %v164, 0
    %v193 = vsel %vm185, %v165, 0
    %v196 = vsel %vm185, %v166, 0
    %v199 = vsel %vm185, %v167, 0
    %v202 = vsel %vm185, %v168, 0
    %v205 = vsel %vm185, %v169, 0
    %v208 = vsel %vm185, %v170, 0
    %v211 = vsel %vm185, %v171, 0
    %v214 = vsel %vm185, %v172, 0
    %v217 = vsel %vm185, %v173, 0
    %v220 = vsel %vm185, %v174, 0
    %v223 = vsel %vm185, %v175, 0
    %225 = vmatprep.subr.mxu0 0.0
    %226 = vmatpush1.msra.mxu0 %v176
    %227 = vmatprep.subr.mxu0 0.0
    %228 = vmatpush1.msra.mxu0 %v177
    %229 = vmatprep.subr.mxu0 0.0
    %230 = vmatpush1.msra.mxu0 0.0
    %231 = vmatprep.subr.mxu0 0.0
    %232 = vmatpush1.msra.mxu0 0.0
    %233 = vmatprep.subr.mxu0 0.0
    %234 = vmatpush1.msra.mxu0 0.0
    %235 = vmatprep.subr.mxu0 0.0
    %236 = vmatpush1.msra.mxu0 0.0
    %237 = vmatprep.subr.mxu0 0.0
    %238 = vmatpush1.msra.mxu0 0.0
    %239 = vmatprep.subr.mxu0 0.0
    %240 = vmatpush1.msra.mxu0 0.0
    %241 = vmatprep.subr.mxu0 0.0
    %242 = vmatpush1.msra.mxu0 0.0
    %243 = vmatprep.subr.mxu0 0.0
    %244 = vmatpush1.msra.mxu0 0.0
    %245 = vmatprep.subr.mxu0 0.0
    %246 = vmatpush1.msra.mxu0 0.0
    %247 = vmatprep.subr.mxu0 0.0
    %248 = vmatpush1.msra.mxu0 0.0
    %249 = vmatprep.subr.mxu0 0.0
    %250 = vmatpush1.msra.mxu0 0.0
    %251 = vmatprep.subr.mxu0 0.0
    %252 = vmatpush1.msra.mxu0 0.0
    %253 = vmatprep.subr.mxu0 0.0
    %254 = vmatpush1.msra.mxu0 0.0
    %255 = vmatprep.subr.mxu0 0.0
    %256 = vmatpush1.msra.mxu0 0.0
    %257 = vmatprep.subr.mxu0 0.0
    %258 = vmatpush1.msra.mxu0 0.0
    %259 = vmatprep.subr.mxu0 0.0
    %260 = vmatpush1.msra.mxu0 0.0
    %261 = vmatprep.subr.mxu0 0.0
    %262 = vmatpush1.msra.mxu0 0.0
    %263 = vmatprep.subr.mxu0 0.0
    %264 = vmatpush1.msra.mxu0 0.0
    %265 = vmatprep.subr.mxu0 0.0
    %266 = vmatpush1.msra.mxu0 0.0
    %267 = vmatprep.subr.mxu0 0.0
    %268 = vmatpush1.msra.mxu0 0.0
    %269 = vmatprep.subr.mxu0 0.0
    %270 = vmatpush1.msra.mxu0 0.0
    %271 = vmatprep.subr.mxu0 0.0
    %272 = vmatpush1.msra.mxu0 0.0
    %273 = vmatprep.subr.mxu0 0.0
    %274 = vmatpush1.msra.mxu0 0.0
    %275 = vmatprep.subr.mxu0 0.0
    %276 = vmatpush1.msra.mxu0 0.0
    %277 = vmatprep.subr.mxu0 0.0
    %278 = vmatpush1.msra.mxu0 0.0
    %279 = vmatprep.subr.mxu0 0.0
    %280 = vmatpush1.msra.mxu0 0.0
    %281 = vmatprep.subr.mxu0 0.0
    %282 = vmatpush1.msra.mxu0 0.0
    %283 = vmatprep.subr.mxu0 0.0
    %284 = vmatpush1.msra.mxu0 0.0
    %285 = vmatprep.subr.mxu0 0.0
    %286 = vmatpush1.msra.mxu0 0.0
    %287 = vmatprep.subr.mxu0 0.0
    %288 = vmatpush1.msra.mxu0 0.0
    %289 = vmatprep.mubr.f32.mxu0 0.0
    %290 = vmatmul.mubr.f32.gmra.mrb[0].mxu0 %v187
    %v291 = vpop.f32.mrb[0].mxu0
    %v292 = vadd.f32 %v183, %v291
    %v293 = vpop.f32.mrb[0].mxu0
    %294 = vmatprep.mubr.f32.mxu0 0.0
    %295 = vmatmul.mubr.f32.gmra.mrb[0].mxu0 %v190
    %v296 = vpop.f32.mrb[0].mxu0
    %v297 = vadd.f32 %v183, %v296
    %v298 = vpop.f32.mrb[0].mxu0
    %299 = vmatprep.mubr.f32.mxu0 0.0
    %300 = vmatmul.mubr.f32.gmra.mrb[0].mxu0 %v193
    %v301 = vpop.f32.mrb[0].mxu0
    %v302 = vadd.f32 %v183, %v301
    %v303 = vpop.f32.mrb[0].mxu0
    %304 = vmatprep.mubr.f32.mxu0 0.0
    %305 = vmatmul.mubr.f32.gmra.mrb[0].mxu0 %v196
    %v306 = vpop.f32.mrb[0].mxu0
    %v307 = vadd.f32 %v183, %v306
    %v308 = vpop.f32.mrb[0].mxu0
    %309 = vmatprep.mubr.f32.mxu0 0.0
    %310 = vmatmul.mubr.f32.gmra.mrb[0].mxu0 %v199
    %v311 = vpop.f32.mrb[0].mxu0
    %v312 = vadd.f32 %v183, %v311
    %v313 = vpop.f32.mrb[0].mxu0
    %314 = vmatprep.mubr.f32.mxu0 0.0
    %315 = vmatmul.mubr.f32.gmra.mrb[0].mxu0 %v202
    %v316 = vpop.f32.mrb[0].mxu0
    %v317 = vadd.f32 %v183, %v316
    %v318 = vpop.f32.mrb[0].mxu0
    %319 = vmatprep.mubr.f32.mxu0 0.0
    %320 = vmatmul.mubr.f32.gmra.mrb[0].mxu0 %v205
    %v321 = vpop.f32.mrb[0].mxu0
    %v322 = vadd.f32 %v183, %v321
    %v323 = vpop.f32.mrb[0].mxu0
    %324 = vmatprep.mubr.f32.mxu0 0.0
    %325 = vmatmul.mubr.f32.gmra.mrb[0].mxu0 %v208
    %v326 = vpop.f32.mrb[0].mxu0
    %v327 = vadd.f32 %v183, %v326
    %v328 = vpop.f32.mrb[0].mxu0
    %329 = vmatprep.mubr.f32.mxu0 0.0
    %330 = vmatmul.mubr.f32.gmra.mrb[0].mxu0 %v211
    %v331 = vpop.f32.mrb[0].mxu0
    %v332 = vadd.f32 %v183, %v331
    %v333 = vpop.f32.mrb[0].mxu0
    %334 = vmatprep.mubr.f32.mxu0 0.0
    %335 = vmatmul.mubr.f32.gmra.mrb[0].mxu0 %v214
    %v336 = vpop.f32.mrb[0].mxu0
    %v337 = vadd.f32 %v183, %v336
    %v338 = vpop.f32.mrb[0].mxu0
    %339 = vmatprep.mubr.f32.mxu0 0.0
    %340 = vmatmul.mubr.f32.gmra.mrb[0].mxu0 %v217
    %v341 = vpop.f32.mrb[0].mxu0
    %v342 = vadd.f32 %v183, %v341
    %v343 = vpop.f32.mrb[0].mxu0
    %344 = vmatprep.mubr.f32.mxu0 0.0
    %345 = vmatmul.mubr.f32.gmra.mrb[0].mxu0 %v220
    %v346 = vpop.f32.mrb[0].mxu0
    %v347 = vadd.f32 %v183, %v346
    %v348 = vpop.f32.mrb[0].mxu0
    %349 = vmatprep.mubr.f32.mxu0 0.0
    %350 = vmatmul.mubr.f32.gmra.mrb[0].mxu0 %v223
    %v351 = vpop.f32.mrb[0].mxu0
    %v352 = vadd.f32 %v183, %v351
    %v353 = vpop.f32.mrb[0].mxu0
    %354 = vdwg.mxu0
    %v355 = vmax.f32 %v292, 0.0
    %v356 = vmax.f32 %v297, 0.0
    %v357 = vmax.f32 %v302, 0.0
    %v358 = vmax.f32 %v307, 0.0
    %v359 = vmax.f32 %v312, 0.0
    %v360 = vmax.f32 %v317, 0.0
    %v361 = vmax.f32 %v322, 0.0
    %v362 = vmax.f32 %v327, 0.0
    %v363 = vmax.f32 %v332, 0.0
    %v364 = vmax.f32 %v337, 0.0
    %v365 = vmax.f32 %v342, 0.0
    %v366 = vmax.f32 %v347, 0.0
    %v367 = vmax.f32 %v352, 0.0
    %v368 = vld [vmem:[%s3] sm:$0xff]
    %v369 = vld [vmem:[%s3 + $0x8] sm:$0xff]
    %v370 = vld [vmem:[%s3 + $0x10] sm:$0xff]
    %v371 = vld [vmem:[%s3 + $0x18] sm:$0xff]
    %v372 = vld [vmem:[#allocation6] sm:$0x1]
    %v374 = vlaneseq
    %v375 = vshrl.u32 %v374, 7
    %v376 = vsub.s32 0, %v375
    %v377 = vrot.slane %v372, %v376
    %vm379 = vcmask 261120
    %v381 = vsel %vm379, %v355, 0
    %v384 = vsel %vm379, %v356, 0
    %v387 = vsel %vm379, %v357, 0
    %v390 = vsel %vm379, %v358, 0
    %v393 = vsel %vm379, %v359, 0
    %v396 = vsel %vm379, %v360, 0
    %v399 = vsel %vm379, %v361, 0
    %v402 = vsel %vm379, %v362, 0
    %v405 = vsel %vm379, %v363, 0
    %v408 = vsel %vm379, %v364, 0
    %v411 = vsel %vm379, %v365, 0
    %v414 = vsel %vm379, %v366, 0
    %v417 = vsel %vm379, %v367, 0
    %419 = vmatprep.subr.mxu0 0.0
    %420 = vmatpush1.msra.mxu0 %v368
    %421 = vmatprep.subr.mxu0 0.0
    %422 = vmatpush1.msra.mxu0 %v369
    %423 = vmatprep.subr.mxu0 0.0
    %424 = vmatpush1.msra.mxu0 %v370
    %425 = vmatprep.subr.mxu0 0.0
    %426 = vmatpush1.msra.mxu0 %v371
    %427 = vmatprep.subr.mxu0 0.0
    %428 = vmatpush1.msra.mxu0 0.0
    %429 = vmatprep.subr.mxu0 0.0
    %430 = vmatpush1.msra.mxu0 0.0
    %431 = vmatprep.subr.mxu0 0.0
    %432 = vmatpush1.msra.mxu0 0.0
    %433 = vmatprep.subr.mxu0 0.0
    %434 = vmatpush1.msra.mxu0 0.0
    %435 = vmatprep.subr.mxu0 0.0
    %436 = vmatpush1.msra.mxu0 0.0
    %437 = vmatprep.subr.mxu0 0.0
    %438 = vmatpush1.msra.mxu0 0.0
    %439 = vmatprep.subr.mxu0 0.0
    %440 = vmatpush1.msra.mxu0 0.0
    %441 = vmatprep.subr.mxu0 0.0
    %442 = vmatpush1.msra.mxu0 0.0
    %443 = vmatprep.subr.mxu0 0.0
    %444 = vmatpush1.msra.mxu0 0.0
    %445 = vmatprep.subr.mxu0 0.0
    %446 = vmatpush1.msra.mxu0 0.0
    %447 = vmatprep.subr.mxu0 0.0
    %448 = vmatpush1.msra.mxu0 0.0
    %449 = vmatprep.subr.mxu0 0.0
    %450 = vmatpush1.msra.mxu0 0.0
    %451 = vmatprep.subr.mxu0 0.0
    %452 = vmatpush1.msra.mxu0 0.0
    %453 = vmatprep.subr.mxu0 0.0
    %454 = vmatpush1.msra.mxu0 0.0
    %455 = vmatprep.subr.mxu0 0.0
    %456 = vmatpush1.msra.mxu0 0.0
    %457 = vmatprep.subr.mxu0 0.0
    %458 = vmatpush1.msra.mxu0 0.0
    %459 = vmatprep.subr.mxu0 0.0
    %460 = vmatpush1.msra.mxu0 0.0
    %461 = vmatprep.subr.mxu0 0.0
    %462 = vmatpush1.msra.mxu0 0.0
    %463 = vmatprep.subr.mxu0 0.0
    %464 = vmatpush1.msra.mxu0 0.0
    %465 = vmatprep.subr.mxu0 0.0
    %466 = vmatpush1.msra.mxu0 0.0
    %467 = vmatprep.subr.mxu0 0.0
    %468 = vmatpush1.msra.mxu0 0.0
    %469 = vmatprep.subr.mxu0 0.0
    %470 = vmatpush1.msra.mxu0 0.0
    %471 = vmatprep.subr.mxu0 0.0
    %472 = vmatpush1.msra.mxu0 0.0
    %473 = vmatprep.subr.mxu0 0.0
    %474 = vmatpush1.msra.mxu0 0.0
    %475 = vmatprep.subr.mxu0 0.0
    %476 = vmatpush1.msra.mxu0 0.0
    %477 = vmatprep.subr.mxu0 0.0
    %478 = vmatpush1.msra.mxu0 0.0
    %479 = vmatprep.subr.mxu0 0.0
    %480 = vmatpush1.msra.mxu0 0.0
    %481 = vmatprep.subr.mxu0 0.0
    %482 = vmatpush1.msra.mxu0 0.0
    %483 = vmatprep.mubr.f32.mxu0 0.0
    %484 = vmatmul.mubr.f32.gmra.mrb[0].mxu0 %v381
    %v485 = vpop.f32.mrb[0].mxu0
    %v486 = vadd.f32 %v377, %v485
    %v487 = vpop.f32.mrb[0].mxu0
    %488 = vmatprep.mubr.f32.mxu0 0.0
    %489 = vmatmul.mubr.f32.gmra.mrb[0].mxu0 %v384
    %v490 = vpop.f32.mrb[0].mxu0
    %v491 = vadd.f32 %v377, %v490
    %v492 = vpop.f32.mrb[0].mxu0
    %493 = vmatprep.mubr.f32.mxu0 0.0
    %494 = vmatmul.mubr.f32.gmra.mrb[0].mxu0 %v387
    %v495 = vpop.f32.mrb[0].mxu0
    %v496 = vadd.f32 %v377, %v495
    %v497 = vpop.f32.mrb[0].mxu0
    %498 = vmatprep.mubr.f32.mxu0 0.0
    %499 = vmatmul.mubr.f32.gmra.mrb[0].mxu0 %v390
    %v500 = vpop.f32.mrb[0].mxu0
    %v501 = vadd.f32 %v377, %v500
    %v502 = vpop.f32.mrb[0].mxu0
    %503 = vmatprep.mubr.f32.mxu0 0.0
    %504 = vmatmul.mubr.f32.gmra.mrb[0].mxu0 %v393
    %v505 = vpop.f32.mrb[0].mxu0
    %v506 = vadd.f32 %v377, %v505
    %v507 = vpop.f32.mrb[0].mxu0
    %508 = vmatprep.mubr.f32.mxu0 0.0
    %509 = vmatmul.mubr.f32.gmra.mrb[0].mxu0 %v396
    %v510 = vpop.f32.mrb[0].mxu0
    %v511 = vadd.f32 %v377, %v510
    %v512 = vpop.f32.mrb[0].mxu0
    %513 = vmatprep.mubr.f32.mxu0 0.0
    %514 = vmatmul.mubr.f32.gmra.mrb[0].mxu0 %v399
    %v515 = vpop.f32.mrb[0].mxu0
    %v516 = vadd.f32 %v377, %v515
    %v517 = vpop.f32.mrb[0].mxu0
    %518 = vmatprep.mubr.f32.mxu0 0.0
    %519 = vmatmul.mubr.f32.gmra.mrb[0].mxu0 %v402
    %v520 = vpop.f32.mrb[0].mxu0
    %v521 = vadd.f32 %v377, %v520
    %v522 = vpop.f32.mrb[0].mxu0
    %523 = vmatprep.mubr.f32.mxu0 0.0
    %524 = vmatmul.mubr.f32.gmra.mrb[0].mxu0 %v405
    %v525 = vpop.f32.mrb[0].mxu0
    %v526 = vadd.f32 %v377, %v525
    %v527 = vpop.f32.mrb[0].mxu0
    %528 = vmatprep.mubr.f32.mxu0 0.0
    %529 = vmatmul.mubr.f32.gmra.mrb[0].mxu0 %v408
    %v530 = vpop.f32.mrb[0].mxu0
    %v531 = vadd.f32 %v377, %v530
    %v532 = vpop.f32.mrb[0].mxu0
    %533 = vmatprep.mubr.f32.mxu0 0.0
    %534 = vmatmul.mubr.f32.gmra.mrb[0].mxu0 %v411
    %v535 = vpop.f32.mrb[0].mxu0
    %v536 = vadd.f32 %v377, %v535
    %v537 = vpop.f32.mrb[0].mxu0
    %538 = vmatprep.mubr.f32.mxu0 0.0
    %539 = vmatmul.mubr.f32.gmra.mrb[0].mxu0 %v414
    %v540 = vpop.f32.mrb[0].mxu0
    %v541 = vadd.f32 %v377, %v540
    %v542 = vpop.f32.mrb[0].mxu0
    %543 = vmatprep.mubr.f32.mxu0 0.0
    %544 = vmatmul.mubr.f32.gmra.mrb[0].mxu0 %v417
    %v545 = vpop.f32.mrb[0].mxu0
    %v546 = vadd.f32 %v377, %v545
    %v547 = vpop.f32.mrb[0].mxu0
    %548 = vdwg.mxu0
    %v549 = vmax.f32 %v486, 0.0
    %v550 = vmax.f32 %v491, 0.0
    %v551 = vmax.f32 %v496, 0.0
    %v552 = vmax.f32 %v501, 0.0
    %v553 = vmax.f32 %v506, 0.0
    %v554 = vmax.f32 %v511, 0.0
    %v555 = vmax.f32 %v516, 0.0
    %v556 = vmax.f32 %v521, 0.0
    %v557 = vmax.f32 %v526, 0.0
    %v558 = vmax.f32 %v531, 0.0
    %v559 = vmax.f32 %v536, 0.0
    %v560 = vmax.f32 %v541, 0.0
    %v561 = vmax.f32 %v546, 0.0
    %v562 = vld [vmem:[%s5] sm:$0xff]
    %v563 = vld [vmem:[%s5 + $0x8] sm:$0xff]
    %v564 = vld [vmem:[%s5 + $0x10] sm:$0xff]
    %v565 = vld [vmem:[%s5 + $0x18] sm:$0xff]
    %v566 = vld [vmem:[#allocation7] sm:$0x1]
    %v568 = vlaneseq
    %v569 = vshrl.u32 %v568, 7
    %v570 = vsub.s32 0, %v569
    %v571 = vrot.slane %v566, %v570
    %v574 = vsel %vm379, %v549, 0
    %v577 = vsel %vm379, %v550, 0
    %v580 = vsel %vm379, %v551, 0
    %v583 = vsel %vm379, %v552, 0
    %v586 = vsel %vm379, %v553, 0
    %v589 = vsel %vm379, %v554, 0
    %v592 = vsel %vm379, %v555, 0
    %v595 = vsel %vm379, %v556, 0
    %v598 = vsel %vm379, %v557, 0
    %v601 = vsel %vm379, %v558, 0
    %v604 = vsel %vm379, %v559, 0
    %v607 = vsel %vm379, %v560, 0
    %v610 = vsel %vm379, %v561, 0
    %612 = vmatprep.subr.mxu0 0.0
    %613 = vmatpush1.msra.mxu0 %v562
    %614 = vmatprep.subr.mxu0 0.0
    %615 = vmatpush1.msra.mxu0 %v563
    %616 = vmatprep.subr.mxu0 0.0
    %617 = vmatpush1.msra.mxu0 %v564
    %618 = vmatprep.subr.mxu0 0.0
    %619 = vmatpush1.msra.mxu0 %v565
    %620 = vmatprep.subr.mxu0 0.0
    %621 = vmatpush1.msra.mxu0 0.0
    %622 = vmatprep.subr.mxu0 0.0
    %623 = vmatpush1.msra.mxu0 0.0
    %624 = vmatprep.subr.mxu0 0.0
    %625 = vmatpush1.msra.mxu0 0.0
    %626 = vmatprep.subr.mxu0 0.0
    %627 = vmatpush1.msra.mxu0 0.0
    %628 = vmatprep.subr.mxu0 0.0
    %629 = vmatpush1.msra.mxu0 0.0
    %630 = vmatprep.subr.mxu0 0.0
    %631 = vmatpush1.msra.mxu0 0.0
    %632 = vmatprep.subr.mxu0 0.0
    %633 = vmatpush1.msra.mxu0 0.0
    %634 = vmatprep.subr.mxu0 0.0
    %635 = vmatpush1.msra.mxu0 0.0
    %636 = vmatprep.subr.mxu0 0.0
    %637 = vmatpush1.msra.mxu0 0.0
    %638 = vmatprep.subr.mxu0 0.0
    %639 = vmatpush1.msra.mxu0 0.0
    %640 = vmatprep.subr.mxu0 0.0
    %641 = vmatpush1.msra.mxu0 0.0
    %642 = vmatprep.subr.mxu0 0.0
    %643 = vmatpush1.msra.mxu0 0.0
    %644 = vmatprep.subr.mxu0 0.0
    %645 = vmatpush1.msra.mxu0 0.0
    %646 = vmatprep.subr.mxu0 0.0
    %647 = vmatpush1.msra.mxu0 0.0
    %648 = vmatprep.subr.mxu0 0.0
    %649 = vmatpush1.msra.mxu0 0.0
    %650 = vmatprep.subr.mxu0 0.0
    %651 = vmatpush1.msra.mxu0 0.0
    %652 = vmatprep.subr.mxu0 0.0
    %653 = vmatpush1.msra.mxu0 0.0
    %654 = vmatprep.subr.mxu0 0.0
    %655 = vmatpush1.msra.mxu0 0.0
    %656 = vmatprep.subr.mxu0 0.0
    %657 = vmatpush1.msra.mxu0 0.0
    %658 = vmatprep.subr.mxu0 0.0
    %659 = vmatpush1.msra.mxu0 0.0
    %660 = vmatprep.subr.mxu0 0.0
    %661 = vmatpush1.msra.mxu0 0.0
    %662 = vmatprep.subr.mxu0 0.0
    %663 = vmatpush1.msra.mxu0 0.0
    %664 = vmatprep.subr.mxu0 0.0
    %665 = vmatpush1.msra.mxu0 0.0
    %666 = vmatprep.subr.mxu0 0.0
    %667 = vmatpush1.msra.mxu0 0.0
    %668 = vmatprep.subr.mxu0 0.0
    %669 = vmatpush1.msra.mxu0 0.0
    %670 = vmatprep.subr.mxu0 0.0
    %671 = vmatpush1.msra.mxu0 0.0
    %672 = vmatprep.subr.mxu0 0.0
    %673 = vmatpush1.msra.mxu0 0.0
    %674 = vmatprep.subr.mxu0 0.0
    %675 = vmatpush1.msra.mxu0 0.0
    %676 = vmatprep.mubr.f32.mxu0 0.0
    %677 = vmatmul.mubr.f32.gmra.mrb[0].mxu0 %v574
    %v678 = vpop.f32.mrb[0].mxu0
    %v679 = vadd.f32 %v571, %v678
    %v680 = vpop.f32.mrb[0].mxu0
    %681 = vmatprep.mubr.f32.mxu0 0.0
    %682 = vmatmul.mubr.f32.gmra.mrb[0].mxu0 %v577
    %v683 = vpop.f32.mrb[0].mxu0
    %v684 = vadd.f32 %v571, %v683
    %v685 = vpop.f32.mrb[0].mxu0
    %686 = vmatprep.mubr.f32.mxu0 0.0
    %687 = vmatmul.mubr.f32.gmra.mrb[0].mxu0 %v580
    %v688 = vpop.f32.mrb[0].mxu0
    %v689 = vadd.f32 %v571, %v688
    %v690 = vpop.f32.mrb[0].mxu0
    %691 = vmatprep.mubr.f32.mxu0 0.0
    %692 = vmatmul.mubr.f32.gmra.mrb[0].mxu0 %v583
    %v693 = vpop.f32.mrb[0].mxu0
    %v694 = vadd.f32 %v571, %v693
    %v695 = vpop.f32.mrb[0].mxu0
    %696 = vmatprep.mubr.f32.mxu0 0.0
    %697 = vmatmul.mubr.f32.gmra.mrb[0].mxu0 %v586
    %v698 = vpop.f32.mrb[0].mxu0
    %v699 = vadd.f32 %v571, %v698
    %v700 = vpop.f32.mrb[0].mxu0
    %701 = vmatprep.mubr.f32.mxu0 0.0
    %702 = vmatmul.mubr.f32.gmra.mrb[0].mxu0 %v589
    %v703 = vpop.f32.mrb[0].mxu0
    %v704 = vadd.f32 %v571, %v703
    %v705 = vpop.f32.mrb[0].mxu0
    %706 = vmatprep.mubr.f32.mxu0 0.0
    %707 = vmatmul.mubr.f32.gmra.mrb[0].mxu0 %v592
    %v708 = vpop.f32.mrb[0].mxu0
    %v709 = vadd.f32 %v571, %v708
    %v710 = vpop.f32.mrb[0].mxu0
    %711 = vmatprep.mubr.f32.mxu0 0.0
    %712 = vmatmul.mubr.f32.gmra.mrb[0].mxu0 %v595
    %v713 = vpop.f32.mrb[0].mxu0
    %v714 = vadd.f32 %v571, %v713
    %v715 = vpop.f32.mrb[0].mxu0
    %716 = vmatprep.mubr.f32.mxu0 0.0
    %717 = vmatmul.mubr.f32.gmra.mrb[0].mxu0 %v598
    %v718 = vpop.f32.mrb[0].mxu0
    %v719 = vadd.f32 %v571, %v718
    %v720 = vpop.f32.mrb[0].mxu0
    %721 = vmatprep.mubr.f32.mxu0 0.0
    %722 = vmatmul.mubr.f32.gmra.mrb[0].mxu0 %v601
    %v723 = vpop.f32.mrb[0].mxu0
    %v724 = vadd.f32 %v571, %v723
    %v725 = vpop.f32.mrb[0].mxu0
    %726 = vmatprep.mubr.f32.mxu0 0.0
    %727 = vmatmul.mubr.f32.gmra.mrb[0].mxu0 %v604
    %v728 = vpop.f32.mrb[0].mxu0
    %v729 = vadd.f32 %v571, %v728
    %v730 = vpop.f32.mrb[0].mxu0
    %731 = vmatprep.mubr.f32.mxu0 0.0
    %732 = vmatmul.mubr.f32.gmra.mrb[0].mxu0 %v607
    %v733 = vpop.f32.mrb[0].mxu0
    %v734 = vadd.f32 %v571, %v733
    %v735 = vpop.f32.mrb[0].mxu0
    %736 = vmatprep.mubr.f32.mxu0 0.0
    %737 = vmatmul.mubr.f32.gmra.mrb[0].mxu0 %v610
    %v738 = vpop.f32.mrb[0].mxu0
    %v739 = vadd.f32 %v571, %v738
    %v740 = vpop.f32.mrb[0].mxu0
    %741 = vdwg.mxu0
    %v742 = vmax.f32 %v679, 0.0
    %v743 = vmax.f32 %v684, 0.0
    %v744 = vmax.f32 %v689, 0.0
    %v745 = vmax.f32 %v694, 0.0
    %v746 = vmax.f32 %v699, 0.0
    %v747 = vmax.f32 %v704, 0.0
    %v748 = vmax.f32 %v709, 0.0
    %v749 = vmax.f32 %v714, 0.0
    %v750 = vmax.f32 %v719, 0.0
    %v751 = vmax.f32 %v724, 0.0
    %v752 = vmax.f32 %v729, 0.0
    %v753 = vmax.f32 %v734, 0.0
    %v754 = vmax.f32 %v739, 0.0
    %v755 = vld [vmem:[%s7] sm:$0xff]
    %v756 = vld [vmem:[%s7 + $0x8] sm:$0xff]
    %v757 = vld [vmem:[%s7 + $0x10] sm:$0xff]
    %v758 = vld [vmem:[%s7 + $0x18] sm:$0xff]
    %v759 = vld [vmem:[#allocation9] sm:$0x1]
    %v761 = vlaneseq
    %v762 = vshrl.u32 %v761, 7
    %v763 = vsub.s32 0, %v762
    %v764 = vrot.slane %v759, %v763
    %v767 = vsel %vm379, %v742, 0
    %v770 = vsel %vm379, %v743, 0
    %v773 = vsel %vm379, %v744, 0
    %v776 = vsel %vm379, %v745, 0
    %v779 = vsel %vm379, %v746, 0
    %v782 = vsel %vm379, %v747, 0
    %v785 = vsel %vm379, %v748, 0
    %v788 = vsel %vm379, %v749, 0
    %v791 = vsel %vm379, %v750, 0
    %v794 = vsel %vm379, %v751, 0
    %v797 = vsel %vm379, %v752, 0
    %v800 = vsel %vm379, %v753, 0
    %v803 = vsel %vm379, %v754, 0
    %805 = vmatprep.subr.mxu0 0.0
    %806 = vmatpush1.msra.mxu0 %v755
    %807 = vmatprep.subr.mxu0 0.0
    %808 = vmatpush1.msra.mxu0 %v756
    %809 = vmatprep.subr.mxu0 0.0
    %810 = vmatpush1.msra.mxu0 %v757
    %811 = vmatprep.subr.mxu0 0.0
    %812 = vmatpush1.msra.mxu0 %v758
    %813 = vmatprep.subr.mxu0 0.0
    %814 = vmatpush1.msra.mxu0 0.0
    %815 = vmatprep.subr.mxu0 0.0
    %816 = vmatpush1.msra.mxu0 0.0
    %817 = vmatprep.subr.mxu0 0.0
    %818 = vmatpush1.msra.mxu0 0.0
    %819 = vmatprep.subr.mxu0 0.0
    %820 = vmatpush1.msra.mxu0 0.0
    %821 = vmatprep.subr.mxu0 0.0
    %822 = vmatpush1.msra.mxu0 0.0
    %823 = vmatprep.subr.mxu0 0.0
    %824 = vmatpush1.msra.mxu0 0.0
    %825 = vmatprep.subr.mxu0 0.0
    %826 = vmatpush1.msra.mxu0 0.0
    %827 = vmatprep.subr.mxu0 0.0
    %828 = vmatpush1.msra.mxu0 0.0
    %829 = vmatprep.subr.mxu0 0.0
    %830 = vmatpush1.msra.mxu0 0.0
    %831 = vmatprep.subr.mxu0 0.0
    %832 = vmatpush1.msra.mxu0 0.0
    %833 = vmatprep.subr.mxu0 0.0
    %834 = vmatpush1.msra.mxu0 0.0
    %835 = vmatprep.subr.mxu0 0.0
    %836 = vmatpush1.msra.mxu0 0.0
    %837 = vmatprep.subr.mxu0 0.0
    %838 = vmatpush1.msra.mxu0 0.0
    %839 = vmatprep.subr.mxu0 0.0
    %840 = vmatpush1.msra.mxu0 0.0
    %841 = vmatprep.subr.mxu0 0.0
    %842 = vmatpush1.msra.mxu0 0.0
    %843 = vmatprep.subr.mxu0 0.0
    %844 = vmatpush1.msra.mxu0 0.0
    %845 = vmatprep.subr.mxu0 0.0
    %846 = vmatpush1.msra.mxu0 0.0
    %847 = vmatprep.subr.mxu0 0.0
    %848 = vmatpush1.msra.mxu0 0.0
    %849 = vmatprep.subr.mxu0 0.0
    %850 = vmatpush1.msra.mxu0 0.0
    %851 = vmatprep.subr.mxu0 0.0
    %852 = vmatpush1.msra.mxu0 0.0
    %853 = vmatprep.subr.mxu0 0.0
    %854 = vmatpush1.msra.mxu0 0.0
    %855 = vmatprep.subr.mxu0 0.0
    %856 = vmatpush1.msra.mxu0 0.0
    %857 = vmatprep.subr.mxu0 0.0
    %858 = vmatpush1.msra.mxu0 0.0
    %859 = vmatprep.subr.mxu0 0.0
    %860 = vmatpush1.msra.mxu0 0.0
    %861 = vmatprep.subr.mxu0 0.0
    %862 = vmatpush1.msra.mxu0 0.0
    %863 = vmatprep.subr.mxu0 0.0
    %864 = vmatpush1.msra.mxu0 0.0
    %865 = vmatprep.subr.mxu0 0.0
    %866 = vmatpush1.msra.mxu0 0.0
    %867 = vmatprep.subr.mxu0 0.0
    %868 = vmatpush1.msra.mxu0 0.0
    %869 = vmatprep.mubr.f32.mxu0 0.0
    %870 = vmatmul.mubr.f32.gmra.mrb[0].mxu0 %v767
    %v871 = vpop.f32.mrb[0].mxu0
    %v872 = vadd.f32 %v764, %v871
    %v873 = vpop.f32.mrb[0].mxu0
    %874 = vmatprep.mubr.f32.mxu0 0.0
    %875 = vmatmul.mubr.f32.gmra.mrb[0].mxu0 %v770
    %v876 = vpop.f32.mrb[0].mxu0
    %v877 = vadd.f32 %v764, %v876
    %v878 = vpop.f32.mrb[0].mxu0
    %879 = vmatprep.mubr.f32.mxu0 0.0
    %880 = vmatmul.mubr.f32.gmra.mrb[0].mxu0 %v773
    %v881 = vpop.f32.mrb[0].mxu0
    %v882 = vadd.f32 %v764, %v881
    %v883 = vpop.f32.mrb[0].mxu0
    %884 = vmatprep.mubr.f32.mxu0 0.0
    %885 = vmatmul.mubr.f32.gmra.mrb[0].mxu0 %v776
    %v886 = vpop.f32.mrb[0].mxu0
    %v887 = vadd.f32 %v764, %v886
    %v888 = vpop.f32.mrb[0].mxu0
    %889 = vmatprep.mubr.f32.mxu0 0.0
    %890 = vmatmul.mubr.f32.gmra.mrb[0].mxu0 %v779
    %v891 = vpop.f32.mrb[0].mxu0
    %v892 = vadd.f32 %v764, %v891
    %v893 = vpop.f32.mrb[0].mxu0
    %894 = vmatprep.mubr.f32.mxu0 0.0
    %895 = vmatmul.mubr.f32.gmra.mrb[0].mxu0 %v782
    %v896 = vpop.f32.mrb[0].mxu0
    %v897 = vadd.f32 %v764, %v896
    %v898 = vpop.f32.mrb[0].mxu0
    %899 = vmatprep.mubr.f32.mxu0 0.0
    %900 = vmatmul.mubr.f32.gmra.mrb[0].mxu0 %v785
    %v901 = vpop.f32.mrb[0].mxu0
    %v902 = vadd.f32 %v764, %v901
    %v903 = vpop.f32.mrb[0].mxu0
    %904 = vmatprep.mubr.f32.mxu0 0.0
    %905 = vmatmul.mubr.f32.gmra.mrb[0].mxu0 %v788
    %v906 = vpop.f32.mrb[0].mxu0
    %v907 = vadd.f32 %v764, %v906
    %v908 = vpop.f32.mrb[0].mxu0
    %909 = vmatprep.mubr.f32.mxu0 0.0
    %910 = vmatmul.mubr.f32.gmra.mrb[0].mxu0 %v791
    %v911 = vpop.f32.mrb[0].mxu0
    %v912 = vadd.f32 %v764, %v911
    %v913 = vpop.f32.mrb[0].mxu0
    %914 = vmatprep.mubr.f32.mxu0 0.0
    %915 = vmatmul.mubr.f32.gmra.mrb[0].mxu0 %v794
    %v916 = vpop.f32.mrb[0].mxu0
    %v917 = vadd.f32 %v764, %v916
    %v918 = vpop.f32.mrb[0].mxu0
    %919 = vmatprep.mubr.f32.mxu0 0.0
    %920 = vmatmul.mubr.f32.gmra.mrb[0].mxu0 %v797
    %v921 = vpop.f32.mrb[0].mxu0
    %v922 = vadd.f32 %v764, %v921
    %v923 = vpop.f32.mrb[0].mxu0
    %924 = vmatprep.mubr.f32.mxu0 0.0
    %925 = vmatmul.mubr.f32.gmra.mrb[0].mxu0 %v800
    %v926 = vpop.f32.mrb[0].mxu0
    %v927 = vadd.f32 %v764, %v926
    %v928 = vpop.f32.mrb[0].mxu0
    %929 = vmatprep.mubr.f32.mxu0 0.0
    %930 = vmatmul.mubr.f32.gmra.mrb[0].mxu0 %v803
    %v931 = vpop.f32.mrb[0].mxu0
    %v932 = vadd.f32 %v764, %v931
    %v933 = vpop.f32.mrb[0].mxu0
    %934 = vdwg.mxu0
    %v935 = vmax.f32 %v872, 0.0
    %v936 = vmax.f32 %v877, 0.0
    %v937 = vmax.f32 %v882, 0.0
    %v938 = vmax.f32 %v887, 0.0
    %v939 = vmax.f32 %v892, 0.0
    %v940 = vmax.f32 %v897, 0.0
    %v941 = vmax.f32 %v902, 0.0
    %v942 = vmax.f32 %v907, 0.0
    %v943 = vmax.f32 %v912, 0.0
    %v944 = vmax.f32 %v917, 0.0
    %v945 = vmax.f32 %v922, 0.0
    %v946 = vmax.f32 %v927, 0.0
    %v947 = vmax.f32 %v932, 0.0
    %v948 = vld [vmem:[%s9] sm:$0xff]
    %v949 = vld [vmem:[%s9 + $0x8] sm:$0xff]
    %v950 = vld [vmem:[%s9 + $0x10] sm:$0xff]
    %v951 = vld [vmem:[%s9 + $0x18] sm:$0xff]
    %v952 = vld [vmem:[%s10] sm:$0xff]
    %v953 = vld [vmem:[%s10 + $0x8] sm:$0xff]
    %v954 = vld [vmem:[#allocation10] sm:$0x1]
    %955 = vmatprep.subr.mxu0 0.0
    %956 = vmatpush1.msra.mxu0 %v952
    %957 = vmatprep.subr.mxu0 0.0
    %958 = vmatpush1.msra.mxu0 %v953
    %959 = vmatprep.subr.mxu0 0.0
    %960 = vmatpush1.msra.mxu0 0.0
    %961 = vmatprep.subr.mxu0 0.0
    %962 = vmatpush1.msra.mxu0 0.0
    %963 = vmatprep.subr.mxu0 0.0
    %964 = vmatpush1.msra.mxu0 0.0
    %965 = vmatprep.subr.mxu0 0.0
    %966 = vmatpush1.msra.mxu0 0.0
    %967 = vmatprep.subr.mxu0 0.0
    %968 = vmatpush1.msra.mxu0 0.0
    %969 = vmatprep.subr.mxu0 0.0
    %970 = vmatpush1.msra.mxu0 0.0
    %971 = vmatprep.subr.mxu0 0.0
    %972 = vmatpush1.msra.mxu0 0.0
    %973 = vmatprep.subr.mxu0 0.0
    %974 = vmatpush1.msra.mxu0 0.0
    %975 = vmatprep.subr.mxu0 0.0
    %976 = vmatpush1.msra.mxu0 0.0
    %977 = vmatprep.subr.mxu0 0.0
    %978 = vmatpush1.msra.mxu0 0.0
    %979 = vmatprep.subr.mxu0 0.0
    %980 = vmatpush1.msra.mxu0 0.0
    %981 = vmatprep.subr.mxu0 0.0
    %982 = vmatpush1.msra.mxu0 0.0
    %983 = vmatprep.subr.mxu0 0.0
    %984 = vmatpush1.msra.mxu0 0.0
    %985 = vmatprep.subr.mxu0 0.0
    %986 = vmatpush1.msra.mxu0 0.0
    %987 = vmatprep.subr.mxu0 0.0
    %988 = vmatpush1.msra.mxu0 0.0
    %989 = vmatprep.subr.mxu0 0.0
    %990 = vmatpush1.msra.mxu0 0.0
    %991 = vmatprep.subr.mxu0 0.0
    %992 = vmatpush1.msra.mxu0 0.0
    %993 = vmatprep.subr.mxu0 0.0
    %994 = vmatpush1.msra.mxu0 0.0
    %995 = vmatprep.subr.mxu0 0.0
    %996 = vmatpush1.msra.mxu0 0.0
    %997 = vmatprep.subr.mxu0 0.0
    %998 = vmatpush1.msra.mxu0 0.0
    %999 = vmatprep.subr.mxu0 0.0
    %1000 = vmatpush1.msra.mxu0 0.0
    %1001 = vmatprep.subr.mxu0 0.0
    %1002 = vmatpush1.msra.mxu0 0.0
    %1003 = vmatprep.subr.mxu0 0.0
    %1004 = vmatpush1.msra.mxu0 0.0
    %1005 = vmatprep.subr.mxu0 0.0
    %1006 = vmatpush1.msra.mxu0 0.0
    %1007 = vmatprep.subr.mxu0 0.0
    %1008 = vmatpush1.msra.mxu0 0.0
    %1009 = vmatprep.subr.mxu0 0.0
    %1010 = vmatpush1.msra.mxu0 0.0
    %1011 = vmatprep.subr.mxu0 0.0
    %1012 = vmatpush1.msra.mxu0 0.0
    %1013 = vmatprep.subr.mxu0 0.0
    %1014 = vmatpush1.msra.mxu0 0.0
    %1015 = vmatprep.subr.mxu0 0.0
    %1016 = vmatpush1.msra.mxu0 0.0
    %1017 = vmatprep.subr.mxu0 0.0
    %1018 = vmatpush1.msra.mxu0 0.0
    %1019 = vmatprep.mubr.f32.mxu0 0.0
    %1020 = vmatmul.mubr.f32.gmra.mrb[0].mxu0 %v187
    %v1021 = vpop.f32.mrb[0].mxu0
    %v1022 = vadd.f32 0.0, %v1021
    %v1023 = vpop.f32.mrb[0].mxu0
    %1024 = vmatprep.mubr.f32.mxu0 0.0
    %1025 = vmatmul.mubr.f32.gmra.mrb[0].mxu0 %v190
    %v1026 = vpop.f32.mrb[0].mxu0
    %v1027 = vadd.f32 0.0, %v1026
    %v1028 = vpop.f32.mrb[0].mxu0
    %1029 = vmatprep.mubr.f32.mxu0 0.0
    %1030 = vmatmul.mubr.f32.gmra.mrb[0].mxu0 %v193
    %v1031 = vpop.f32.mrb[0].mxu0
    %v1032 = vadd.f32 0.0, %v1031
    %v1033 = vpop.f32.mrb[0].mxu0
    %1034 = vmatprep.mubr.f32.mxu0 0.0
    %1035 = vmatmul.mubr.f32.gmra.mrb[0].mxu0 %v196
    %v1036 = vpop.f32.mrb[0].mxu0
    %v1037 = vadd.f32 0.0, %v1036
    %v1038 = vpop.f32.mrb[0].mxu0
    %1039 = vmatprep.mubr.f32.mxu0 0.0
    %1040 = vmatmul.mubr.f32.gmra.mrb[0].mxu0 %v199
    %v1041 = vpop.f32.mrb[0].mxu0
    %v1042 = vadd.f32 0.0, %v1041
    %v1043 = vpop.f32.mrb[0].mxu0
    %1044 = vmatprep.mubr.f32.mxu0 0.0
    %1045 = vmatmul.mubr.f32.gmra.mrb[0].mxu0 %v202
    %v1046 = vpop.f32.mrb[0].mxu0
    %v1047 = vadd.f32 0.0, %v1046
    %v1048 = vpop.f32.mrb[0].mxu0
    %1049 = vmatprep.mubr.f32.mxu0 0.0
    %1050 = vmatmul.mubr.f32.gmra.mrb[0].mxu0 %v205
    %v1051 = vpop.f32.mrb[0].mxu0
    %v1052 = vadd.f32 0.0, %v1051
    %v1053 = vpop.f32.mrb[0].mxu0
    %1054 = vmatprep.mubr.f32.mxu0 0.0
    %1055 = vmatmul.mubr.f32.gmra.mrb[0].mxu0 %v208
    %v1056 = vpop.f32.mrb[0].mxu0
    %v1057 = vadd.f32 0.0, %v1056
    %v1058 = vpop.f32.mrb[0].mxu0
    %1059 = vmatprep.mubr.f32.mxu0 0.0
    %1060 = vmatmul.mubr.f32.gmra.mrb[0].mxu0 %v211
    %v1061 = vpop.f32.mrb[0].mxu0
    %v1062 = vadd.f32 0.0, %v1061
    %v1063 = vpop.f32.mrb[0].mxu0
    %1064 = vmatprep.mubr.f32.mxu0 0.0
    %1065 = vmatmul.mubr.f32.gmra.mrb[0].mxu0 %v214
    %v1066 = vpop.f32.mrb[0].mxu0
    %v1067 = vadd.f32 0.0, %v1066
    %v1068 = vpop.f32.mrb[0].mxu0
    %1069 = vmatprep.mubr.f32.mxu0 0.0
    %1070 = vmatmul.mubr.f32.gmra.mrb[0].mxu0 %v217
    %v1071 = vpop.f32.mrb[0].mxu0
    %v1072 = vadd.f32 0.0, %v1071
    %v1073 = vpop.f32.mrb[0].mxu0
    %1074 = vmatprep.mubr.f32.mxu0 0.0
    %1075 = vmatmul.mubr.f32.gmra.mrb[0].mxu0 %v220
    %v1076 = vpop.f32.mrb[0].mxu0
    %v1077 = vadd.f32 0.0, %v1076
    %v1078 = vpop.f32.mrb[0].mxu0
    %1079 = vmatprep.mubr.f32.mxu0 0.0
    %1080 = vmatmul.mubr.f32.gmra.mrb[0].mxu0 %v223
    %v1081 = vpop.f32.mrb[0].mxu0
    %v1082 = vadd.f32 0.0, %v1081
    %v1083 = vpop.f32.mrb[0].mxu0
    %1084 = vdwg.mxu0
    %v1086 = vsel %vm379, %v935, 0
    %v1089 = vsel %vm379, %v936, 0
    %v1092 = vsel %vm379, %v937, 0
    %v1095 = vsel %vm379, %v938, 0
    %v1098 = vsel %vm379, %v939, 0
    %v1101 = vsel %vm379, %v940, 0
    %v1104 = vsel %vm379, %v941, 0
    %v1107 = vsel %vm379, %v942, 0
    %v1110 = vsel %vm379, %v943, 0
    %v1113 = vsel %vm379, %v944, 0
    %v1116 = vsel %vm379, %v945, 0
    %v1119 = vsel %vm379, %v946, 0
    %v1122 = vsel %vm379, %v947, 0
    %1124 = vmatprep.subr.mxu0 0.0
    %1125 = vmatpush1.msra.mxu0 %v948
    %1126 = vmatprep.subr.mxu0 0.0
    %1127 = vmatpush1.msra.mxu0 %v949
    %1128 = vmatprep.subr.mxu0 0.0
    %1129 = vmatpush1.msra.mxu0 %v950
    %1130 = vmatprep.subr.mxu0 0.0
    %1131 = vmatpush1.msra.mxu0 %v951
    %1132 = vmatprep.subr.mxu0 0.0
    %1133 = vmatpush1.msra.mxu0 0.0
    %1134 = vmatprep.subr.mxu0 0.0
    %1135 = vmatpush1.msra.mxu0 0.0
    %1136 = vmatprep.subr.mxu0 0.0
    %1137 = vmatpush1.msra.mxu0 0.0
    %1138 = vmatprep.subr.mxu0 0.0
    %1139 = vmatpush1.msra.mxu0 0.0
    %1140 = vmatprep.subr.mxu0 0.0
    %1141 = vmatpush1.msra.mxu0 0.0
    %1142 = vmatprep.subr.mxu0 0.0
    %1143 = vmatpush1.msra.mxu0 0.0
    %1144 = vmatprep.subr.mxu0 0.0
    %1145 = vmatpush1.msra.mxu0 0.0
    %1146 = vmatprep.subr.mxu0 0.0
    %1147 = vmatpush1.msra.mxu0 0.0
    %1148 = vmatprep.subr.mxu0 0.0
    %1149 = vmatpush1.msra.mxu0 0.0
    %1150 = vmatprep.subr.mxu0 0.0
    %1151 = vmatpush1.msra.mxu0 0.0
    %1152 = vmatprep.subr.mxu0 0.0
    %1153 = vmatpush1.msra.mxu0 0.0
    %1154 = vmatprep.subr.mxu0 0.0
    %1155 = vmatpush1.msra.mxu0 0.0
    %1156 = vmatprep.subr.mxu0 0.0
    %1157 = vmatpush1.msra.mxu0 0.0
    %1158 = vmatprep.subr.mxu0 0.0
    %1159 = vmatpush1.msra.mxu0 0.0
    %1160 = vmatprep.subr.mxu0 0.0
    %1161 = vmatpush1.msra.mxu0 0.0
    %1162 = vmatprep.subr.mxu0 0.0
    %1163 = vmatpush1.msra.mxu0 0.0
    %1164 = vmatprep.subr.mxu0 0.0
    %1165 = vmatpush1.msra.mxu0 0.0
    %1166 = vmatprep.subr.mxu0 0.0
    %1167 = vmatpush1.msra.mxu0 0.0
    %1168 = vmatprep.subr.mxu0 0.0
    %1169 = vmatpush1.msra.mxu0 0.0
    %1170 = vmatprep.subr.mxu0 0.0
    %1171 = vmatpush1.msra.mxu0 0.0
    %1172 = vmatprep.subr.mxu0 0.0
    %1173 = vmatpush1.msra.mxu0 0.0
    %1174 = vmatprep.subr.mxu0 0.0
    %1175 = vmatpush1.msra.mxu0 0.0
    %1176 = vmatprep.subr.mxu0 0.0
    %1177 = vmatpush1.msra.mxu0 0.0
    %1178 = vmatprep.subr.mxu0 0.0
    %1179 = vmatpush1.msra.mxu0 0.0
    %1180 = vmatprep.subr.mxu0 0.0
    %1181 = vmatpush1.msra.mxu0 0.0
    %1182 = vmatprep.subr.mxu0 0.0
    %1183 = vmatpush1.msra.mxu0 0.0
    %1184 = vmatprep.subr.mxu0 0.0
    %1185 = vmatpush1.msra.mxu0 0.0
    %1186 = vmatprep.subr.mxu0 0.0
    %1187 = vmatpush1.msra.mxu0 0.0
    %1188 = vmatprep.mubr.f32.mxu0 0.0
    %1189 = vmatmul.mubr.f32.gmra.mrb[0].mxu0 %v1086
    %v1190 = vpop.f32.mrb[0].mxu0
    %v1191 = vadd.f32 %v1022, %v1190
    %v1192 = vpop.f32.mrb[0].mxu0
    %1193 = vmatprep.mubr.f32.mxu0 0.0
    %1194 = vmatmul.mubr.f32.gmra.mrb[0].mxu0 %v1089
    %v1195 = vpop.f32.mrb[0].mxu0
    %v1196 = vadd.f32 %v1027, %v1195
    %v1197 = vpop.f32.mrb[0].mxu0
    %1198 = vmatprep.mubr.f32.mxu0 0.0
    %1199 = vmatmul.mubr.f32.gmra.mrb[0].mxu0 %v1092
    %v1200 = vpop.f32.mrb[0].mxu0
    %v1201 = vadd.f32 %v1032, %v1200
    %v1202 = vpop.f32.mrb[0].mxu0
    %1203 = vmatprep.mubr.f32.mxu0 0.0
    %1204 = vmatmul.mubr.f32.gmra.mrb[0].mxu0 %v1095
    %v1205 = vpop.f32.mrb[0].mxu0
    %v1206 = vadd.f32 %v1037, %v1205
    %v1207 = vpop.f32.mrb[0].mxu0
    %1208 = vmatprep.mubr.f32.mxu0 0.0
    %1209 = vmatmul.mubr.f32.gmra.mrb[0].mxu0 %v1098
    %v1210 = vpop.f32.mrb[0].mxu0
    %v1211 = vadd.f32 %v1042, %v1210
    %v1212 = vpop.f32.mrb[0].mxu0
    %1213 = vmatprep.mubr.f32.mxu0 0.0
    %1214 = vmatmul.mubr.f32.gmra.mrb[0].mxu0 %v1101
    %v1215 = vpop.f32.mrb[0].mxu0
    %v1216 = vadd.f32 %v1047, %v1215
    %v1217 = vpop.f32.mrb[0].mxu0
    %1218 = vmatprep.mubr.f32.mxu0 0.0
    %1219 = vmatmul.mubr.f32.gmra.mrb[0].mxu0 %v1104
    %v1220 = vpop.f32.mrb[0].mxu0
    %v1221 = vadd.f32 %v1052, %v1220
    %v1222 = vpop.f32.mrb[0].mxu0
    %1223 = vmatprep.mubr.f32.mxu0 0.0
    %1224 = vmatmul.mubr.f32.gmra.mrb[0].mxu0 %v1107
    %v1225 = vpop.f32.mrb[0].mxu0
    %v1226 = vadd.f32 %v1057, %v1225
    %v1227 = vpop.f32.mrb[0].mxu0
    %1228 = vmatprep.mubr.f32.mxu0 0.0
    %1229 = vmatmul.mubr.f32.gmra.mrb[0].mxu0 %v1110
    %v1230 = vpop.f32.mrb[0].mxu0
    %v1231 = vadd.f32 %v1062, %v1230
    %v1232 = vpop.f32.mrb[0].mxu0
    %1233 = vmatprep.mubr.f32.mxu0 0.0
    %1234 = vmatmul.mubr.f32.gmra.mrb[0].mxu0 %v1113
    %v1235 = vpop.f32.mrb[0].mxu0
    %v1236 = vadd.f32 %v1067, %v1235
    %v1237 = vpop.f32.mrb[0].mxu0
    %1238 = vmatprep.mubr.f32.mxu0 0.0
    %1239 = vmatmul.mubr.f32.gmra.mrb[0].mxu0 %v1116
    %v1240 = vpop.f32.mrb[0].mxu0
    %v1241 = vadd.f32 %v1072, %v1240
    %v1242 = vpop.f32.mrb[0].mxu0
    %1243 = vmatprep.mubr.f32.mxu0 0.0
    %1244 = vmatmul.mubr.f32.gmra.mrb[0].mxu0 %v1119
    %v1245 = vpop.f32.mrb[0].mxu0
    %v1246 = vadd.f32 %v1077, %v1245
    %v1247 = vpop.f32.mrb[0].mxu0
    %1248 = vmatprep.mubr.f32.mxu0 0.0
    %1249 = vmatmul.mubr.f32.gmra.mrb[0].mxu0 %v1122
    %v1250 = vpop.f32.mrb[0].mxu0
    %v1251 = vadd.f32 %v1082, %v1250
    %v1252 = vpop.f32.mrb[0].mxu0
    %1253 = vdwg.mxu0
    %v1255 = vlaneseq
    %v1256 = vshrl.u32 %v1255, 7
    %v1257 = vsub.s32 0, %v1256
    %v1258 = vrot.slane %v954, %v1257
    %v1260 = vadd.f32 %v1191, %v1258
    %v1261 = vadd.f32 %v1196, %v1258
    %v1262 = vadd.f32 %v1201, %v1258
    %v1263 = vadd.f32 %v1206, %v1258
    %v1264 = vadd.f32 %v1211, %v1258
    %v1265 = vadd.f32 %v1216, %v1258
    %v1266 = vadd.f32 %v1221, %v1258
    %v1267 = vadd.f32 %v1226, %v1258
    %v1268 = vadd.f32 %v1231, %v1258
    %v1269 = vadd.f32 %v1236, %v1258
    %v1270 = vadd.f32 %v1241, %v1258
    %v1271 = vadd.f32 %v1246, %v1258
    %v1272 = vadd.f32 %v1251, %v1258
    %v1273 = vmax.f32 %v1260, 0.0
    %v1274 = vmax.f32 %v1261, 0.0
    %v1275 = vmax.f32 %v1262, 0.0
    %v1276 = vmax.f32 %v1263, 0.0
    %v1277 = vmax.f32 %v1264, 0.0
    %v1278 = vmax.f32 %v1265, 0.0
    %v1279 = vmax.f32 %v1266, 0.0
    %v1280 = vmax.f32 %v1267, 0.0
    %v1281 = vmax.f32 %v1268, 0.0
    %v1282 = vmax.f32 %v1269, 0.0
    %v1283 = vmax.f32 %v1270, 0.0
    %v1284 = vmax.f32 %v1271, 0.0
    %v1285 = vmax.f32 %v1272, 0.0
    %v1286 = vld [vmem:[%s12] sm:$0xff]
    %v1287 = vld [vmem:[%s12 + $0x8] sm:$0xff]
    %v1288 = vld [vmem:[%s12 + $0x10] sm:$0xff]
    %v1289 = vld [vmem:[%s12 + $0x18] sm:$0xff]
    %v1290 = vld [vmem:[#allocation12] sm:$0x1]
    %v1292 = vlaneseq
    %v1293 = vshrl.u32 %v1292, 7
    %v1294 = vsub.s32 0, %v1293
    %v1295 = vrot.slane %v1290, %v1294
    %v1298 = vsel %vm379, %v1273, 0
    %v1301 = vsel %vm379, %v1274, 0
    %v1304 = vsel %vm379, %v1275, 0
    %v1307 = vsel %vm379, %v1276, 0
    %v1310 = vsel %vm379, %v1277, 0
    %v1313 = vsel %vm379, %v1278, 0
    %v1316 = vsel %vm379, %v1279, 0
    %v1319 = vsel %vm379, %v1280, 0
    %v1322 = vsel %vm379, %v1281, 0
    %v1325 = vsel %vm379, %v1282, 0
    %v1328 = vsel %vm379, %v1283, 0
    %v1331 = vsel %vm379, %v1284, 0
    %v1334 = vsel %vm379, %v1285, 0
    %1336 = vmatprep.subr.mxu0 0.0
    %1337 = vmatpush1.msra.mxu0 %v1286
    %1338 = vmatprep.subr.mxu0 0.0
    %1339 = vmatpush1.msra.mxu0 %v1287
    %1340 = vmatprep.subr.mxu0 0.0
    %1341 = vmatpush1.msra.mxu0 %v1288
    %1342 = vmatprep.subr.mxu0 0.0
    %1343 = vmatpush1.msra.mxu0 %v1289
    %1344 = vmatprep.subr.mxu0 0.0
    %1345 = vmatpush1.msra.mxu0 0.0
    %1346 = vmatprep.subr.mxu0 0.0
    %1347 = vmatpush1.msra.mxu0 0.0
    %1348 = vmatprep.subr.mxu0 0.0
    %1349 = vmatpush1.msra.mxu0 0.0
    %1350 = vmatprep.subr.mxu0 0.0
    %1351 = vmatpush1.msra.mxu0 0.0
    %1352 = vmatprep.subr.mxu0 0.0
    %1353 = vmatpush1.msra.mxu0 0.0
    %1354 = vmatprep.subr.mxu0 0.0
    %1355 = vmatpush1.msra.mxu0 0.0
    %1356 = vmatprep.subr.mxu0 0.0
    %1357 = vmatpush1.msra.mxu0 0.0
    %1358 = vmatprep.subr.mxu0 0.0
    %1359 = vmatpush1.msra.mxu0 0.0
    %1360 = vmatprep.subr.mxu0 0.0
    %1361 = vmatpush1.msra.mxu0 0.0
    %1362 = vmatprep.subr.mxu0 0.0
    %1363 = vmatpush1.msra.mxu0 0.0
    %1364 = vmatprep.subr.mxu0 0.0
    %1365 = vmatpush1.msra.mxu0 0.0
    %1366 = vmatprep.subr.mxu0 0.0
    %1367 = vmatpush1.msra.mxu0 0.0
    %1368 = vmatprep.subr.mxu0 0.0
    %1369 = vmatpush1.msra.mxu0 0.0
    %1370 = vmatprep.subr.mxu0 0.0
    %1371 = vmatpush1.msra.mxu0 0.0
    %1372 = vmatprep.subr.mxu0 0.0
    %1373 = vmatpush1.msra.mxu0 0.0
    %1374 = vmatprep.subr.mxu0 0.0
    %1375 = vmatpush1.msra.mxu0 0.0
    %1376 = vmatprep.subr.mxu0 0.0
    %1377 = vmatpush1.msra.mxu0 0.0
    %1378 = vmatprep.subr.mxu0 0.0
    %1379 = vmatpush1.msra.mxu0 0.0
    %1380 = vmatprep.subr.mxu0 0.0
    %1381 = vmatpush1.msra.mxu0 0.0
    %1382 = vmatprep.subr.mxu0 0.0
    %1383 = vmatpush1.msra.mxu0 0.0
    %1384 = vmatprep.subr.mxu0 0.0
    %1385 = vmatpush1.msra.mxu0 0.0
    %1386 = vmatprep.subr.mxu0 0.0
    %1387 = vmatpush1.msra.mxu0 0.0
    %1388 = vmatprep.subr.mxu0 0.0
    %1389 = vmatpush1.msra.mxu0 0.0
    %1390 = vmatprep.subr.mxu0 0.0
    %1391 = vmatpush1.msra.mxu0 0.0
    %1392 = vmatprep.subr.mxu0 0.0
    %1393 = vmatpush1.msra.mxu0 0.0
    %1394 = vmatprep.subr.mxu0 0.0
    %1395 = vmatpush1.msra.mxu0 0.0
    %1396 = vmatprep.subr.mxu0 0.0
    %1397 = vmatpush1.msra.mxu0 0.0
    %1398 = vmatprep.subr.mxu0 0.0
    %1399 = vmatpush1.msra.mxu0 0.0
    %1400 = vmatprep.mubr.f32.mxu0 0.0
    %1401 = vmatmul.mubr.f32.gmra.mrb[0].mxu0 %v1298
    %v1402 = vpop.f32.mrb[0].mxu0
    %v1403 = vadd.f32 %v1295, %v1402
    %v1404 = vpop.f32.mrb[0].mxu0
    %1405 = vmatprep.mubr.f32.mxu0 0.0
    %1406 = vmatmul.mubr.f32.gmra.mrb[0].mxu0 %v1301
    %v1407 = vpop.f32.mrb[0].mxu0
    %v1408 = vadd.f32 %v1295, %v1407
    %v1409 = vpop.f32.mrb[0].mxu0
    %1410 = vmatprep.mubr.f32.mxu0 0.0
    %1411 = vmatmul.mubr.f32.gmra.mrb[0].mxu0 %v1304
    %v1412 = vpop.f32.mrb[0].mxu0
    %v1413 = vadd.f32 %v1295, %v1412
    %v1414 = vpop.f32.mrb[0].mxu0
    %1415 = vmatprep.mubr.f32.mxu0 0.0
    %1416 = vmatmul.mubr.f32.gmra.mrb[0].mxu0 %v1307
    %v1417 = vpop.f32.mrb[0].mxu0
    %v1418 = vadd.f32 %v1295, %v1417
    %v1419 = vpop.f32.mrb[0].mxu0
    %1420 = vmatprep.mubr.f32.mxu0 0.0
    %1421 = vmatmul.mubr.f32.gmra.mrb[0].mxu0 %v1310
    %v1422 = vpop.f32.mrb[0].mxu0
    %v1423 = vadd.f32 %v1295, %v1422
    %v1424 = vpop.f32.mrb[0].mxu0
    %1425 = vmatprep.mubr.f32.mxu0 0.0
    %1426 = vmatmul.mubr.f32.gmra.mrb[0].mxu0 %v1313
    %v1427 = vpop.f32.mrb[0].mxu0
    %v1428 = vadd.f32 %v1295, %v1427
    %v1429 = vpop.f32.mrb[0].mxu0
    %1430 = vmatprep.mubr.f32.mxu0 0.0
    %1431 = vmatmul.mubr.f32.gmra.mrb[0].mxu0 %v1316
    %v1432 = vpop.f32.mrb[0].mxu0
    %v1433 = vadd.f32 %v1295, %v1432
    %v1434 = vpop.f32.mrb[0].mxu0
    %1435 = vmatprep.mubr.f32.mxu0 0.0
    %1436 = vmatmul.mubr.f32.gmra.mrb[0].mxu0 %v1319
    %v1437 = vpop.f32.mrb[0].mxu0
    %v1438 = vadd.f32 %v1295, %v1437
    %v1439 = vpop.f32.mrb[0].mxu0
    %1440 = vmatprep.mubr.f32.mxu0 0.0
    %1441 = vmatmul.mubr.f32.gmra.mrb[0].mxu0 %v1322
    %v1442 = vpop.f32.mrb[0].mxu0
    %v1443 = vadd.f32 %v1295, %v1442
    %v1444 = vpop.f32.mrb[0].mxu0
    %1445 = vmatprep.mubr.f32.mxu0 0.0
    %1446 = vmatmul.mubr.f32.gmra.mrb[0].mxu0 %v1325
    %v1447 = vpop.f32.mrb[0].mxu0
    %v1448 = vadd.f32 %v1295, %v1447
    %v1449 = vpop.f32.mrb[0].mxu0
    %1450 = vmatprep.mubr.f32.mxu0 0.0
    %1451 = vmatmul.mubr.f32.gmra.mrb[0].mxu0 %v1328
    %v1452 = vpop.f32.mrb[0].mxu0
    %v1453 = vadd.f32 %v1295, %v1452
    %v1454 = vpop.f32.mrb[0].mxu0
    %1455 = vmatprep.mubr.f32.mxu0 0.0
    %1456 = vmatmul.mubr.f32.gmra.mrb[0].mxu0 %v1331
    %v1457 = vpop.f32.mrb[0].mxu0
    %v1458 = vadd.f32 %v1295, %v1457
    %v1459 = vpop.f32.mrb[0].mxu0
    %1460 = vmatprep.mubr.f32.mxu0 0.0
    %1461 = vmatmul.mubr.f32.gmra.mrb[0].mxu0 %v1334
    %v1462 = vpop.f32.mrb[0].mxu0
    %v1463 = vadd.f32 %v1295, %v1462
    %v1464 = vpop.f32.mrb[0].mxu0
    %1465 = vdwg.mxu0
    %v1466 = vmax.f32 %v1403, 0.0
    %v1467 = vmax.f32 %v1408, 0.0
    %v1468 = vmax.f32 %v1413, 0.0
    %v1469 = vmax.f32 %v1418, 0.0
    %v1470 = vmax.f32 %v1423, 0.0
    %v1471 = vmax.f32 %v1428, 0.0
    %v1472 = vmax.f32 %v1433, 0.0
    %v1473 = vmax.f32 %v1438, 0.0
    %v1474 = vmax.f32 %v1443, 0.0
    %v1475 = vmax.f32 %v1448, 0.0
    %v1476 = vmax.f32 %v1453, 0.0
    %v1477 = vmax.f32 %v1458, 0.0
    %v1478 = vmax.f32 %v1463, 0.0
    %v1479 = vld [vmem:[%s14] sm:$0xff]
    %v1480 = vld [vmem:[%s14 + $0x8] sm:$0xff]
    %v1481 = vld [vmem:[%s14 + $0x10] sm:$0xff]
    %v1482 = vld [vmem:[%s14 + $0x18] sm:$0xff]
    %v1483 = vld [vmem:[#allocation13] sm:$0x1]
    %v1485 = vlaneseq
    %v1486 = vshrl.u32 %v1485, 7
    %v1487 = vsub.s32 0, %v1486
    %v1488 = vrot.slane %v1483, %v1487
    %v1491 = vsel %vm379, %v1466, 0
    %v1494 = vsel %vm379, %v1467, 0
    %v1497 = vsel %vm379, %v1468, 0
    %v1500 = vsel %vm379, %v1469, 0
    %v1503 = vsel %vm379, %v1470, 0
    %v1506 = vsel %vm379, %v1471, 0
    %v1509 = vsel %vm379, %v1472, 0
    %v1512 = vsel %vm379, %v1473, 0
    %v1515 = vsel %vm379, %v1474, 0
    %v1518 = vsel %vm379, %v1475, 0
    %v1521 = vsel %vm379, %v1476, 0
    %v1524 = vsel %vm379, %v1477, 0
    %v1527 = vsel %vm379, %v1478, 0
    %1529 = vmatprep.subr.mxu0 0.0
    %1530 = vmatpush1.msra.mxu0 %v1479
    %1531 = vmatprep.subr.mxu0 0.0
    %1532 = vmatpush1.msra.mxu0 %v1480
    %1533 = vmatprep.subr.mxu0 0.0
    %1534 = vmatpush1.msra.mxu0 %v1481
    %1535 = vmatprep.subr.mxu0 0.0
    %1536 = vmatpush1.msra.mxu0 %v1482
    %1537 = vmatprep.subr.mxu0 0.0
    %1538 = vmatpush1.msra.mxu0 0.0
    %1539 = vmatprep.subr.mxu0 0.0
    %1540 = vmatpush1.msra.mxu0 0.0
    %1541 = vmatprep.subr.mxu0 0.0
    %1542 = vmatpush1.msra.mxu0 0.0
    %1543 = vmatprep.subr.mxu0 0.0
    %1544 = vmatpush1.msra.mxu0 0.0
    %1545 = vmatprep.subr.mxu0 0.0
    %1546 = vmatpush1.msra.mxu0 0.0
    %1547 = vmatprep.subr.mxu0 0.0
    %1548 = vmatpush1.msra.mxu0 0.0
    %1549 = vmatprep.subr.mxu0 0.0
    %1550 = vmatpush1.msra.mxu0 0.0
    %1551 = vmatprep.subr.mxu0 0.0
    %1552 = vmatpush1.msra.mxu0 0.0
    %1553 = vmatprep.subr.mxu0 0.0
    %1554 = vmatpush1.msra.mxu0 0.0
    %1555 = vmatprep.subr.mxu0 0.0
    %1556 = vmatpush1.msra.mxu0 0.0
    %1557 = vmatprep.subr.mxu0 0.0
    %1558 = vmatpush1.msra.mxu0 0.0
    %1559 = vmatprep.subr.mxu0 0.0
    %1560 = vmatpush1.msra.mxu0 0.0
    %1561 = vmatprep.subr.mxu0 0.0
    %1562 = vmatpush1.msra.mxu0 0.0
    %1563 = vmatprep.subr.mxu0 0.0
    %1564 = vmatpush1.msra.mxu0 0.0
    %1565 = vmatprep.subr.mxu0 0.0
    %1566 = vmatpush1.msra.mxu0 0.0
    %1567 = vmatprep.subr.mxu0 0.0
    %1568 = vmatpush1.msra.mxu0 0.0
    %1569 = vmatprep.subr.mxu0 0.0
    %1570 = vmatpush1.msra.mxu0 0.0
    %1571 = vmatprep.subr.mxu0 0.0
    %1572 = vmatpush1.msra.mxu0 0.0
    %1573 = vmatprep.subr.mxu0 0.0
    %1574 = vmatpush1.msra.mxu0 0.0
    %1575 = vmatprep.subr.mxu0 0.0
    %1576 = vmatpush1.msra.mxu0 0.0
    %1577 = vmatprep.subr.mxu0 0.0
    %1578 = vmatpush1.msra.mxu0 0.0
    %1579 = vmatprep.subr.mxu0 0.0
    %1580 = vmatpush1.msra.mxu0 0.0
    %1581 = vmatprep.subr.mxu0 0.0
    %1582 = vmatpush1.msra.mxu0 0.0
    %1583 = vmatprep.subr.mxu0 0.0
    %1584 = vmatpush1.msra.mxu0 0.0
    %1585 = vmatprep.subr.mxu0 0.0
    %1586 = vmatpush1.msra.mxu0 0.0
    %1587 = vmatprep.subr.mxu0 0.0
    %1588 = vmatpush1.msra.mxu0 0.0
    %1589 = vmatprep.subr.mxu0 0.0
    %1590 = vmatpush1.msra.mxu0 0.0
    %1591 = vmatprep.subr.mxu0 0.0
    %1592 = vmatpush1.msra.mxu0 0.0
    %1593 = vmatprep.mubr.f32.mxu0 0.0
    %1594 = vmatmul.mubr.f32.gmra.mrb[0].mxu0 %v1491
    %v1595 = vpop.f32.mrb[0].mxu0
    %v1596 = vadd.f32 %v1488, %v1595
    %v1597 = vpop.f32.mrb[0].mxu0
    %1598 = vmatprep.mubr.f32.mxu0 0.0
    %1599 = vmatmul.mubr.f32.gmra.mrb[0].mxu0 %v1494
    %v1600 = vpop.f32.mrb[0].mxu0
    %v1601 = vadd.f32 %v1488, %v1600
    %v1602 = vpop.f32.mrb[0].mxu0
    %1603 = vmatprep.mubr.f32.mxu0 0.0
    %1604 = vmatmul.mubr.f32.gmra.mrb[0].mxu0 %v1497
    %v1605 = vpop.f32.mrb[0].mxu0
    %v1606 = vadd.f32 %v1488, %v1605
    %v1607 = vpop.f32.mrb[0].mxu0
    %1608 = vmatprep.mubr.f32.mxu0 0.0
    %1609 = vmatmul.mubr.f32.gmra.mrb[0].mxu0 %v1500
    %v1610 = vpop.f32.mrb[0].mxu0
    %v1611 = vadd.f32 %v1488, %v1610
    %v1612 = vpop.f32.mrb[0].mxu0
    %1613 = vmatprep.mubr.f32.mxu0 0.0
    %1614 = vmatmul.mubr.f32.gmra.mrb[0].mxu0 %v1503
    %v1615 = vpop.f32.mrb[0].mxu0
    %v1616 = vadd.f32 %v1488, %v1615
    %v1617 = vpop.f32.mrb[0].mxu0
    %1618 = vmatprep.mubr.f32.mxu0 0.0
    %1619 = vmatmul.mubr.f32.gmra.mrb[0].mxu0 %v1506
    %v1620 = vpop.f32.mrb[0].mxu0
    %v1621 = vadd.f32 %v1488, %v1620
    %v1622 = vpop.f32.mrb[0].mxu0
    %1623 = vmatprep.mubr.f32.mxu0 0.0
    %1624 = vmatmul.mubr.f32.gmra.mrb[0].mxu0 %v1509
    %v1625 = vpop.f32.mrb[0].mxu0
    %v1626 = vadd.f32 %v1488, %v1625
    %v1627 = vpop.f32.mrb[0].mxu0
    %1628 = vmatprep.mubr.f32.mxu0 0.0
    %1629 = vmatmul.mubr.f32.gmra.mrb[0].mxu0 %v1512
    %v1630 = vpop.f32.mrb[0].mxu0
    %v1631 = vadd.f32 %v1488, %v1630
    %v1632 = vpop.f32.mrb[0].mxu0
    %1633 = vmatprep.mubr.f32.mxu0 0.0
    %1634 = vmatmul.mubr.f32.gmra.mrb[0].mxu0 %v1515
    %v1635 = vpop.f32.mrb[0].mxu0
    %v1636 = vadd.f32 %v1488, %v1635
    %v1637 = vpop.f32.mrb[0].mxu0
    %1638 = vmatprep.mubr.f32.mxu0 0.0
    %1639 = vmatmul.mubr.f32.gmra.mrb[0].mxu0 %v1518
    %v1640 = vpop.f32.mrb[0].mxu0
    %v1641 = vadd.f32 %v1488, %v1640
    %v1642 = vpop.f32.mrb[0].mxu0
    %1643 = vmatprep.mubr.f32.mxu0 0.0
    %1644 = vmatmul.mubr.f32.gmra.mrb[0].mxu0 %v1521
    %v1645 = vpop.f32.mrb[0].mxu0
    %v1646 = vadd.f32 %v1488, %v1645
    %v1647 = vpop.f32.mrb[0].mxu0
    %1648 = vmatprep.mubr.f32.mxu0 0.0
    %1649 = vmatmul.mubr.f32.gmra.mrb[0].mxu0 %v1524
    %v1650 = vpop.f32.mrb[0].mxu0
    %v1651 = vadd.f32 %v1488, %v1650
    %v1652 = vpop.f32.mrb[0].mxu0
    %1653 = vmatprep.mubr.f32.mxu0 0.0
    %1654 = vmatmul.mubr.f32.gmra.mrb[0].mxu0 %v1527
    %v1655 = vpop.f32.mrb[0].mxu0
    %v1656 = vadd.f32 %v1488, %v1655
    %v1657 = vpop.f32.mrb[0].mxu0
    %1658 = vdwg.mxu0
    %v1659 = vld [vmem:[%s16] sm:$0xff]
    %v1660 = vld [vmem:[%s16 + $0x8] sm:$0xff]
    %v1661 = vld [vmem:[%s16 + $0x10] sm:$0xff]
    %v1662 = vld [vmem:[%s16 + $0x18] sm:$0xff]
    %v1663 = vld [vmem:[%s17] sm:$0xff]
    %v1664 = vld [vmem:[%s17 + $0x8] sm:$0xff]
    %v1665 = vld [vmem:[%s18] sm:$0x1]
    %1666 = vmatprep.subr.mxu0 0.0
    %1667 = vmatpush1.msra.mxu0 %v1663
    %1668 = vmatprep.subr.mxu0 0.0
    %1669 = vmatpush1.msra.mxu0 %v1664
    %1670 = vmatprep.subr.mxu0 0.0
    %1671 = vmatpush1.msra.mxu0 0.0
    %1672 = vmatprep.subr.mxu0 0.0
    %1673 = vmatpush1.msra.mxu0 0.0
    %1674 = vmatprep.subr.mxu0 0.0
    %1675 = vmatpush1.msra.mxu0 0.0
    %1676 = vmatprep.subr.mxu0 0.0
    %1677 = vmatpush1.msra.mxu0 0.0
    %1678 = vmatprep.subr.mxu0 0.0
    %1679 = vmatpush1.msra.mxu0 0.0
    %1680 = vmatprep.subr.mxu0 0.0
    %1681 = vmatpush1.msra.mxu0 0.0
    %1682 = vmatprep.subr.mxu0 0.0
    %1683 = vmatpush1.msra.mxu0 0.0
    %1684 = vmatprep.subr.mxu0 0.0
    %1685 = vmatpush1.msra.mxu0 0.0
    %1686 = vmatprep.subr.mxu0 0.0
    %1687 = vmatpush1.msra.mxu0 0.0
    %1688 = vmatprep.subr.mxu0 0.0
    %1689 = vmatpush1.msra.mxu0 0.0
    %1690 = vmatprep.subr.mxu0 0.0
    %1691 = vmatpush1.msra.mxu0 0.0
    %1692 = vmatprep.subr.mxu0 0.0
    %1693 = vmatpush1.msra.mxu0 0.0
    %1694 = vmatprep.subr.mxu0 0.0
    %1695 = vmatpush1.msra.mxu0 0.0
    %1696 = vmatprep.subr.mxu0 0.0
    %1697 = vmatpush1.msra.mxu0 0.0
    %1698 = vmatprep.subr.mxu0 0.0
    %1699 = vmatpush1.msra.mxu0 0.0
    %1700 = vmatprep.subr.mxu0 0.0
    %1701 = vmatpush1.msra.mxu0 0.0
    %1702 = vmatprep.subr.mxu0 0.0
    %1703 = vmatpush1.msra.mxu0 0.0
    %1704 = vmatprep.subr.mxu0 0.0
    %1705 = vmatpush1.msra.mxu0 0.0
    %1706 = vmatprep.subr.mxu0 0.0
    %1707 = vmatpush1.msra.mxu0 0.0
    %1708 = vmatprep.subr.mxu0 0.0
    %1709 = vmatpush1.msra.mxu0 0.0
    %1710 = vmatprep.subr.mxu0 0.0
    %1711 = vmatpush1.msra.mxu0 0.0
    %1712 = vmatprep.subr.mxu0 0.0
    %1713 = vmatpush1.msra.mxu0 0.0
    %1714 = vmatprep.subr.mxu0 0.0
    %1715 = vmatpush1.msra.mxu0 0.0
    %1716 = vmatprep.subr.mxu0 0.0
    %1717 = vmatpush1.msra.mxu0 0.0
    %1718 = vmatprep.subr.mxu0 0.0
    %1719 = vmatpush1.msra.mxu0 0.0
    %1720 = vmatprep.subr.mxu0 0.0
    %1721 = vmatpush1.msra.mxu0 0.0
    %1722 = vmatprep.subr.mxu0 0.0
    %1723 = vmatpush1.msra.mxu0 0.0
    %1724 = vmatprep.subr.mxu0 0.0
    %1725 = vmatpush1.msra.mxu0 0.0
    %1726 = vmatprep.subr.mxu0 0.0
    %1727 = vmatpush1.msra.mxu0 0.0
    %1728 = vmatprep.subr.mxu0 0.0
    %1729 = vmatpush1.msra.mxu0 0.0
    %1730 = vmatprep.mubr.f32.mxu0 0.0
    %1731 = vmatmul.mubr.f32.gmra.mrb[0].mxu0 %v187
    %v1732 = vpop.f32.mrb[0].mxu0
    %v1733 = vadd.f32 0.0, %v1732
    %v1734 = vpop.f32.mrb[0].mxu0
    %1735 = vmatprep.mubr.f32.mxu0 0.0
    %1736 = vmatmul.mubr.f32.gmra.mrb[0].mxu0 %v190
    %v1737 = vpop.f32.mrb[0].mxu0
    %v1738 = vadd.f32 0.0, %v1737
    %v1739 = vpop.f32.mrb[0].mxu0
    %1740 = vmatprep.mubr.f32.mxu0 0.0
    %1741 = vmatmul.mubr.f32.gmra.mrb[0].mxu0 %v193
    %v1742 = vpop.f32.mrb[0].mxu0
    %v1743 = vadd.f32 0.0, %v1742
    %v1744 = vpop.f32.mrb[0].mxu0
    %1745 = vmatprep.mubr.f32.mxu0 0.0
    %1746 = vmatmul.mubr.f32.gmra.mrb[0].mxu0 %v196
    %v1747 = vpop.f32.mrb[0].mxu0
    %v1748 = vadd.f32 0.0, %v1747
    %v1749 = vpop.f32.mrb[0].mxu0
    %1750 = vmatprep.mubr.f32.mxu0 0.0
    %1751 = vmatmul.mubr.f32.gmra.mrb[0].mxu0 %v199
    %v1752 = vpop.f32.mrb[0].mxu0
    %v1753 = vadd.f32 0.0, %v1752
    %v1754 = vpop.f32.mrb[0].mxu0
    %1755 = vmatprep.mubr.f32.mxu0 0.0
    %1756 = vmatmul.mubr.f32.gmra.mrb[0].mxu0 %v202
    %v1757 = vpop.f32.mrb[0].mxu0
    %v1758 = vadd.f32 0.0, %v1757
    %v1759 = vpop.f32.mrb[0].mxu0
    %1760 = vmatprep.mubr.f32.mxu0 0.0
    %1761 = vmatmul.mubr.f32.gmra.mrb[0].mxu0 %v205
    %v1762 = vpop.f32.mrb[0].mxu0
    %v1763 = vadd.f32 0.0, %v1762
    %v1764 = vpop.f32.mrb[0].mxu0
    %1765 = vmatprep.mubr.f32.mxu0 0.0
    %1766 = vmatmul.mubr.f32.gmra.mrb[0].mxu0 %v208
    %v1767 = vpop.f32.mrb[0].mxu0
    %v1768 = vadd.f32 0.0, %v1767
    %v1769 = vpop.f32.mrb[0].mxu0
    %1770 = vmatprep.mubr.f32.mxu0 0.0
    %1771 = vmatmul.mubr.f32.gmra.mrb[0].mxu0 %v211
    %v1772 = vpop.f32.mrb[0].mxu0
    %v1773 = vadd.f32 0.0, %v1772
    %v1774 = vpop.f32.mrb[0].mxu0
    %1775 = vmatprep.mubr.f32.mxu0 0.0
    %1776 = vmatmul.mubr.f32.gmra.mrb[0].mxu0 %v214
    %v1777 = vpop.f32.mrb[0].mxu0
    %v1778 = vadd.f32 0.0, %v1777
    %v1779 = vpop.f32.mrb[0].mxu0
    %1780 = vmatprep.mubr.f32.mxu0 0.0
    %1781 = vmatmul.mubr.f32.gmra.mrb[0].mxu0 %v217
    %v1782 = vpop.f32.mrb[0].mxu0
    %v1783 = vadd.f32 0.0, %v1782
    %v1784 = vpop.f32.mrb[0].mxu0
    %1785 = vmatprep.mubr.f32.mxu0 0.0
    %1786 = vmatmul.mubr.f32.gmra.mrb[0].mxu0 %v220
    %v1787 = vpop.f32.mrb[0].mxu0
    %v1788 = vadd.f32 0.0, %v1787
    %v1789 = vpop.f32.mrb[0].mxu0
    %1790 = vmatprep.mubr.f32.mxu0 0.0
    %1791 = vmatmul.mubr.f32.gmra.mrb[0].mxu0 %v223
    %v1792 = vpop.f32.mrb[0].mxu0
    %v1793 = vadd.f32 0.0, %v1792
    %v1794 = vpop.f32.mrb[0].mxu0
    %1795 = vdwg.mxu0
    %v1797 = vsel %vm379, %v1596, 0
    %v1800 = vsel %vm379, %v1601, 0
    %v1803 = vsel %vm379, %v1606, 0
    %v1806 = vsel %vm379, %v1611, 0
    %v1809 = vsel %vm379, %v1616, 0
    %v1812 = vsel %vm379, %v1621, 0
    %v1815 = vsel %vm379, %v1626, 0
    %v1818 = vsel %vm379, %v1631, 0
    %v1821 = vsel %vm379, %v1636, 0
    %v1824 = vsel %vm379, %v1641, 0
    %v1827 = vsel %vm379, %v1646, 0
    %v1830 = vsel %vm379, %v1651, 0
    %v1833 = vsel %vm379, %v1656, 0
    %1835 = vmatprep.subr.mxu0 0.0
    %1836 = vmatpush1.msra.mxu0 %v1659
    %1837 = vmatprep.subr.mxu0 0.0
    %1838 = vmatpush1.msra.mxu0 %v1660
    %1839 = vmatprep.subr.mxu0 0.0
    %1840 = vmatpush1.msra.mxu0 %v1661
    %1841 = vmatprep.subr.mxu0 0.0
    %1842 = vmatpush1.msra.mxu0 %v1662
    %1843 = vmatprep.subr.mxu0 0.0
    %1844 = vmatpush1.msra.mxu0 0.0
    %1845 = vmatprep.subr.mxu0 0.0
    %1846 = vmatpush1.msra.mxu0 0.0
    %1847 = vmatprep.subr.mxu0 0.0
    %1848 = vmatpush1.msra.mxu0 0.0
    %1849 = vmatprep.subr.mxu0 0.0
    %1850 = vmatpush1.msra.mxu0 0.0
    %1851 = vmatprep.subr.mxu0 0.0
    %1852 = vmatpush1.msra.mxu0 0.0
    %1853 = vmatprep.subr.mxu0 0.0
    %1854 = vmatpush1.msra.mxu0 0.0
    %1855 = vmatprep.subr.mxu0 0.0
    %1856 = vmatpush1.msra.mxu0 0.0
    %1857 = vmatprep.subr.mxu0 0.0
    %1858 = vmatpush1.msra.mxu0 0.0
    %1859 = vmatprep.subr.mxu0 0.0
    %1860 = vmatpush1.msra.mxu0 0.0
    %1861 = vmatprep.subr.mxu0 0.0
    %1862 = vmatpush1.msra.mxu0 0.0
    %1863 = vmatprep.subr.mxu0 0.0
    %1864 = vmatpush1.msra.mxu0 0.0
    %1865 = vmatprep.subr.mxu0 0.0
    %1866 = vmatpush1.msra.mxu0 0.0
    %1867 = vmatprep.subr.mxu0 0.0
    %1868 = vmatpush1.msra.mxu0 0.0
    %1869 = vmatprep.subr.mxu0 0.0
    %1870 = vmatpush1.msra.mxu0 0.0
    %1871 = vmatprep.subr.mxu0 0.0
    %1872 = vmatpush1.msra.mxu0 0.0
    %1873 = vmatprep.subr.mxu0 0.0
    %1874 = vmatpush1.msra.mxu0 0.0
    %1875 = vmatprep.subr.mxu0 0.0
    %1876 = vmatpush1.msra.mxu0 0.0
    %1877 = vmatprep.subr.mxu0 0.0
    %1878 = vmatpush1.msra.mxu0 0.0
    %1879 = vmatprep.subr.mxu0 0.0
    %1880 = vmatpush1.msra.mxu0 0.0
    %1881 = vmatprep.subr.mxu0 0.0
    %1882 = vmatpush1.msra.mxu0 0.0
    %1883 = vmatprep.subr.mxu0 0.0
    %1884 = vmatpush1.msra.mxu0 0.0
    %1885 = vmatprep.subr.mxu0 0.0
    %1886 = vmatpush1.msra.mxu0 0.0
    %1887 = vmatprep.subr.mxu0 0.0
    %1888 = vmatpush1.msra.mxu0 0.0
    %1889 = vmatprep.subr.mxu0 0.0
    %1890 = vmatpush1.msra.mxu0 0.0
    %1891 = vmatprep.subr.mxu0 0.0
    %1892 = vmatpush1.msra.mxu0 0.0
    %1893 = vmatprep.subr.mxu0 0.0
    %1894 = vmatpush1.msra.mxu0 0.0
    %1895 = vmatprep.subr.mxu0 0.0
    %1896 = vmatpush1.msra.mxu0 0.0
    %1897 = vmatprep.subr.mxu0 0.0
    %1898 = vmatpush1.msra.mxu0 0.0
    %1899 = vmatprep.mubr.f32.mxu0 0.0
    %1900 = vmatmul.mubr.f32.gmra.mrb[0].mxu0 %v1797
    %v1901 = vpop.f32.mrb[0].mxu0
    %v1902 = vadd.f32 %v1733, %v1901
    %v1903 = vpop.f32.mrb[0].mxu0
    %1904 = vmatprep.mubr.f32.mxu0 0.0
    %1905 = vmatmul.mubr.f32.gmra.mrb[0].mxu0 %v1800
    %v1906 = vpop.f32.mrb[0].mxu0
    %v1907 = vadd.f32 %v1738, %v1906
    %v1908 = vpop.f32.mrb[0].mxu0
    %1909 = vmatprep.mubr.f32.mxu0 0.0
    %1910 = vmatmul.mubr.f32.gmra.mrb[0].mxu0 %v1803
    %v1911 = vpop.f32.mrb[0].mxu0
    %v1912 = vadd.f32 %v1743, %v1911
    %v1913 = vpop.f32.mrb[0].mxu0
    %1914 = vmatprep.mubr.f32.mxu0 0.0
    %1915 = vmatmul.mubr.f32.gmra.mrb[0].mxu0 %v1806
    %v1916 = vpop.f32.mrb[0].mxu0
    %v1917 = vadd.f32 %v1748, %v1916
    %v1918 = vpop.f32.mrb[0].mxu0
    %1919 = vmatprep.mubr.f32.mxu0 0.0
    %1920 = vmatmul.mubr.f32.gmra.mrb[0].mxu0 %v1809
    %v1921 = vpop.f32.mrb[0].mxu0
    %v1922 = vadd.f32 %v1753, %v1921
    %v1923 = vpop.f32.mrb[0].mxu0
    %1924 = vmatprep.mubr.f32.mxu0 0.0
    %1925 = vmatmul.mubr.f32.gmra.mrb[0].mxu0 %v1812
    %v1926 = vpop.f32.mrb[0].mxu0
    %v1927 = vadd.f32 %v1758, %v1926
    %v1928 = vpop.f32.mrb[0].mxu0
    %1929 = vmatprep.mubr.f32.mxu0 0.0
    %1930 = vmatmul.mubr.f32.gmra.mrb[0].mxu0 %v1815
    %v1931 = vpop.f32.mrb[0].mxu0
    %v1932 = vadd.f32 %v1763, %v1931
    %v1933 = vpop.f32.mrb[0].mxu0
    %1934 = vmatprep.mubr.f32.mxu0 0.0
    %1935 = vmatmul.mubr.f32.gmra.mrb[0].mxu0 %v1818
    %v1936 = vpop.f32.mrb[0].mxu0
    %v1937 = vadd.f32 %v1768, %v1936
    %v1938 = vpop.f32.mrb[0].mxu0
    %1939 = vmatprep.mubr.f32.mxu0 0.0
    %1940 = vmatmul.mubr.f32.gmra.mrb[0].mxu0 %v1821
    %v1941 = vpop.f32.mrb[0].mxu0
    %v1942 = vadd.f32 %v1773, %v1941
    %v1943 = vpop.f32.mrb[0].mxu0
    %1944 = vmatprep.mubr.f32.mxu0 0.0
    %1945 = vmatmul.mubr.f32.gmra.mrb[0].mxu0 %v1824
    %v1946 = vpop.f32.mrb[0].mxu0
    %v1947 = vadd.f32 %v1778, %v1946
    %v1948 = vpop.f32.mrb[0].mxu0
    %1949 = vmatprep.mubr.f32.mxu0 0.0
    %1950 = vmatmul.mubr.f32.gmra.mrb[0].mxu0 %v1827
    %v1951 = vpop.f32.mrb[0].mxu0
    %v1952 = vadd.f32 %v1783, %v1951
    %v1953 = vpop.f32.mrb[0].mxu0
    %1954 = vmatprep.mubr.f32.mxu0 0.0
    %1955 = vmatmul.mubr.f32.gmra.mrb[0].mxu0 %v1830
    %v1956 = vpop.f32.mrb[0].mxu0
    %v1957 = vadd.f32 %v1788, %v1956
    %v1958 = vpop.f32.mrb[0].mxu0
    %1959 = vmatprep.mubr.f32.mxu0 0.0
    %1960 = vmatmul.mubr.f32.gmra.mrb[0].mxu0 %v1833
    %v1961 = vpop.f32.mrb[0].mxu0
    %v1962 = vadd.f32 %v1793, %v1961
    %v1963 = vpop.f32.mrb[0].mxu0
    %1964 = vdwg.mxu0
    %v1966 = vlaneseq
    %v1967 = vshrl.u32 %v1966, 7
    %v1968 = vsub.s32 0, %v1967
    %v1969 = vrot.slane %v1665, %v1968
    %v1971 = vadd.f32 %v1902, %v1969
    %v1972 = vadd.f32 %v1907, %v1969
    %v1973 = vadd.f32 %v1912, %v1969
    %v1974 = vadd.f32 %v1917, %v1969
    %v1975 = vadd.f32 %v1922, %v1969
    %v1976 = vadd.f32 %v1927, %v1969
    %v1977 = vadd.f32 %v1932, %v1969
    %v1978 = vadd.f32 %v1937, %v1969
    %v1979 = vadd.f32 %v1942, %v1969
    %v1980 = vadd.f32 %v1947, %v1969
    %v1981 = vadd.f32 %v1952, %v1969
    %v1982 = vadd.f32 %v1957, %v1969
    %v1983 = vadd.f32 %v1962, %v1969
    %v1984 = vmax.f32 %v1971, 0.0
    %v1985 = vmax.f32 %v1972, 0.0
    %v1986 = vmax.f32 %v1973, 0.0
    %v1987 = vmax.f32 %v1974, 0.0
    %v1988 = vmax.f32 %v1975, 0.0
    %v1989 = vmax.f32 %v1976, 0.0
    %v1990 = vmax.f32 %v1977, 0.0
    %v1991 = vmax.f32 %v1978, 0.0
    %v1992 = vmax.f32 %v1979, 0.0
    %v1993 = vmax.f32 %v1980, 0.0
    %v1994 = vmax.f32 %v1981, 0.0
    %v1995 = vmax.f32 %v1982, 0.0
    %v1996 = vmax.f32 %v1983, 0.0
    %v1997 = vld [vmem:[%s19] sm:$0xff]
    %v1998 = vld [vmem:[%s19 + $0x8] sm:$0xff]
    %v1999 = vld [vmem:[%s20] sm:$0x1]
    %v2001 = vlaneseq
    %v2002 = vshrl.u32 %v2001, 7
    %v2003 = vsub.s32 0, %v2002
    %v2004 = vrot.slane %v1999, %v2003
    %v2007 = vsel %vm185, %v1984, 0
    %v2010 = vsel %vm185, %v1985, 0
    %v2013 = vsel %vm185, %v1986, 0
    %v2016 = vsel %vm185, %v1987, 0
    %v2019 = vsel %vm185, %v1988, 0
    %v2022 = vsel %vm185, %v1989, 0
    %v2025 = vsel %vm185, %v1990, 0
    %v2028 = vsel %vm185, %v1991, 0
    %v2031 = vsel %vm185, %v1992, 0
    %v2034 = vsel %vm185, %v1993, 0
    %v2037 = vsel %vm185, %v1994, 0
    %v2040 = vsel %vm185, %v1995, 0
    %v2043 = vsel %vm185, %v1996, 0
    %2045 = vmatprep.subr.mxu0 0.0
    %2046 = vmatpush1.msra.mxu0 %v1997
    %2047 = vmatprep.subr.mxu0 0.0
    %2048 = vmatpush1.msra.mxu0 %v1998
    %2049 = vmatprep.subr.mxu0 0.0
    %2050 = vmatpush1.msra.mxu0 0.0
    %2051 = vmatprep.subr.mxu0 0.0
    %2052 = vmatpush1.msra.mxu0 0.0
    %2053 = vmatprep.subr.mxu0 0.0
    %2054 = vmatpush1.msra.mxu0 0.0
    %2055 = vmatprep.subr.mxu0 0.0
    %2056 = vmatpush1.msra.mxu0 0.0
    %2057 = vmatprep.subr.mxu0 0.0
    %2058 = vmatpush1.msra.mxu0 0.0
    %2059 = vmatprep.subr.mxu0 0.0
    %2060 = vmatpush1.msra.mxu0 0.0
    %2061 = vmatprep.subr.mxu0 0.0
    %2062 = vmatpush1.msra.mxu0 0.0
    %2063 = vmatprep.subr.mxu0 0.0
    %2064 = vmatpush1.msra.mxu0 0.0
    %2065 = vmatprep.subr.mxu0 0.0
    %2066 = vmatpush1.msra.mxu0 0.0
    %2067 = vmatprep.subr.mxu0 0.0
    %2068 = vmatpush1.msra.mxu0 0.0
    %2069 = vmatprep.subr.mxu0 0.0
    %2070 = vmatpush1.msra.mxu0 0.0
    %2071 = vmatprep.subr.mxu0 0.0
    %2072 = vmatpush1.msra.mxu0 0.0
    %2073 = vmatprep.subr.mxu0 0.0
    %2074 = vmatpush1.msra.mxu0 0.0
    %2075 = vmatprep.subr.mxu0 0.0
    %2076 = vmatpush1.msra.mxu0 0.0
    %2077 = vmatprep.subr.mxu0 0.0
    %2078 = vmatpush1.msra.mxu0 0.0
    %2079 = vmatprep.subr.mxu0 0.0
    %2080 = vmatpush1.msra.mxu0 0.0
    %2081 = vmatprep.subr.mxu0 0.0
    %2082 = vmatpush1.msra.mxu0 0.0
    %2083 = vmatprep.subr.mxu0 0.0
    %2084 = vmatpush1.msra.mxu0 0.0
    %2085 = vmatprep.subr.mxu0 0.0
    %2086 = vmatpush1.msra.mxu0 0.0
    %2087 = vmatprep.subr.mxu0 0.0
    %2088 = vmatpush1.msra.mxu0 0.0
    %2089 = vmatprep.subr.mxu0 0.0
    %2090 = vmatpush1.msra.mxu0 0.0
    %2091 = vmatprep.subr.mxu0 0.0
    %2092 = vmatpush1.msra.mxu0 0.0
    %2093 = vmatprep.subr.mxu0 0.0
    %2094 = vmatpush1.msra.mxu0 0.0
    %2095 = vmatprep.subr.mxu0 0.0
    %2096 = vmatpush1.msra.mxu0 0.0
    %2097 = vmatprep.subr.mxu0 0.0
    %2098 = vmatpush1.msra.mxu0 0.0
    %2099 = vmatprep.subr.mxu0 0.0
    %2100 = vmatpush1.msra.mxu0 0.0
    %2101 = vmatprep.subr.mxu0 0.0
    %2102 = vmatpush1.msra.mxu0 0.0
    %2103 = vmatprep.subr.mxu0 0.0
    %2104 = vmatpush1.msra.mxu0 0.0
    %2105 = vmatprep.subr.mxu0 0.0
    %2106 = vmatpush1.msra.mxu0 0.0
    %2107 = vmatprep.subr.mxu0 0.0
    %2108 = vmatpush1.msra.mxu0 0.0
    %2109 = vmatprep.mubr.f32.mxu0 0.0
    %2110 = vmatmul.mubr.f32.gmra.mrb[0].mxu0 %v2007
    %v2111 = vpop.f32.mrb[0].mxu0
    %v2112 = vadd.f32 %v2004, %v2111
    %v2113 = vpop.f32.mrb[0].mxu0
    %2114 = vmatprep.mubr.f32.mxu0 0.0
    %2115 = vmatmul.mubr.f32.gmra.mrb[0].mxu0 %v2010
    %v2116 = vpop.f32.mrb[0].mxu0
    %v2117 = vadd.f32 %v2004, %v2116
    %v2118 = vpop.f32.mrb[0].mxu0
    %2119 = vmatprep.mubr.f32.mxu0 0.0
    %2120 = vmatmul.mubr.f32.gmra.mrb[0].mxu0 %v2013
    %v2121 = vpop.f32.mrb[0].mxu0
    %v2122 = vadd.f32 %v2004, %v2121
    %v2123 = vpop.f32.mrb[0].mxu0
    %2124 = vmatprep.mubr.f32.mxu0 0.0
    %2125 = vmatmul.mubr.f32.gmra.mrb[0].mxu0 %v2016
    %v2126 = vpop.f32.mrb[0].mxu0
    %v2127 = vadd.f32 %v2004, %v2126
    %v2128 = vpop.f32.mrb[0].mxu0
    %2129 = vmatprep.mubr.f32.mxu0 0.0
    %2130 = vmatmul.mubr.f32.gmra.mrb[0].mxu0 %v2019
    %v2131 = vpop.f32.mrb[0].mxu0
    %v2132 = vadd.f32 %v2004, %v2131
    %v2133 = vpop.f32.mrb[0].mxu0
    %2134 = vmatprep.mubr.f32.mxu0 0.0
    %2135 = vmatmul.mubr.f32.gmra.mrb[0].mxu0 %v2022
    %v2136 = vpop.f32.mrb[0].mxu0
    %v2137 = vadd.f32 %v2004, %v2136
    %v2138 = vpop.f32.mrb[0].mxu0
    %2139 = vmatprep.mubr.f32.mxu0 0.0
    %2140 = vmatmul.mubr.f32.gmra.mrb[0].mxu0 %v2025
    %v2141 = vpop.f32.mrb[0].mxu0
    %v2142 = vadd.f32 %v2004, %v2141
    %v2143 = vpop.f32.mrb[0].mxu0
    %2144 = vmatprep.mubr.f32.mxu0 0.0
    %2145 = vmatmul.mubr.f32.gmra.mrb[0].mxu0 %v2028
    %v2146 = vpop.f32.mrb[0].mxu0
    %v2147 = vadd.f32 %v2004, %v2146
    %v2148 = vpop.f32.mrb[0].mxu0
    %2149 = vmatprep.mubr.f32.mxu0 0.0
    %2150 = vmatmul.mubr.f32.gmra.mrb[0].mxu0 %v2031
    %v2151 = vpop.f32.mrb[0].mxu0
    %v2152 = vadd.f32 %v2004, %v2151
    %v2153 = vpop.f32.mrb[0].mxu0
    %2154 = vmatprep.mubr.f32.mxu0 0.0
    %2155 = vmatmul.mubr.f32.gmra.mrb[0].mxu0 %v2034
    %v2156 = vpop.f32.mrb[0].mxu0
    %v2157 = vadd.f32 %v2004, %v2156
    %v2158 = vpop.f32.mrb[0].mxu0
    %2159 = vmatprep.mubr.f32.mxu0 0.0
    %2160 = vmatmul.mubr.f32.gmra.mrb[0].mxu0 %v2037
    %v2161 = vpop.f32.mrb[0].mxu0
    %v2162 = vadd.f32 %v2004, %v2161
    %v2163 = vpop.f32.mrb[0].mxu0
    %2164 = vmatprep.mubr.f32.mxu0 0.0
    %2165 = vmatmul.mubr.f32.gmra.mrb[0].mxu0 %v2040
    %v2166 = vpop.f32.mrb[0].mxu0
    %v2167 = vadd.f32 %v2004, %v2166
    %v2168 = vpop.f32.mrb[0].mxu0
    %2169 = vmatprep.mubr.f32.mxu0 0.0
    %2170 = vmatmul.mubr.f32.gmra.mrb[0].mxu0 %v2043
    %v2171 = vpop.f32.mrb[0].mxu0
    %v2172 = vadd.f32 %v2004, %v2171
    %v2173 = vpop.f32.mrb[0].mxu0
    %2174 = vdwg.mxu0
    %v2175 = vxor.u32 %v2112, 2147483648
    %v2176 = vxor.u32 %v2117, 2147483648
    %v2177 = vxor.u32 %v2122, 2147483648
    %v2178 = vxor.u32 %v2127, 2147483648
    %v2179 = vxor.u32 %v2132, 2147483648
    %v2180 = vxor.u32 %v2137, 2147483648
    %v2181 = vxor.u32 %v2142, 2147483648
    %v2182 = vxor.u32 %v2147, 2147483648
    %v2183 = vxor.u32 %v2152, 2147483648
    %v2184 = vxor.u32 %v2157, 2147483648
    %v2185 = vxor.u32 %v2162, 2147483648
    %v2186 = vxor.u32 %v2167, 2147483648
    %v2187 = vxor.u32 %v2172, 2147483648
    %v2188 = vmul.f32 %v2175, 1.442695
    %v2189 = vpow.pop %v2188
    %v2190 = vmul.f32 %v2176, 1.442695
    %v2191 = vpow.pop %v2190
    %v2192 = vmul.f32 %v2177, 1.442695
    %v2193 = vpow.pop %v2192
    %v2194 = vmul.f32 %v2178, 1.442695
    %v2195 = vpow.pop %v2194
    %v2196 = vmul.f32 %v2179, 1.442695
    %v2197 = vpow.pop %v2196
    %v2198 = vmul.f32 %v2180, 1.442695
    %v2199 = vpow.pop %v2198
    %v2200 = vmul.f32 %v2181, 1.442695
    %v2201 = vpow.pop %v2200
    %v2202 = vmul.f32 %v2182, 1.442695
    %v2203 = vpow.pop %v2202
    %v2204 = vmul.f32 %v2183, 1.442695
    %v2205 = vpow.pop %v2204
    %v2206 = vmul.f32 %v2184, 1.442695
    %v2207 = vpow.pop %v2206
    %v2208 = vmul.f32 %v2185, 1.442695
    %v2209 = vpow.pop %v2208
    %v2210 = vmul.f32 %v2186, 1.442695
    %v2211 = vpow.pop %v2210
    %v2212 = vmul.f32 %v2187, 1.442695
    %v2213 = vpow.pop %v2212
    %v2214 = vadd.f32 %v2189, 1.0
    %v2215 = vadd.f32 %v2191, 1.0
    %v2216 = vadd.f32 %v2193, 1.0
    %v2217 = vadd.f32 %v2195, 1.0
    %v2218 = vadd.f32 %v2197, 1.0
    %v2219 = vadd.f32 %v2199, 1.0
    %v2220 = vadd.f32 %v2201, 1.0
    %v2221 = vadd.f32 %v2203, 1.0
    %v2222 = vadd.f32 %v2205, 1.0
    %v2223 = vadd.f32 %v2207, 1.0
    %v2224 = vadd.f32 %v2209, 1.0
    %v2225 = vadd.f32 %v2211, 1.0
    %v2226 = vadd.f32 %v2213, 1.0
    %v2227 = vrcp.pop %v2214
    %v2228 = vmul.f32 1.0, %v2227
    %v2229 = vrcp.pop %v2215
    %v2230 = vmul.f32 1.0, %v2229
    %v2231 = vrcp.pop %v2216
    %v2232 = vmul.f32 1.0, %v2231
    %v2233 = vrcp.pop %v2217
    %v2234 = vmul.f32 1.0, %v2233
    %v2235 = vrcp.pop %v2218
    %v2236 = vmul.f32 1.0, %v2235
    %v2237 = vrcp.pop %v2219
    %v2238 = vmul.f32 1.0, %v2237
    %v2239 = vrcp.pop %v2220
    %v2240 = vmul.f32 1.0, %v2239
    %v2241 = vrcp.pop %v2221
    %v2242 = vmul.f32 1.0, %v2241
    %v2243 = vrcp.pop %v2222
    %v2244 = vmul.f32 1.0, %v2243
    %v2245 = vrcp.pop %v2223
    %v2246 = vmul.f32 1.0, %v2245
    %v2247 = vrcp.pop %v2224
    %v2248 = vmul.f32 1.0, %v2247
    %v2249 = vrcp.pop %v2225
    %v2250 = vmul.f32 1.0, %v2249
    %v2251 = vrcp.pop %v2226
    %v2252 = vmul.f32 1.0, %v2251
    %v2253 = vlaneseq
    %v2254 = vand.u32 %v2253, 127
    %vm2255 = vcmp.eq.s32.totalorder %v2254, 3
    %2256 = vset.pattern.permute.xlu0 32
    %2257 = vperm.xlu0 %2256, %v1596
    %v2258 = vpop.permute.xlu0 %2257
    %2260 = vset.pattern.permute.xlu0 32
    %2261 = vperm.xlu0 %2260, %v1601
    %v2262 = vpop.permute.xlu0 %2261
    %2264 = vset.pattern.permute.xlu0 32
    %2265 = vperm.xlu0 %2264, %v1606
    %v2266 = vpop.permute.xlu0 %2265
    %2268 = vset.pattern.permute.xlu0 32
    %2269 = vperm.xlu0 %2268, %v1611
    %v2270 = vpop.permute.xlu0 %2269
    %2272 = vset.pattern.permute.xlu0 32
    %2273 = vperm.xlu0 %2272, %v1616
    %v2274 = vpop.permute.xlu0 %2273
    %2276 = vset.pattern.permute.xlu0 32
    %2277 = vperm.xlu0 %2276, %v1621
    %v2278 = vpop.permute.xlu0 %2277
    %2280 = vset.pattern.permute.xlu0 32
    %2281 = vperm.xlu0 %2280, %v1626
    %v2282 = vpop.permute.xlu0 %2281
    %2284 = vset.pattern.permute.xlu0 32
    %2285 = vperm.xlu0 %2284, %v1631
    %v2286 = vpop.permute.xlu0 %2285
    %2288 = vset.pattern.permute.xlu0 32
    %2289 = vperm.xlu0 %2288, %v1636
    %v2290 = vpop.permute.xlu0 %2289
    %2292 = vset.pattern.permute.xlu0 32
    %2293 = vperm.xlu0 %2292, %v1641
    %v2294 = vpop.permute.xlu0 %2293
    %2296 = vset.pattern.permute.xlu0 32
    %2297 = vperm.xlu0 %2296, %v1646
    %v2298 = vpop.permute.xlu0 %2297
    %2300 = vset.pattern.permute.xlu0 32
    %2301 = vperm.xlu0 %2300, %v1651
    %v2302 = vpop.permute.xlu0 %2301
    %2304 = vset.pattern.permute.xlu0 32
    %2305 = vperm.xlu0 %2304, %v1656
    %v2306 = vpop.permute.xlu0 %2305
    %v2308 = vsel %vm2255, %v2258, %v2228
    %v2309 = vsel %vm2255, %v2262, %v2230
    %v2310 = vsel %vm2255, %v2266, %v2232
    %v2311 = vsel %vm2255, %v2270, %v2234
    %v2312 = vsel %vm2255, %v2274, %v2236
    %v2313 = vsel %vm2255, %v2278, %v2238
    %v2314 = vsel %vm2255, %v2282, %v2240
    %v2315 = vsel %vm2255, %v2286, %v2242
    %v2316 = vsel %vm2255, %v2290, %v2244
    %v2317 = vsel %vm2255, %v2294, %v2246
    %v2318 = vsel %vm2255, %v2298, %v2248
    %v2319 = vsel %vm2255, %v2302, %v2250
    %v2320 = vsel %vm2255, %v2306, %v2252
    %vm2321 = vcmask 64512
    %2322 = vst.msk [vmem:[%s21] sm:$0xff] %vm2321, %v2308
    %2323 = vst.msk [vmem:[%s21 + $0x8] sm:$0xff] %vm2321, %v2309
    %2324 = vst.msk [vmem:[%s21 + $0x10] sm:$0xff] %vm2321, %v2310
    %2325 = vst.msk [vmem:[%s21 + $0x18] sm:$0xff] %vm2321, %v2311
    %2326 = vst.msk [vmem:[%s21 + $0x20] sm:$0xff] %vm2321, %v2312
    %2327 = vst.msk [vmem:[%s21 + $0x28] sm:$0xff] %vm2321, %v2313
    %2328 = vst.msk [vmem:[%s21 + $0x30] sm:$0xff] %vm2321, %v2314
    %2329 = vst.msk [vmem:[%s21 + $0x38] sm:$0xff] %vm2321, %v2315
    %2330 = vst.msk [vmem:[%s21 + $0x40] sm:$0xff] %vm2321, %v2316
    %2331 = vst.msk [vmem:[%s21 + $0x48] sm:$0xff] %vm2321, %v2317
    %2332 = vst.msk [vmem:[%s21 + $0x50] sm:$0xff] %vm2321, %v2318
    %2333 = vst.msk [vmem:[%s21 + $0x58] sm:$0xff] %vm2321, %v2319
    %2334 = vst.msk [vmem:[%s21 + $0x60] sm:$0xff] %vm2321, %v2320
    // Predicated region
    $region118: #{tpu_custom_call.1} parent=1 // pred_check
      _
    $region119: #{tpu_custom_call.1} parent=1 // pred_check_branch
      %2336 = sbr.rel (0) target = $region121
    $region120: #{tpu_custom_call.1} parent=1 // pred_region
      _
    $region121: #{tpu_custom_call.1} parent=1 // pred_fallthru
      _
    // Predicated region
    $region122: #{tpu_custom_call.1} parent=1 // pred_check
      _
    $region123: #{tpu_custom_call.1} parent=1 // pred_check_branch
      %2338 = sbr.rel (0) target = $region125
    $region124: #{tpu_custom_call.1} parent=1 // pred_region
      _
    $region125: #{tpu_custom_call.1} parent=1 // pred_fallthru
      _
    %2339 = vsyncpa [#allocation3], 1
    %2340 = vsyncpa [#allocation5], 1
    %2341 = vsyncpa [#allocation8], 1
    %2342 = vsyncpa [#allocation11], 1
    %2343 = vsyncpa [#allocation14], 1

</llo_original>
